<compile_context>
chip_gen: v7x
topology: tpu7x:2x2x1
jax: 0.10.0
libtpu: 0.0.40
codegen_flags: <defaults>
</compile_context>

<pallas_src>
import functools

import jax
import jax.numpy as jnp
from jax.experimental import pallas as pl
from jax.experimental.pallas import tpu as pltpu


# ----------------------------- in-kernel helpers -----------------------------

def _layernorm(x, w, b, eps=1e-5):
    """PyTorch LayerNorm (biased variance), fp32 math; w/b broadcast over rows."""
    x = x.astype(jnp.float32)
    mu = jnp.mean(x, axis=-1, keepdims=True)
    var = jnp.mean((x - mu) ** 2, axis=-1, keepdims=True)
    return (x - mu) * jax.lax.rsqrt(var + eps) * w + b


# ------------------------------- Pallas kernels -------------------------------

def embed_kernel(patches_ref, wpatch_ref, cls_ref, pos_ref, lnw_ref, lnb_ref, out_ref):
    """Patch-embed matmul (M = TB*Lp) + class token + positional emb + ln_pre.

    The patches were zero-padded in the wrapper to (TB, Lp, K): row 0 of each example
    is the class-token slot (zeros -> zero embedding) and the tail rows are padding, so
    one full-block matmul + one full-block store covers the whole (TB, Lp, D) tile.
    """
    tb, lp, kk = patches_ref.shape
    d = out_ref.shape[-1]

    pm = patches_ref[...].reshape(tb * lp, kk)                       # bf16, clean reshape
    emb = jnp.dot(pm, wpatch_ref[...], preferred_element_type=jnp.float32)
    x = emb.reshape(tb, lp, d)                                       # (TB, Lp, D) fp32

    row = jax.lax.broadcasted_iota(jnp.int32, (1, lp, 1), 1)
    x = x + jnp.where(row == 0, cls_ref[...], 0.0) + pos_ref[...][None]

    out_ref[...] = _layernorm(x, lnw_ref[...], lnb_ref[...])         # single full store


def transformer_kernel(x_in_ref,
                       ln1w_ref, ln1b_ref, wqkv_ref, bqkv_ref, wo_ref, bo_ref,
                       ln2w_ref, ln2b_ref, wfc_ref, bfc_ref, wpr_ref, bpr_ref,
                       x_ref, score_ref, ctx_ref, *, n_head, l_real):
    """All ResidualAttentionBlocks.  grid = (batch_tiles, layers), layers innermost.

    The residual stream lives in x_ref (output block with a layer-constant index, so it
    stays VMEM-resident across the layer sweep and is written to HBM once per tile).
    """
    layer = pl.program_id(1)

    @pl.when(layer == 0)
    def _():
        x_ref[...] = x_in_ref[...]            # seed the residual accumulator

    tb, lp, d = x_ref.shape
    dh = d // n_head
    scale = 1.0 / float(dh) ** 0.5
    rows = tb * lp

    x2 = x_ref[...].reshape(rows, d)          # fp32 residual, M = TB*Lp

    # ---- attention branch ----
    h = _layernorm(x2, ln1w_ref[0], ln1b_ref[0])
    qkv = jnp.dot(h.astype(jnp.bfloat16), wqkv_ref[0],
                  preferred_element_type=jnp.float32) + bqkv_ref[0]  # (rows, 3D) fp32

    q = (qkv[:, 0:d] * scale).astype(jnp.bfloat16).reshape(tb, lp, d)
    k = qkv[:, d:2 * d].astype(jnp.bfloat16).reshape(tb, lp, d)
    v = qkv[:, 2 * d:3 * d].astype(jnp.bfloat16).reshape(tb, lp, d)

    key_pad = lp > l_real                      # static: sequence was padded to Lp
    if key_pad:
        col = jax.lax.broadcasted_iota(jnp.int32, (1, 1, lp), 2)
        key_ok = col < l_real

    score_sum = jnp.zeros((tb, lp, lp), jnp.float32)
    for hh in range(n_head):                   # static loop; heads sliced in place
        sl = slice(hh * dh, (hh + 1) * dh)
        s = jnp.einsum('bld,bmd->blm', q[:, :, sl], k[:, :, sl],
                       preferred_element_type=jnp.float32)           # (TB, Lp, Lp)
        if key_pad:
            s = jnp.where(key_ok, s, -1e30)
        s = s - jnp.max(s, axis=-1, keepdims=True)
        p = jnp.exp(s)
        p = p * pl.reciprocal(jnp.sum(p, axis=-1, keepdims=True), approx=True)
        score_sum = score_sum + p
        # per-head context written at its lane offset: no (H, L, dh) stack / concat
        ctx_ref[:, :, sl] = jnp.einsum('blm,bmd->bld', p.astype(jnp.bfloat16),
                                       v[:, :, sl],
                                       preferred_element_type=jnp.float32)

    # need_weights=True, average_attn_weights=True -> mean over heads
    # TODO(synk): make this output optional to skip the head-mean + L^2 HBM write when
    #             the caller does not consume the attention maps.
    score_ref[0] = score_sum * (1.0 / n_head)

    attn_out = jnp.dot(ctx_ref[...].reshape(rows, d).astype(jnp.bfloat16), wo_ref[0],
                       preferred_element_type=jnp.float32) + bo_ref[0]
    x2 = x2 + attn_out                         # residual (fp32)

    # ---- MLP branch ----
    h2 = _layernorm(x2, ln2w_ref[0], ln2b_ref[0])
    hfc = jnp.dot(h2.astype(jnp.bfloat16), wfc_ref[0],
                  preferred_element_type=jnp.float32) + bfc_ref[0]   # (rows, 4D)
    hfc = hfc * jax.nn.sigmoid(1.702 * hfc)    # QuickGELU, fp32
    mlp = jnp.dot(hfc.astype(jnp.bfloat16), wpr_ref[0],
                  preferred_element_type=jnp.float32) + bpr_ref[0]
    x2 = x2 + mlp

    x_ref[...] = x2.reshape(tb, lp, d)         # stays in VMEM until the tile is done


def post_kernel(x_ref, lnw_ref, lnb_ref, proj_ref, out_ref):
    """ln_post + final projection, M = TB*Lp."""
    tb, lp, d = x_ref.shape
    od = out_ref.shape[-1]
    h = _layernorm(x_ref[...].reshape(tb * lp, d), lnw_ref[...], lnb_ref[...])
    y = jnp.dot(h.astype(jnp.bfloat16), proj_ref[...],
                preferred_element_type=jnp.float32)
    out_ref[...] = y.reshape(tb, lp, od)


# ------------------------- per-generation sizing helpers -------------------------

def _vmem_limit_bytes():
    """~3/4 of physical VMEM: ~96 MiB on v5e/v6e (128 MiB parts), ~48 MiB on v7x."""
    try:
        cap = int(pltpu.get_tpu_info().vmem_capacity_bytes)
    except Exception:
        cap = 64 * 1024 * 1024
    return max(32 * 1024 * 1024, (cap * 3) // 4)


def _pick_batch_tile(batch, lp, d, vmem_limit):
    """Largest divisor of `batch` whose per-step activation footprint fits the VMEM
    budget left after the double-buffered per-layer bf16 weights."""
    weight_bytes = 2 * 2 * (12 * d * d + 16 * d)          # bf16 x double-buffered
    act_bytes_per_ex = 4 * (16 * lp * d + 6 * lp * lp)    # fp32 temporaries (rough)
    budget = int(vmem_limit * 0.6) - weight_bytes
    cap = min(64, max(1, budget // max(act_bytes_per_ex, 1)))
    tb = 1
    for cand in range(1, batch + 1):
        if batch % cand == 0 and cand <= cap:
            tb = cand
    return tb


# ------------------------------ parameter setup -------------------------------

def init_params(key, input_resolution, patch_size, width, layers, heads, output_dim):
    P = (input_resolution // patch_size) ** 2
    L = P + 1
    K = 3 * patch_size * patch_size
    D = width
    scale = D ** -0.5

    keys = iter(jax.random.split(key, 16))

    def nrm(shape, s=0.02, dtype=jnp.float32):
        return (s * jax.random.normal(next(keys), shape, jnp.float32)).astype(dtype)

    return {
        # conv1.weight (D,3,ps,ps) -> reshape(D,-1).T : (K, D); bf16 MXU operand
        'w_patch': nrm((K, D), dtype=jnp.bfloat16),
        'cls': nrm((1, 1, D), s=scale),
        'pos': nrm((L, D), s=scale),
        'ln_pre_w': jnp.ones((1, D), jnp.float32),
        'ln_pre_b': jnp.zeros((1, D), jnp.float32),
        'ln_post_w': jnp.ones((1, D), jnp.float32),
        'ln_post_b': jnp.zeros((1, D), jnp.float32),
        'proj': nrm((D, output_dim), s=scale, dtype=jnp.bfloat16),
        # per-layer weights stacked along a leading layer axis (layer grid dimension);
        # all matrices stored pre-transposed so contractions hit the leading dim.
        'ln1_w': jnp.ones((layers, 1, D), jnp.float32),
        'ln1_b': jnp.zeros((layers, 1, D), jnp.float32),
        'w_qkv': nrm((layers, D, 3 * D), dtype=jnp.bfloat16),   # in_proj_weight.T
        'b_qkv': nrm((layers, 1, 3 * D)),
        'w_out': nrm((layers, D, D), dtype=jnp.bfloat16),       # out_proj.weight.T
        'b_out': nrm((layers, 1, D)),
        'ln2_w': jnp.ones((layers, 1, D), jnp.float32),
        'ln2_b': jnp.zeros((layers, 1, D), jnp.float32),
        'w_fc': nrm((layers, D, 4 * D), dtype=jnp.bfloat16),    # c_fc.weight.T
        'b_fc': nrm((layers, 1, 4 * D)),
        'w_pr': nrm((layers, 4 * D, D), dtype=jnp.bfloat16),    # c_proj.weight.T
        'b_pr': nrm((layers, 1, D)),
    }


# --------------------------------- forward ------------------------------------

def visual_transformer_forward(x_nchw, params, *, patch_size, heads):
    """x_nchw: (B, 3, H, W) fp32.  Returns (features (B, L, out_dim), [per-layer attn])."""
    B, C, H, W = x_nchw.shape
    gh, gw = H // patch_size, W // patch_size
    P = gh * gw
    L = P + 1
    Lp = ((L + 7) // 8) * 8                        # sublane-aligned sequence length
    K = C * patch_size * patch_size
    D = params['w_patch'].shape[1]
    out_dim = params['proj'].shape[1]
    layers = params['w_qkv'].shape[0]
    assert D % heads == 0

    vmem_limit = _vmem_limit_bytes()
    TB = _pick_batch_tile(B, Lp, D, vmem_limit)    # examples folded into matmul M
    nb = B // TB

    # stride == kernel_size Conv2d == patch extraction ((c, kh, kw) order) + matmul.
    patches = x_nchw.reshape(B, C, gh, patch_size, gw, patch_size)
    patches = patches.transpose(0, 2, 4, 1, 3, 5).reshape(B, P, K)
    patches = patches.astype(jnp.bfloat16)
    # pad to (B, Lp, K): row 0 = class-token slot (zeros), tail rows = seq padding.
    patches_pad = jnp.zeros((B, Lp, K), jnp.bfloat16).at[:, 1:P + 1, :].set(patches)
    pos_pad = jnp.zeros((Lp, D), jnp.float32).at[:L, :].set(params['pos'])

    cparams1 = pltpu.CompilerParams(dimension_semantics=("parallel",),
                                    vmem_limit_bytes=vmem_limit)
    cparams2 = pltpu.CompilerParams(dimension_semantics=("parallel", "arbitrary"),
                                    vmem_limit_bytes=vmem_limit)

    # ---- patch embed + cls + pos + ln_pre ----
    x = pl.pallas_call(
        embed_kernel,
        grid=(nb,),
        in_specs=[
            pl.BlockSpec((TB, Lp, K), lambda b: (b, 0, 0)),
            pl.BlockSpec((K, D), lambda b: (0, 0)),
            pl.BlockSpec((1, 1, D), lambda b: (0, 0, 0)),
            pl.BlockSpec((Lp, D), lambda b: (0, 0)),
            pl.BlockSpec((1, D), lambda b: (0, 0)),
            pl.BlockSpec((1, D), lambda b: (0, 0)),
        ],
        out_specs=pl.BlockSpec((TB, Lp, D), lambda b: (b, 0, 0)),
        out_shape=jax.ShapeDtypeStruct((B, Lp, D), jnp.float32),
        compiler_params=cparams1,
    )(patches_pad, params['w_patch'], params['cls'], pos_pad,
      params['ln_pre_w'], params['ln_pre_b'])

    # ---- all transformer blocks in ONE pallas_call (layer-resident residual) ----
    def wspec(arr):   # stacked per-layer params: one layer slice per inner grid step
        return pl.BlockSpec((1,) + arr.shape[1:], lambda b, l: (l, 0, 0))

    weight_names = ('ln1_w', 'ln1_b', 'w_qkv', 'b_qkv', 'w_out', 'b_out',
                    'ln2_w', 'ln2_b', 'w_fc', 'b_fc', 'w_pr', 'b_pr')

    x, scores = pl.pallas_call(
        functools.partial(transformer_kernel, n_head=heads, l_real=L),
        grid=(nb, layers),
        in_specs=[pl.BlockSpec((TB, Lp, D), lambda b, l: (b, 0, 0))]
                 + [wspec(params[n]) for n in weight_names],
        out_specs=(pl.BlockSpec((TB, Lp, D), lambda b, l: (b, 0, 0)),      # resident
                   pl.BlockSpec((1, TB, Lp, Lp), lambda b, l: (l, b, 0, 0))),
        out_shape=(jax.ShapeDtypeStruct((B, Lp, D), jnp.float32),
                   jax.ShapeDtypeStruct((layers, B, Lp, Lp), jnp.float32)),
        scratch_shapes=[pltpu.VMEM((TB, Lp, D), jnp.float32)],             # ctx
        input_output_aliases={0: 0},          # residual stream reuses its HBM buffer
        compiler_params=cparams2,
    )(x, *[params[n] for n in weight_names])

    # ---- ln_post + final projection ----
    out = pl.pallas_call(
        post_kernel,
        grid=(nb,),
        in_specs=[pl.BlockSpec((TB, Lp, D), lambda b: (b, 0, 0)),
                  pl.BlockSpec((1, D), lambda b: (0, 0)),
                  pl.BlockSpec((1, D), lambda b: (0, 0)),
                  pl.BlockSpec((D, out_dim), lambda b: (0, 0))],
        out_specs=pl.BlockSpec((TB, Lp, out_dim), lambda b: (b, 0, 0)),
        out_shape=jax.ShapeDtypeStruct((B, Lp, out_dim), jnp.float32),
        compiler_params=cparams1,
    )(x, params['ln_post_w'], params['ln_post_b'], params['proj'])

    # drop the sequence padding; return per-layer head-averaged attention maps.
    features = out[:, :L, :]
    att_scores = [scores[i, :, :L, :L] for i in range(layers)]
    return features, att_scores


# ----------------------------------- main --------------------------------------

if __name__ == "__main__":
    # Small config: 16x16 images, 8x8 patches -> 4 patches + 1 cls = 5 tokens
    # (padded to 8 in the kernels); width 128 so D / 3D / 4D are lane-aligned.
    input_resolution = 16
    patch_size = 8
    width = 128
    layers = 2
    heads = 4
    output_dim = 64
    batch = 2

    key = jax.random.PRNGKey(0)
    k_x, k_p = jax.random.split(key)
    x = jax.random.normal(k_x, (batch, 3, input_resolution, input_resolution),
                          jnp.float32)
    params = init_params(k_p, input_resolution, patch_size, width, layers, heads,
                         output_dim)

    fwd = jax.jit(functools.partial(visual_transformer_forward,
                                    patch_size=patch_size, heads=heads))
    out, scores = fwd(x, params)
    out = jax.block_until_ready(out)
    scores = [jax.block_until_ready(s) for s in scores]

    L = (input_resolution // patch_size) ** 2 + 1
    assert out.shape == (batch, L, output_dim), out.shape
    assert len(scores) == layers
    assert all(s.shape == (batch, L, L) for s in scores)
    assert bool(jnp.all(jnp.isfinite(out)))
    assert all(bool(jnp.all(jnp.isfinite(s))) for s in scores)
    # attention rows sum to ~1 over the real (unpadded) keys
    assert all(bool(jnp.all(jnp.abs(jnp.sum(s, axis=-1) - 1.0) < 1e-2)) for s in scores)
    print("KERNEL_OK")
</pallas_src>

<mosaic_0001>
module attributes {stable_mosaic.version = 11 : i64} {
  func.func @embed_kernel(%arg0: i32, %arg1: memref<2x8x192xbf16, #tpu.memory_space<vmem>>, %arg2: memref<192x128xbf16, #tpu.memory_space<vmem>>, %arg3: memref<1x1x128xf32, #tpu.memory_space<vmem>>, %arg4: memref<8x128xf32, #tpu.memory_space<vmem>>, %arg5: memref<1x128xf32, #tpu.memory_space<vmem>>, %arg6: memref<1x128xf32, #tpu.memory_space<vmem>>, %arg7: memref<2x8x128xf32, #tpu.memory_space<vmem>>) attributes {dimension_semantics = [#tpu.dimension_semantics<parallel>], iteration_bounds = array<i64: 1>, scalar_prefetch = 0 : i64, scratch_operands = 0 : i64, tpu.core_type = #tpu.core_type<tc>, window_params = [{transform_indices = @transform_0, window_bounds = array<i64: 2, 8, 192>}, {pipeline_mode = #tpu.pipeline_mode<synchronous>, transform_indices = @transform_1, window_bounds = array<i64: 192, 128>}, {pipeline_mode = #tpu.pipeline_mode<synchronous>, transform_indices = @transform_2, window_bounds = array<i64: 1, 1, 128>}, {pipeline_mode = #tpu.pipeline_mode<synchronous>, transform_indices = @transform_3, window_bounds = array<i64: 8, 128>}, {pipeline_mode = #tpu.pipeline_mode<synchronous>, transform_indices = @transform_4, window_bounds = array<i64: 1, 128>}, {pipeline_mode = #tpu.pipeline_mode<synchronous>, transform_indices = @transform_5, window_bounds = array<i64: 1, 128>}, {transform_indices = @transform_6, window_bounds = array<i64: 2, 8, 128>}]} {
    %c0 = arith.constant 0 : index
    %c0_0 = arith.constant 0 : index
    %c0_1 = arith.constant 0 : index
    %0 = vector.load %arg1[%c0, %c0_0, %c0_1] : memref<2x8x192xbf16, #tpu.memory_space<vmem>>, vector<2x8x192xbf16>
    %1 = vector.shape_cast %0 : vector<2x8x192xbf16> to vector<16x192xbf16>
    %c0_2 = arith.constant 0 : index
    %c0_3 = arith.constant 0 : index
    %2 = vector.load %arg2[%c0_2, %c0_3] : memref<192x128xbf16, #tpu.memory_space<vmem>>, vector<192x128xbf16>
    %cst = arith.constant dense<0.000000e+00> : vector<16x128xf32>
    %3 = tpu.matmul %1, %2, %cst {dimension_numbers = #tpu.dot_dimension_numbers<[1], [0], [0], [1], [0, 0, 1, 1], [], []>} : vector<16x192xbf16>, vector<192x128xbf16>, vector<16x128xf32> -> vector<16x128xf32>
    %4 = vector.shape_cast %3 : vector<16x128xf32> to vector<2x8x128xf32>
    %5 = tpu.iota {dimensions = array<i32: 1>} : vector<1x8x1xi32>
    %c0_i32 = arith.constant 0 : i32
    %6 = vector.broadcast %c0_i32 : i32 to vector<1x8x1xi32>
    %7 = arith.cmpi eq, %5, %6 : vector<1x8x1xi32>
    %c0_4 = arith.constant 0 : index
    %c0_5 = arith.constant 0 : index
    %c0_6 = arith.constant 0 : index
    %8 = vector.load %arg3[%c0_4, %c0_5, %c0_6] : memref<1x1x128xf32, #tpu.memory_space<vmem>>, vector<1x1x128xf32>
    %cst_7 = arith.constant 0.000000e+00 : f32
    %9 = vector.shape_cast %7 : vector<1x8x1xi1> to vector<1x8x1xi1>
    %10 = vector.broadcast %9 : vector<1x8x1xi1> to vector<1x8x128xi1>
    %11 = vector.shape_cast %8 : vector<1x1x128xf32> to vector<1x1x128xf32>
    %12 = vector.broadcast %11 : vector<1x1x128xf32> to vector<1x8x128xf32>
    %13 = vector.broadcast %cst_7 : f32 to vector<1x8x128xf32>
    %14 = arith.select %10, %12, %13 : vector<1x8x128xi1>, vector<1x8x128xf32>
    %15 = vector.broadcast %14 : vector<1x8x128xf32> to vector<2x8x128xf32>
    %16 = arith.addf %4, %15 : vector<2x8x128xf32>
    %c0_8 = arith.constant 0 : index
    %c0_9 = arith.constant 0 : index
    %17 = vector.load %arg4[%c0_8, %c0_9] : memref<8x128xf32, #tpu.memory_space<vmem>>, vector<8x128xf32>
    %18 = vector.shape_cast %17 : vector<8x128xf32> to vector<1x8x128xf32>
    %19 = vector.broadcast %18 : vector<1x8x128xf32> to vector<2x8x128xf32>
    %20 = arith.addf %16, %19 : vector<2x8x128xf32>
    %c0_10 = arith.constant 0 : index
    %c0_11 = arith.constant 0 : index
    %21 = vector.load %arg5[%c0_10, %c0_11] : memref<1x128xf32, #tpu.memory_space<vmem>>, vector<1x128xf32>
    %c0_12 = arith.constant 0 : index
    %c0_13 = arith.constant 0 : index
    %22 = vector.load %arg6[%c0_12, %c0_13] : memref<1x128xf32, #tpu.memory_space<vmem>>, vector<1x128xf32>
    %cst_14 = arith.constant dense<0.000000e+00> : vector<2x8xf32>
    %23 = vector.multi_reduction <add>, %20, %cst_14 [2] : vector<2x8x128xf32> to vector<2x8xf32>
    %24 = vector.shape_cast %23 : vector<2x8xf32> to vector<2x8x1xf32>
    %cst_15 = arith.constant 1.280000e+02 : f32
    %25 = vector.broadcast %cst_15 : f32 to vector<2x8x1xf32>
    %26 = arith.divf %24, %25 : vector<2x8x1xf32>
    %27 = vector.broadcast %26 : vector<2x8x1xf32> to vector<2x8x128xf32>
    %28 = arith.subf %20, %27 : vector<2x8x128xf32>
    %29 = arith.mulf %28, %28 : vector<2x8x128xf32>
    %cst_16 = arith.constant dense<0.000000e+00> : vector<2x8xf32>
    %30 = vector.multi_reduction <add>, %29, %cst_16 [2] : vector<2x8x128xf32> to vector<2x8xf32>
    %31 = vector.shape_cast %30 : vector<2x8xf32> to vector<2x8x1xf32>
    %cst_17 = arith.constant 1.280000e+02 : f32
    %32 = vector.broadcast %cst_17 : f32 to vector<2x8x1xf32>
    %33 = arith.divf %31, %32 : vector<2x8x1xf32>
    %34 = vector.broadcast %26 : vector<2x8x1xf32> to vector<2x8x128xf32>
    %35 = arith.subf %20, %34 : vector<2x8x128xf32>
    %cst_18 = arith.constant 9.99999974E-6 : f32
    %36 = vector.broadcast %cst_18 : f32 to vector<2x8x1xf32>
    %37 = arith.addf %33, %36 : vector<2x8x1xf32>
    %38 = math.rsqrt %37 : vector<2x8x1xf32>
    %39 = vector.broadcast %38 : vector<2x8x1xf32> to vector<2x8x128xf32>
    %40 = arith.mulf %35, %39 : vector<2x8x128xf32>
    %41 = vector.shape_cast %21 : vector<1x128xf32> to vector<1x1x128xf32>
    %42 = vector.broadcast %41 : vector<1x1x128xf32> to vector<2x8x128xf32>
    %43 = arith.mulf %40, %42 : vector<2x8x128xf32>
    %44 = vector.shape_cast %22 : vector<1x128xf32> to vector<1x1x128xf32>
    %45 = vector.broadcast %44 : vector<1x1x128xf32> to vector<2x8x128xf32>
    %46 = arith.addf %43, %45 : vector<2x8x128xf32>
    %c0_19 = arith.constant 0 : index
    %c0_20 = arith.constant 0 : index
    %c0_21 = arith.constant 0 : index
    %47 = vector.load %arg7[%c0_19, %c0_20, %c0_21] : memref<2x8x128xf32, #tpu.memory_space<vmem>>, vector<2x8x128xf32>
    tpu.vector_store %arg7[%c0_19, %c0_20, %c0_21], %46 {strides = array<i32>} : memref<2x8x128xf32, #tpu.memory_space<vmem>>, vector<2x8x128xf32>,
    return
  }
  func.func @transform_0(%arg0: i32) -> (i32, i32, i32) {
    %c0_i32 = arith.constant 0 : i32
    %c0_i32_0 = arith.constant 0 : i32
    %c0_i32_1 = arith.constant 0 : i32
    return %arg0, %c0_i32, %c0_i32_0 : i32, i32, i32
  }
  func.func @transform_1(%arg0: i32) -> (i32, i32) {
    %c0_i32 = arith.constant 0 : i32
    %c0_i32_0 = arith.constant 0 : i32
    %c0_i32_1 = arith.constant 0 : i32
    return %c0_i32, %c0_i32_0 : i32, i32
  }
  func.func @transform_2(%arg0: i32) -> (i32, i32, i32) {
    %c0_i32 = arith.constant 0 : i32
    %c0_i32_0 = arith.constant 0 : i32
    %c0_i32_1 = arith.constant 0 : i32
    %c0_i32_2 = arith.constant 0 : i32
    return %c0_i32, %c0_i32_0, %c0_i32_1 : i32, i32, i32
  }
  func.func @transform_3(%arg0: i32) -> (i32, i32) {
    %c0_i32 = arith.constant 0 : i32
    %c0_i32_0 = arith.constant 0 : i32
    %c0_i32_1 = arith.constant 0 : i32
    return %c0_i32, %c0_i32_0 : i32, i32
  }
  func.func @transform_4(%arg0: i32) -> (i32, i32) {
    %c0_i32 = arith.constant 0 : i32
    %c0_i32_0 = arith.constant 0 : i32
    %c0_i32_1 = arith.constant 0 : i32
    return %c0_i32, %c0_i32_0 : i32, i32
  }
  func.func @transform_5(%arg0: i32) -> (i32, i32) {
    %c0_i32 = arith.constant 0 : i32
    %c0_i32_0 = arith.constant 0 : i32
    %c0_i32_1 = arith.constant 0 : i32
    return %c0_i32, %c0_i32_0 : i32, i32
  }
  func.func @transform_6(%arg0: i32) -> (i32, i32, i32) {
    %c0_i32 = arith.constant 0 : i32
    %c0_i32_0 = arith.constant 0 : i32
    %c0_i32_1 = arith.constant 0 : i32
    return %arg0, %c0_i32, %c0_i32_0 : i32, i32, i32
  }
}

module attributes {stable_mosaic.version = 11 : i64} {
  func.func @transformer_kernel(%arg0: i32, %arg1: i32, %arg2: memref<2x8x128xf32, #tpu.memory_space<vmem>>, %arg3: memref<1x1x128xf32, #tpu.memory_space<vmem>>, %arg4: memref<1x1x128xf32, #tpu.memory_space<vmem>>, %arg5: memref<1x128x384xbf16, #tpu.memory_space<vmem>>, %arg6: memref<1x1x384xf32, #tpu.memory_space<vmem>>, %arg7: memref<1x128x128xbf16, #tpu.memory_space<vmem>>, %arg8: memref<1x1x128xf32, #tpu.memory_space<vmem>>, %arg9: memref<1x1x128xf32, #tpu.memory_space<vmem>>, %arg10: memref<1x1x128xf32, #tpu.memory_space<vmem>>, %arg11: memref<1x128x512xbf16, #tpu.memory_space<vmem>>, %arg12: memref<1x1x512xf32, #tpu.memory_space<vmem>>, %arg13: memref<1x512x128xbf16, #tpu.memory_space<vmem>>, %arg14: memref<1x1x128xf32, #tpu.memory_space<vmem>>, %arg15: memref<2x8x128xf32, #tpu.memory_space<vmem>>, %arg16: memref<1x2x8x8xf32, #tpu.memory_space<vmem>>, %arg17: memref<2x8x128xf32, #tpu.memory_space<vmem>>) attributes {dimension_semantics = [#tpu.dimension_semantics<parallel>, #tpu.dimension_semantics<arbitrary>], iteration_bounds = array<i64: 1, 2>, scalar_prefetch = 0 : i64, scratch_operands = 1 : i64, tpu.core_type = #tpu.core_type<tc>, window_params = [{transform_indices = @transform_0, window_bounds = array<i64: 2, 8, 128>}, {transform_indices = @transform_1, window_bounds = array<i64: 1, 1, 128>}, {transform_indices = @transform_2, window_bounds = array<i64: 1, 1, 128>}, {transform_indices = @transform_3, window_bounds = array<i64: 1, 128, 384>}, {transform_indices = @transform_4, window_bounds = array<i64: 1, 1, 384>}, {transform_indices = @transform_5, window_bounds = array<i64: 1, 128, 128>}, {transform_indices = @transform_6, window_bounds = array<i64: 1, 1, 128>}, {transform_indices = @transform_7, window_bounds = array<i64: 1, 1, 128>}, {transform_indices = @transform_8, window_bounds = array<i64: 1, 1, 128>}, {transform_indices = @transform_9, window_bounds = array<i64: 1, 128, 512>}, {transform_indices = @transform_10, window_bounds = array<i64: 1, 1, 512>}, {transform_indices = @transform_11, window_bounds = array<i64: 1, 512, 128>}, {transform_indices = @transform_12, window_bounds = array<i64: 1, 1, 128>}, {transform_indices = @transform_13, window_bounds = array<i64: 2, 8, 128>}, {transform_indices = @transform_14, window_bounds = array<i64: 1, 2, 8, 8>}]} {
    %c0_i32 = arith.constant 0 : i32
    %0 = arith.cmpi eq, %arg1, %c0_i32 : i32
    %1 = arith.extui %0 : i1 to i32
    %c0_i32_0 = arith.constant 0 : i32
    %2 = arith.cmpi ne, %1, %c0_i32_0 : i32
    scf.if %2 {
      %c0_96 = arith.constant 0 : index
      %c0_97 = arith.constant 0 : index
      %c0_98 = arith.constant 0 : index
      %211 = vector.load %arg2[%c0_96, %c0_97, %c0_98] : memref<2x8x128xf32, #tpu.memory_space<vmem>>, vector<2x8x128xf32>
      %c0_99 = arith.constant 0 : index
      %c0_100 = arith.constant 0 : index
      %c0_101 = arith.constant 0 : index
      %212 = vector.load %arg15[%c0_99, %c0_100, %c0_101] : memref<2x8x128xf32, #tpu.memory_space<vmem>>, vector<2x8x128xf32>
      tpu.vector_store %arg15[%c0_99, %c0_100, %c0_101], %211 {strides = array<i32>} : memref<2x8x128xf32, #tpu.memory_space<vmem>>, vector<2x8x128xf32>,
    } else {
    }
    %c0 = arith.constant 0 : index
    %c0_1 = arith.constant 0 : index
    %c0_2 = arith.constant 0 : index
    %3 = vector.load %arg15[%c0, %c0_1, %c0_2] : memref<2x8x128xf32, #tpu.memory_space<vmem>>, vector<2x8x128xf32>
    %4 = vector.shape_cast %3 : vector<2x8x128xf32> to vector<16x128xf32>
    %c0_3 = arith.constant 0 : index
    %c0_4 = arith.constant 0 : index
    %c0_5 = arith.constant 0 : index
    %5 = vector.load %arg3[%c0_3, %c0_4, %c0_5] : memref<1x1x128xf32, #tpu.memory_space<vmem>>, vector<1x1x128xf32>
    %6 = vector.shape_cast %5 : vector<1x1x128xf32> to vector<1x128xf32>
    %c0_6 = arith.constant 0 : index
    %c0_7 = arith.constant 0 : index
    %c0_8 = arith.constant 0 : index
    %7 = vector.load %arg4[%c0_6, %c0_7, %c0_8] : memref<1x1x128xf32, #tpu.memory_space<vmem>>, vector<1x1x128xf32>
    %8 = vector.shape_cast %7 : vector<1x1x128xf32> to vector<1x128xf32>
    %cst = arith.constant dense<0.000000e+00> : vector<16xf32>
    %9 = vector.multi_reduction <add>, %4, %cst [1] : vector<16x128xf32> to vector<16xf32>
    %10 = vector.shape_cast %9 : vector<16xf32> to vector<16x1xf32>
    %cst_9 = arith.constant 1.280000e+02 : f32
    %11 = vector.broadcast %cst_9 : f32 to vector<16x1xf32>
    %12 = arith.divf %10, %11 : vector<16x1xf32>
    %13 = vector.broadcast %12 : vector<16x1xf32> to vector<16x128xf32>
    %14 = arith.subf %4, %13 : vector<16x128xf32>
    %15 = arith.mulf %14, %14 : vector<16x128xf32>
    %cst_10 = arith.constant dense<0.000000e+00> : vector<16xf32>
    %16 = vector.multi_reduction <add>, %15, %cst_10 [1] : vector<16x128xf32> to vector<16xf32>
    %17 = vector.shape_cast %16 : vector<16xf32> to vector<16x1xf32>
    %cst_11 = arith.constant 1.280000e+02 : f32
    %18 = vector.broadcast %cst_11 : f32 to vector<16x1xf32>
    %19 = arith.divf %17, %18 : vector<16x1xf32>
    %20 = vector.broadcast %12 : vector<16x1xf32> to vector<16x128xf32>
    %21 = arith.subf %4, %20 : vector<16x128xf32>
    %cst_12 = arith.constant 9.99999974E-6 : f32
    %22 = vector.broadcast %cst_12 : f32 to vector<16x1xf32>
    %23 = arith.addf %19, %22 : vector<16x1xf32>
    %24 = math.rsqrt %23 : vector<16x1xf32>
    %25 = vector.broadcast %24 : vector<16x1xf32> to vector<16x128xf32>
    %26 = arith.mulf %21, %25 : vector<16x128xf32>
    %27 = vector.broadcast %6 : vector<1x128xf32> to vector<16x128xf32>
    %28 = arith.mulf %26, %27 : vector<16x128xf32>
    %29 = vector.broadcast %8 : vector<1x128xf32> to vector<16x128xf32>
    %30 = arith.addf %28, %29 : vector<16x128xf32>
    %31 = arith.truncf %30 : vector<16x128xf32> to vector<16x128xbf16>
    %c0_13 = arith.constant 0 : index
    %c0_14 = arith.constant 0 : index
    %c0_15 = arith.constant 0 : index
    %32 = vector.load %arg5[%c0_13, %c0_14, %c0_15] : memref<1x128x384xbf16, #tpu.memory_space<vmem>>, vector<1x128x384xbf16>
    %33 = vector.shape_cast %32 : vector<1x128x384xbf16> to vector<128x384xbf16>
    %cst_16 = arith.constant dense<0.000000e+00> : vector<16x384xf32>
    %34 = tpu.matmul %31, %33, %cst_16 {dimension_numbers = #tpu.dot_dimension_numbers<[1], [0], [0], [1], [0, 0, 1, 1], [], []>} : vector<16x128xbf16>, vector<128x384xbf16>, vector<16x384xf32> -> vector<16x384xf32>
    %c0_17 = arith.constant 0 : index
    %c0_18 = arith.constant 0 : index
    %c0_19 = arith.constant 0 : index
    %35 = vector.load %arg6[%c0_17, %c0_18, %c0_19] : memref<1x1x384xf32, #tpu.memory_space<vmem>>, vector<1x1x384xf32>
    %36 = vector.shape_cast %35 : vector<1x1x384xf32> to vector<1x384xf32>
    %37 = vector.broadcast %36 : vector<1x384xf32> to vector<16x384xf32>
    %38 = arith.addf %34, %37 : vector<16x384xf32>
    %39 = vector.extract_strided_slice %38 {offsets = [0, 0], sizes = [16, 128], strides = [1, 1]} : vector<16x384xf32> to vector<16x128xf32>
    %cst_20 = arith.constant 0.176776692 : f32
    %40 = vector.broadcast %cst_20 : f32 to vector<16x128xf32>
    %41 = arith.mulf %39, %40 : vector<16x128xf32>
    %42 = arith.truncf %41 : vector<16x128xf32> to vector<16x128xbf16>
    %43 = vector.shape_cast %42 : vector<16x128xbf16> to vector<2x8x128xbf16>
    %44 = vector.extract_strided_slice %38 {offsets = [0, 128], sizes = [16, 128], strides = [1, 1]} : vector<16x384xf32> to vector<16x128xf32>
    %45 = arith.truncf %44 : vector<16x128xf32> to vector<16x128xbf16>
    %46 = vector.shape_cast %45 : vector<16x128xbf16> to vector<2x8x128xbf16>
    %47 = vector.extract_strided_slice %38 {offsets = [0, 256], sizes = [16, 128], strides = [1, 1]} : vector<16x384xf32> to vector<16x128xf32>
    %48 = arith.truncf %47 : vector<16x128xf32> to vector<16x128xbf16>
    %49 = vector.shape_cast %48 : vector<16x128xbf16> to vector<2x8x128xbf16>
    %50 = tpu.iota {dimensions = array<i32: 2>} : vector<1x1x8xi32>
    %c5_i32 = arith.constant 5 : i32
    %51 = vector.broadcast %c5_i32 : i32 to vector<1x1x8xi32>
    %52 = arith.cmpi slt, %50, %51 : vector<1x1x8xi32>
    %cst_21 = arith.constant 0.000000e+00 : f32
    %53 = vector.broadcast %cst_21 : f32 to vector<2x8x8xf32>
    %54 = vector.extract_strided_slice %43 {offsets = [0, 0, 0], sizes = [2, 8, 32], strides = [1, 1, 1]} : vector<2x8x128xbf16> to vector<2x8x32xbf16>
    %55 = vector.extract_strided_slice %46 {offsets = [0, 0, 0], sizes = [2, 8, 32], strides = [1, 1, 1]} : vector<2x8x128xbf16> to vector<2x8x32xbf16>
    "tpu.trace_start"() <{level = 10 : i32, message = "bld,bmd->blm"}> : () -> ()
    %cst_22 = arith.constant dense<0.000000e+00> : vector<2x8x8xf32>
    %56 = tpu.matmul %54, %55, %cst_22 {dimension_numbers = #tpu.dot_dimension_numbers<[2], [2], [1], [1], [0, 0, 0, 1, 1, 1], [0], [0]>} : vector<2x8x32xbf16>, vector<2x8x32xbf16>, vector<2x8x8xf32> -> vector<2x8x8xf32>
    %cst_23 = arith.constant -1.000000e+30 : f32
    "tpu.trace_stop"() : () -> ()
    %57 = vector.shape_cast %52 : vector<1x1x8xi1> to vector<1x1x8xi1>
    %58 = vector.broadcast %57 : vector<1x1x8xi1> to vector<2x8x8xi1>
    %59 = vector.broadcast %cst_23 : f32 to vector<2x8x8xf32>
    %60 = arith.select %58, %56, %59 : vector<2x8x8xi1>, vector<2x8x8xf32>
    %cst_24 = arith.constant dense<0xFF800000> : vector<2x8xf32>
    %61 = vector.multi_reduction <maximumf>, %60, %cst_24 [2] : vector<2x8x8xf32> to vector<2x8xf32>
    %62 = vector.shape_cast %61 : vector<2x8xf32> to vector<2x8x1xf32>
    %63 = vector.broadcast %62 : vector<2x8x1xf32> to vector<2x8x8xf32>
    %64 = arith.subf %60, %63 : vector<2x8x8xf32>
    %65 = math.exp %64 : vector<2x8x8xf32>
    %cst_25 = arith.constant dense<0.000000e+00> : vector<2x8xf32>
    %66 = vector.multi_reduction <add>, %65, %cst_25 [2] : vector<2x8x8xf32> to vector<2x8xf32>
    %67 = vector.shape_cast %66 : vector<2x8xf32> to vector<2x8x1xf32>
    %68 = tpu.reciprocal %67 {approx = true} : vector<2x8x1xf32> -> vector<2x8x1xf32>
    %69 = vector.broadcast %68 : vector<2x8x1xf32> to vector<2x8x8xf32>
    %70 = arith.mulf %65, %69 : vector<2x8x8xf32>
    %71 = arith.addf %53, %70 : vector<2x8x8xf32>
    %72 = arith.truncf %70 : vector<2x8x8xf32> to vector<2x8x8xbf16>
    %73 = vector.extract_strided_slice %49 {offsets = [0, 0, 0], sizes = [2, 8, 32], strides = [1, 1, 1]} : vector<2x8x128xbf16> to vector<2x8x32xbf16>
    "tpu.trace_start"() <{level = 10 : i32, message = "blm,bmd->bld"}> : () -> ()
    %cst_26 = arith.constant dense<0.000000e+00> : vector<2x8x32xf32>
    %74 = tpu.matmul %72, %73, %cst_26 {dimension_numbers = #tpu.dot_dimension_numbers<[2], [1], [1], [2], [0, 0, 0, 1, 1, 2], [0], [0]>} : vector<2x8x8xbf16>, vector<2x8x32xbf16>, vector<2x8x32xf32> -> vector<2x8x32xf32>
    "tpu.trace_stop"() : () -> ()
    %c0_27 = arith.constant 0 : index
    %c0_28 = arith.constant 0 : index
    %c0_29 = arith.constant 0 : index
    %75 = vector.load %arg17[%c0_27, %c0_28, %c0_29] : memref<2x8x128xf32, #tpu.memory_space<vmem>>, vector<2x8x32xf32>
    tpu.vector_store %arg17[%c0_27, %c0_28, %c0_29], %74 {strides = array<i32>} : memref<2x8x128xf32, #tpu.memory_space<vmem>>, vector<2x8x32xf32>,
    %76 = vector.extract_strided_slice %43 {offsets = [0, 0, 32], sizes = [2, 8, 32], strides = [1, 1, 1]} : vector<2x8x128xbf16> to vector<2x8x32xbf16>
    %77 = vector.extract_strided_slice %46 {offsets = [0, 0, 32], sizes = [2, 8, 32], strides = [1, 1, 1]} : vector<2x8x128xbf16> to vector<2x8x32xbf16>
    "tpu.trace_start"() <{level = 10 : i32, message = "bld,bmd->blm"}> : () -> ()
    %cst_30 = arith.constant dense<0.000000e+00> : vector<2x8x8xf32>
    %78 = tpu.matmul %76, %77, %cst_30 {dimension_numbers = #tpu.dot_dimension_numbers<[2], [2], [1], [1], [0, 0, 0, 1, 1, 1], [0], [0]>} : vector<2x8x32xbf16>, vector<2x8x32xbf16>, vector<2x8x8xf32> -> vector<2x8x8xf32>
    %cst_31 = arith.constant -1.000000e+30 : f32
    "tpu.trace_stop"() : () -> ()
    %79 = vector.shape_cast %52 : vector<1x1x8xi1> to vector<1x1x8xi1>
    %80 = vector.broadcast %79 : vector<1x1x8xi1> to vector<2x8x8xi1>
    %81 = vector.broadcast %cst_31 : f32 to vector<2x8x8xf32>
    %82 = arith.select %80, %78, %81 : vector<2x8x8xi1>, vector<2x8x8xf32>
    %cst_32 = arith.constant dense<0xFF800000> : vector<2x8xf32>
    %83 = vector.multi_reduction <maximumf>, %82, %cst_32 [2] : vector<2x8x8xf32> to vector<2x8xf32>
    %84 = vector.shape_cast %83 : vector<2x8xf32> to vector<2x8x1xf32>
    %85 = vector.broadcast %84 : vector<2x8x1xf32> to vector<2x8x8xf32>
    %86 = arith.subf %82, %85 : vector<2x8x8xf32>
    %87 = math.exp %86 : vector<2x8x8xf32>
    %cst_33 = arith.constant dense<0.000000e+00> : vector<2x8xf32>
    %88 = vector.multi_reduction <add>, %87, %cst_33 [2] : vector<2x8x8xf32> to vector<2x8xf32>
    %89 = vector.shape_cast %88 : vector<2x8xf32> to vector<2x8x1xf32>
    %90 = tpu.reciprocal %89 {approx = true} : vector<2x8x1xf32> -> vector<2x8x1xf32>
    %91 = vector.broadcast %90 : vector<2x8x1xf32> to vector<2x8x8xf32>
    %92 = arith.mulf %87, %91 : vector<2x8x8xf32>
    %93 = arith.addf %71, %92 : vector<2x8x8xf32>
    %94 = arith.truncf %92 : vector<2x8x8xf32> to vector<2x8x8xbf16>
    %95 = vector.extract_strided_slice %49 {offsets = [0, 0, 32], sizes = [2, 8, 32], strides = [1, 1, 1]} : vector<2x8x128xbf16> to vector<2x8x32xbf16>
    "tpu.trace_start"() <{level = 10 : i32, message = "blm,bmd->bld"}> : () -> ()
    %cst_34 = arith.constant dense<0.000000e+00> : vector<2x8x32xf32>
    %96 = tpu.matmul %94, %95, %cst_34 {dimension_numbers = #tpu.dot_dimension_numbers<[2], [1], [1], [2], [0, 0, 0, 1, 1, 2], [0], [0]>} : vector<2x8x8xbf16>, vector<2x8x32xbf16>, vector<2x8x32xf32> -> vector<2x8x32xf32>
    "tpu.trace_stop"() : () -> ()
    %c0_35 = arith.constant 0 : index
    %c0_36 = arith.constant 0 : index
    %c32 = arith.constant 32 : index
    %97 = vector.load %arg17[%c0_35, %c0_36, %c32] : memref<2x8x128xf32, #tpu.memory_space<vmem>>, vector<2x8x32xf32>
    tpu.vector_store %arg17[%c0_35, %c0_36, %c32], %96 {strides = array<i32>} : memref<2x8x128xf32, #tpu.memory_space<vmem>>, vector<2x8x32xf32>,
    %98 = vector.extract_strided_slice %43 {offsets = [0, 0, 64], sizes = [2, 8, 32], strides = [1, 1, 1]} : vector<2x8x128xbf16> to vector<2x8x32xbf16>
    %99 = vector.extract_strided_slice %46 {offsets = [0, 0, 64], sizes = [2, 8, 32], strides = [1, 1, 1]} : vector<2x8x128xbf16> to vector<2x8x32xbf16>
    "tpu.trace_start"() <{level = 10 : i32, message = "bld,bmd->blm"}> : () -> ()
    %cst_37 = arith.constant dense<0.000000e+00> : vector<2x8x8xf32>
    %100 = tpu.matmul %98, %99, %cst_37 {dimension_numbers = #tpu.dot_dimension_numbers<[2], [2], [1], [1], [0, 0, 0, 1, 1, 1], [0], [0]>} : vector<2x8x32xbf16>, vector<2x8x32xbf16>, vector<2x8x8xf32> -> vector<2x8x8xf32>
    %cst_38 = arith.constant -1.000000e+30 : f32
    "tpu.trace_stop"() : () -> ()
    %101 = vector.shape_cast %52 : vector<1x1x8xi1> to vector<1x1x8xi1>
    %102 = vector.broadcast %101 : vector<1x1x8xi1> to vector<2x8x8xi1>
    %103 = vector.broadcast %cst_38 : f32 to vector<2x8x8xf32>
    %104 = arith.select %102, %100, %103 : vector<2x8x8xi1>, vector<2x8x8xf32>
    %cst_39 = arith.constant dense<0xFF800000> : vector<2x8xf32>
    %105 = vector.multi_reduction <maximumf>, %104, %cst_39 [2] : vector<2x8x8xf32> to vector<2x8xf32>
    %106 = vector.shape_cast %105 : vector<2x8xf32> to vector<2x8x1xf32>
    %107 = vector.broadcast %106 : vector<2x8x1xf32> to vector<2x8x8xf32>
    %108 = arith.subf %104, %107 : vector<2x8x8xf32>
    %109 = math.exp %108 : vector<2x8x8xf32>
    %cst_40 = arith.constant dense<0.000000e+00> : vector<2x8xf32>
    %110 = vector.multi_reduction <add>, %109, %cst_40 [2] : vector<2x8x8xf32> to vector<2x8xf32>
    %111 = vector.shape_cast %110 : vector<2x8xf32> to vector<2x8x1xf32>
    %112 = tpu.reciprocal %111 {approx = true} : vector<2x8x1xf32> -> vector<2x8x1xf32>
    %113 = vector.broadcast %112 : vector<2x8x1xf32> to vector<2x8x8xf32>
    %114 = arith.mulf %109, %113 : vector<2x8x8xf32>
    %115 = arith.addf %93, %114 : vector<2x8x8xf32>
    %116 = arith.truncf %114 : vector<2x8x8xf32> to vector<2x8x8xbf16>
    %117 = vector.extract_strided_slice %49 {offsets = [0, 0, 64], sizes = [2, 8, 32], strides = [1, 1, 1]} : vector<2x8x128xbf16> to vector<2x8x32xbf16>
    "tpu.trace_start"() <{level = 10 : i32, message = "blm,bmd->bld"}> : () -> ()
    %cst_41 = arith.constant dense<0.000000e+00> : vector<2x8x32xf32>
    %118 = tpu.matmul %116, %117, %cst_41 {dimension_numbers = #tpu.dot_dimension_numbers<[2], [1], [1], [2], [0, 0, 0, 1, 1, 2], [0], [0]>} : vector<2x8x8xbf16>, vector<2x8x32xbf16>, vector<2x8x32xf32> -> vector<2x8x32xf32>
    "tpu.trace_stop"() : () -> ()
    %c0_42 = arith.constant 0 : index
    %c0_43 = arith.constant 0 : index
    %c64 = arith.constant 64 : index
    %119 = vector.load %arg17[%c0_42, %c0_43, %c64] : memref<2x8x128xf32, #tpu.memory_space<vmem>>, vector<2x8x32xf32>
    tpu.vector_store %arg17[%c0_42, %c0_43, %c64], %118 {strides = array<i32>} : memref<2x8x128xf32, #tpu.memory_space<vmem>>, vector<2x8x32xf32>,
    %120 = vector.extract_strided_slice %43 {offsets = [0, 0, 96], sizes = [2, 8, 32], strides = [1, 1, 1]} : vector<2x8x128xbf16> to vector<2x8x32xbf16>
    %121 = vector.extract_strided_slice %46 {offsets = [0, 0, 96], sizes = [2, 8, 32], strides = [1, 1, 1]} : vector<2x8x128xbf16> to vector<2x8x32xbf16>
    "tpu.trace_start"() <{level = 10 : i32, message = "bld,bmd->blm"}> : () -> ()
    %cst_44 = arith.constant dense<0.000000e+00> : vector<2x8x8xf32>
    %122 = tpu.matmul %120, %121, %cst_44 {dimension_numbers = #tpu.dot_dimension_numbers<[2], [2], [1], [1], [0, 0, 0, 1, 1, 1], [0], [0]>} : vector<2x8x32xbf16>, vector<2x8x32xbf16>, vector<2x8x8xf32> -> vector<2x8x8xf32>
    %cst_45 = arith.constant -1.000000e+30 : f32
    "tpu.trace_stop"() : () -> ()
    %123 = vector.shape_cast %52 : vector<1x1x8xi1> to vector<1x1x8xi1>
    %124 = vector.broadcast %123 : vector<1x1x8xi1> to vector<2x8x8xi1>
    %125 = vector.broadcast %cst_45 : f32 to vector<2x8x8xf32>
    %126 = arith.select %124, %122, %125 : vector<2x8x8xi1>, vector<2x8x8xf32>
    %cst_46 = arith.constant dense<0xFF800000> : vector<2x8xf32>
    %127 = vector.multi_reduction <maximumf>, %126, %cst_46 [2] : vector<2x8x8xf32> to vector<2x8xf32>
    %128 = vector.shape_cast %127 : vector<2x8xf32> to vector<2x8x1xf32>
    %129 = vector.broadcast %128 : vector<2x8x1xf32> to vector<2x8x8xf32>
    %130 = arith.subf %126, %129 : vector<2x8x8xf32>
    %131 = math.exp %130 : vector<2x8x8xf32>
    %cst_47 = arith.constant dense<0.000000e+00> : vector<2x8xf32>
    %132 = vector.multi_reduction <add>, %131, %cst_47 [2] : vector<2x8x8xf32> to vector<2x8xf32>
    %133 = vector.shape_cast %132 : vector<2x8xf32> to vector<2x8x1xf32>
    %134 = tpu.reciprocal %133 {approx = true} : vector<2x8x1xf32> -> vector<2x8x1xf32>
    %135 = vector.broadcast %134 : vector<2x8x1xf32> to vector<2x8x8xf32>
    %136 = arith.mulf %131, %135 : vector<2x8x8xf32>
    %137 = arith.addf %115, %136 : vector<2x8x8xf32>
    %138 = arith.truncf %136 : vector<2x8x8xf32> to vector<2x8x8xbf16>
    %139 = vector.extract_strided_slice %49 {offsets = [0, 0, 96], sizes = [2, 8, 32], strides = [1, 1, 1]} : vector<2x8x128xbf16> to vector<2x8x32xbf16>
    "tpu.trace_start"() <{level = 10 : i32, message = "blm,bmd->bld"}> : () -> ()
    %cst_48 = arith.constant dense<0.000000e+00> : vector<2x8x32xf32>
    %140 = tpu.matmul %138, %139, %cst_48 {dimension_numbers = #tpu.dot_dimension_numbers<[2], [1], [1], [2], [0, 0, 0, 1, 1, 2], [0], [0]>} : vector<2x8x8xbf16>, vector<2x8x32xbf16>, vector<2x8x32xf32> -> vector<2x8x32xf32>
    "tpu.trace_stop"() : () -> ()
    %c0_49 = arith.constant 0 : index
    %c0_50 = arith.constant 0 : index
    %c96 = arith.constant 96 : index
    %141 = vector.load %arg17[%c0_49, %c0_50, %c96] : memref<2x8x128xf32, #tpu.memory_space<vmem>>, vector<2x8x32xf32>
    tpu.vector_store %arg17[%c0_49, %c0_50, %c96], %140 {strides = array<i32>} : memref<2x8x128xf32, #tpu.memory_space<vmem>>, vector<2x8x32xf32>,
    %cst_51 = arith.constant 2.500000e-01 : f32
    %142 = vector.broadcast %cst_51 : f32 to vector<2x8x8xf32>
    %143 = arith.mulf %137, %142 : vector<2x8x8xf32>
    %c0_52 = arith.constant 0 : index
    %c0_53 = arith.constant 0 : index
    %c0_54 = arith.constant 0 : index
    %c0_55 = arith.constant 0 : index
    %144 = vector.load %arg16[%c0_52, %c0_53, %c0_54, %c0_55] : memref<1x2x8x8xf32, #tpu.memory_space<vmem>>, vector<1x2x8x8xf32>
    %145 = vector.shape_cast %144 : vector<1x2x8x8xf32> to vector<2x8x8xf32>
    %146 = vector.shape_cast %143 : vector<2x8x8xf32> to vector<1x2x8x8xf32>
    tpu.vector_store %arg16[%c0_52, %c0_53, %c0_54, %c0_55], %146 {strides = array<i32>} : memref<1x2x8x8xf32, #tpu.memory_space<vmem>>, vector<1x2x8x8xf32>,
    %c0_56 = arith.constant 0 : index
    %c0_57 = arith.constant 0 : index
    %c0_58 = arith.constant 0 : index
    %147 = vector.load %arg17[%c0_56, %c0_57, %c0_58] : memref<2x8x128xf32, #tpu.memory_space<vmem>>, vector<2x8x128xf32>
    %148 = vector.shape_cast %147 : vector<2x8x128xf32> to vector<16x128xf32>
    %149 = arith.truncf %148 : vector<16x128xf32> to vector<16x128xbf16>
    %c0_59 = arith.constant 0 : index
    %c0_60 = arith.constant 0 : index
    %c0_61 = arith.constant 0 : index
    %150 = vector.load %arg7[%c0_59, %c0_60, %c0_61] : memref<1x128x128xbf16, #tpu.memory_space<vmem>>, vector<1x128x128xbf16>
    %151 = vector.shape_cast %150 : vector<1x128x128xbf16> to vector<128x128xbf16>
    %cst_62 = arith.constant dense<0.000000e+00> : vector<16x128xf32>
    %152 = tpu.matmul %149, %151, %cst_62 {dimension_numbers = #tpu.dot_dimension_numbers<[1], [0], [0], [1], [0, 0, 1, 1], [], []>} : vector<16x128xbf16>, vector<128x128xbf16>, vector<16x128xf32> -> vector<16x128xf32>
    %c0_63 = arith.constant 0 : index
    %c0_64 = arith.constant 0 : index
    %c0_65 = arith.constant 0 : index
    %153 = vector.load %arg8[%c0_63, %c0_64, %c0_65] : memref<1x1x128xf32, #tpu.memory_space<vmem>>, vector<1x1x128xf32>
    %154 = vector.shape_cast %153 : vector<1x1x128xf32> to vector<1x128xf32>
    %155 = vector.broadcast %154 : vector<1x128xf32> to vector<16x128xf32>
    %156 = arith.addf %152, %155 : vector<16x128xf32>
    %157 = arith.addf %4, %156 : vector<16x128xf32>
    %c0_66 = arith.constant 0 : index
    %c0_67 = arith.constant 0 : index
    %c0_68 = arith.constant 0 : index
    %158 = vector.load %arg9[%c0_66, %c0_67, %c0_68] : memref<1x1x128xf32, #tpu.memory_space<vmem>>, vector<1x1x128xf32>
    %159 = vector.shape_cast %158 : vector<1x1x128xf32> to vector<1x128xf32>
    %c0_69 = arith.constant 0 : index
    %c0_70 = arith.constant 0 : index
    %c0_71 = arith.constant 0 : index
    %160 = vector.load %arg10[%c0_69, %c0_70, %c0_71] : memref<1x1x128xf32, #tpu.memory_space<vmem>>, vector<1x1x128xf32>
    %161 = vector.shape_cast %160 : vector<1x1x128xf32> to vector<1x128xf32>
    %cst_72 = arith.constant dense<0.000000e+00> : vector<16xf32>
    %162 = vector.multi_reduction <add>, %157, %cst_72 [1] : vector<16x128xf32> to vector<16xf32>
    %163 = vector.shape_cast %162 : vector<16xf32> to vector<16x1xf32>
    %cst_73 = arith.constant 1.280000e+02 : f32
    %164 = vector.broadcast %cst_73 : f32 to vector<16x1xf32>
    %165 = arith.divf %163, %164 : vector<16x1xf32>
    %166 = vector.broadcast %165 : vector<16x1xf32> to vector<16x128xf32>
    %167 = arith.subf %157, %166 : vector<16x128xf32>
    %168 = arith.mulf %167, %167 : vector<16x128xf32>
    %cst_74 = arith.constant dense<0.000000e+00> : vector<16xf32>
    %169 = vector.multi_reduction <add>, %168, %cst_74 [1] : vector<16x128xf32> to vector<16xf32>
    %170 = vector.shape_cast %169 : vector<16xf32> to vector<16x1xf32>
    %cst_75 = arith.constant 1.280000e+02 : f32
    %171 = vector.broadcast %cst_75 : f32 to vector<16x1xf32>
    %172 = arith.divf %170, %171 : vector<16x1xf32>
    %173 = vector.broadcast %165 : vector<16x1xf32> to vector<16x128xf32>
    %174 = arith.subf %157, %173 : vector<16x128xf32>
    %cst_76 = arith.constant 9.99999974E-6 : f32
    %175 = vector.broadcast %cst_76 : f32 to vector<16x1xf32>
    %176 = arith.addf %172, %175 : vector<16x1xf32>
    %177 = math.rsqrt %176 : vector<16x1xf32>
    %178 = vector.broadcast %177 : vector<16x1xf32> to vector<16x128xf32>
    %179 = arith.mulf %174, %178 : vector<16x128xf32>
    %180 = vector.broadcast %159 : vector<1x128xf32> to vector<16x128xf32>
    %181 = arith.mulf %179, %180 : vector<16x128xf32>
    %182 = vector.broadcast %161 : vector<1x128xf32> to vector<16x128xf32>
    %183 = arith.addf %181, %182 : vector<16x128xf32>
    %184 = arith.truncf %183 : vector<16x128xf32> to vector<16x128xbf16>
    %c0_77 = arith.constant 0 : index
    %c0_78 = arith.constant 0 : index
    %c0_79 = arith.constant 0 : index
    %185 = vector.load %arg11[%c0_77, %c0_78, %c0_79] : memref<1x128x512xbf16, #tpu.memory_space<vmem>>, vector<1x128x512xbf16>
    %186 = vector.shape_cast %185 : vector<1x128x512xbf16> to vector<128x512xbf16>
    %cst_80 = arith.constant dense<0.000000e+00> : vector<16x512xf32>
    %187 = tpu.matmul %184, %186, %cst_80 {dimension_numbers = #tpu.dot_dimension_numbers<[1], [0], [0], [1], [0, 0, 1, 1], [], []>} : vector<16x128xbf16>, vector<128x512xbf16>, vector<16x512xf32> -> vector<16x512xf32>
    %c0_81 = arith.constant 0 : index
    %c0_82 = arith.constant 0 : index
    %c0_83 = arith.constant 0 : index
    %188 = vector.load %arg12[%c0_81, %c0_82, %c0_83] : memref<1x1x512xf32, #tpu.memory_space<vmem>>, vector<1x1x512xf32>
    %189 = vector.shape_cast %188 : vector<1x1x512xf32> to vector<1x512xf32>
    %190 = vector.broadcast %189 : vector<1x512xf32> to vector<16x512xf32>
    %191 = arith.addf %187, %190 : vector<16x512xf32>
    %cst_84 = arith.constant 1.702000e+00 : f32
    %192 = vector.broadcast %cst_84 : f32 to vector<16x512xf32>
    %193 = arith.mulf %192, %191 : vector<16x512xf32>
    %194 = arith.negf %193 : vector<16x512xf32>
    %195 = math.exp %194 : vector<16x512xf32>
    %cst_85 = arith.constant 1.000000e+00 : f32
    %196 = vector.broadcast %cst_85 : f32 to vector<16x512xf32>
    %197 = arith.addf %196, %195 : vector<16x512xf32>
    %198 = arith.divf %196, %197 : vector<16x512xf32>
    %199 = arith.mulf %191, %198 : vector<16x512xf32>
    %200 = arith.truncf %199 : vector<16x512xf32> to vector<16x512xbf16>
    %c0_86 = arith.constant 0 : index
    %c0_87 = arith.constant 0 : index
    %c0_88 = arith.constant 0 : index
    %201 = vector.load %arg13[%c0_86, %c0_87, %c0_88] : memref<1x512x128xbf16, #tpu.memory_space<vmem>>, vector<1x512x128xbf16>
    %202 = vector.shape_cast %201 : vector<1x512x128xbf16> to vector<512x128xbf16>
    %cst_89 = arith.constant dense<0.000000e+00> : vector<16x128xf32>
    %203 = tpu.matmul %200, %202, %cst_89 {dimension_numbers = #tpu.dot_dimension_numbers<[1], [0], [0], [1], [0, 0, 1, 1], [], []>} : vector<16x512xbf16>, vector<512x128xbf16>, vector<16x128xf32> -> vector<16x128xf32>
    %c0_90 = arith.constant 0 : index
    %c0_91 = arith.constant 0 : index
    %c0_92 = arith.constant 0 : index
    %204 = vector.load %arg14[%c0_90, %c0_91, %c0_92] : memref<1x1x128xf32, #tpu.memory_space<vmem>>, vector<1x1x128xf32>
    %205 = vector.shape_cast %204 : vector<1x1x128xf32> to vector<1x128xf32>
    %206 = vector.broadcast %205 : vector<1x128xf32> to vector<16x128xf32>
    %207 = arith.addf %203, %206 : vector<16x128xf32>
    %208 = arith.addf %157, %207 : vector<16x128xf32>
    %209 = vector.shape_cast %208 : vector<16x128xf32> to vector<2x8x128xf32>
    %c0_93 = arith.constant 0 : index
    %c0_94 = arith.constant 0 : index
    %c0_95 = arith.constant 0 : index
    %210 = vector.load %arg15[%c0_93, %c0_94, %c0_95] : memref<2x8x128xf32, #tpu.memory_space<vmem>>, vector<2x8x128xf32>
    tpu.vector_store %arg15[%c0_93, %c0_94, %c0_95], %209 {strides = array<i32>} : memref<2x8x128xf32, #tpu.memory_space<vmem>>, vector<2x8x128xf32>,
    return
  }
  func.func @transform_0(%arg0: i32, %arg1: i32) -> (i32, i32, i32) {
    %c0_i32 = arith.constant 0 : i32
    %c0_i32_0 = arith.constant 0 : i32
    %c0_i32_1 = arith.constant 0 : i32
    return %arg0, %c0_i32, %c0_i32_0 : i32, i32, i32
  }
  func.func @transform_1(%arg0: i32, %arg1: i32) -> (i32, i32, i32) {
    %c0_i32 = arith.constant 0 : i32
    %c0_i32_0 = arith.constant 0 : i32
    %c0_i32_1 = arith.constant 0 : i32
    return %arg1, %c0_i32, %c0_i32_0 : i32, i32, i32
  }
  func.func @transform_2(%arg0: i32, %arg1: i32) -> (i32, i32, i32) {
    %c0_i32 = arith.constant 0 : i32
    %c0_i32_0 = arith.constant 0 : i32
    %c0_i32_1 = arith.constant 0 : i32
    return %arg1, %c0_i32, %c0_i32_0 : i32, i32, i32
  }
  func.func @transform_3(%arg0: i32, %arg1: i32) -> (i32, i32, i32) {
    %c0_i32 = arith.constant 0 : i32
    %c0_i32_0 = arith.constant 0 : i32
    %c0_i32_1 = arith.constant 0 : i32
    return %arg1, %c0_i32, %c0_i32_0 : i32, i32, i32
  }
  func.func @transform_4(%arg0: i32, %arg1: i32) -> (i32, i32, i32) {
    %c0_i32 = arith.constant 0 : i32
    %c0_i32_0 = arith.constant 0 : i32
    %c0_i32_1 = arith.constant 0 : i32
    return %arg1, %c0_i32, %c0_i32_0 : i32, i32, i32
  }
  func.func @transform_5(%arg0: i32, %arg1: i32) -> (i32, i32, i32) {
    %c0_i32 = arith.constant 0 : i32
    %c0_i32_0 = arith.constant 0 : i32
    %c0_i32_1 = arith.constant 0 : i32
    return %arg1, %c0_i32, %c0_i32_0 : i32, i32, i32
  }
  func.func @transform_6(%arg0: i32, %arg1: i32) -> (i32, i32, i32) {
    %c0_i32 = arith.constant 0 : i32
    %c0_i32_0 = arith.constant 0 : i32
    %c0_i32_1 = arith.constant 0 : i32
    return %arg1, %c0_i32, %c0_i32_0 : i32, i32, i32
  }
  func.func @transform_7(%arg0: i32, %arg1: i32) -> (i32, i32, i32) {
    %c0_i32 = arith.constant 0 : i32
    %c0_i32_0 = arith.constant 0 : i32
    %c0_i32_1 = arith.constant 0 : i32
    return %arg1, %c0_i32, %c0_i32_0 : i32, i32, i32
  }
  func.func @transform_8(%arg0: i32, %arg1: i32) -> (i32, i32, i32) {
    %c0_i32 = arith.constant 0 : i32
    %c0_i32_0 = arith.constant 0 : i32
    %c0_i32_1 = arith.constant 0 : i32
    return %arg1, %c0_i32, %c0_i32_0 : i32, i32, i32
  }
  func.func @transform_9(%arg0: i32, %arg1: i32) -> (i32, i32, i32) {
    %c0_i32 = arith.constant 0 : i32
    %c0_i32_0 = arith.constant 0 : i32
    %c0_i32_1 = arith.constant 0 : i32
    return %arg1, %c0_i32, %c0_i32_0 : i32, i32, i32
  }
  func.func @transform_10(%arg0: i32, %arg1: i32) -> (i32, i32, i32) {
    %c0_i32 = arith.constant 0 : i32
    %c0_i32_0 = arith.constant 0 : i32
    %c0_i32_1 = arith.constant 0 : i32
    return %arg1, %c0_i32, %c0_i32_0 : i32, i32, i32
  }
  func.func @transform_11(%arg0: i32, %arg1: i32) -> (i32, i32, i32) {
    %c0_i32 = arith.constant 0 : i32
    %c0_i32_0 = arith.constant 0 : i32
    %c0_i32_1 = arith.constant 0 : i32
    return %arg1, %c0_i32, %c0_i32_0 : i32, i32, i32
  }
  func.func @transform_12(%arg0: i32, %arg1: i32) -> (i32, i32, i32) {
    %c0_i32 = arith.constant 0 : i32
    %c0_i32_0 = arith.constant 0 : i32
    %c0_i32_1 = arith.constant 0 : i32
    return %arg1, %c0_i32, %c0_i32_0 : i32, i32, i32
  }
  func.func @transform_13(%arg0: i32, %arg1: i32) -> (i32, i32, i32) {
    %c0_i32 = arith.constant 0 : i32
    %c0_i32_0 = arith.constant 0 : i32
    %c0_i32_1 = arith.constant 0 : i32
    return %arg0, %c0_i32, %c0_i32_0 : i32, i32, i32
  }
  func.func @transform_14(%arg0: i32, %arg1: i32) -> (i32, i32, i32, i32) {
    %c0_i32 = arith.constant 0 : i32
    %c0_i32_0 = arith.constant 0 : i32
    %c0_i32_1 = arith.constant 0 : i32
    return %arg1, %arg0, %c0_i32, %c0_i32_0 : i32, i32, i32, i32
  }
}

module attributes {stable_mosaic.version = 11 : i64} {
  func.func @post_kernel(%arg0: i32, %arg1: memref<2x8x128xf32, #tpu.memory_space<vmem>>, %arg2: memref<1x128xf32, #tpu.memory_space<vmem>>, %arg3: memref<1x128xf32, #tpu.memory_space<vmem>>, %arg4: memref<128x64xbf16, #tpu.memory_space<vmem>>, %arg5: memref<2x8x64xf32, #tpu.memory_space<vmem>>) attributes {dimension_semantics = [#tpu.dimension_semantics<parallel>], iteration_bounds = array<i64: 1>, scalar_prefetch = 0 : i64, scratch_operands = 0 : i64, tpu.core_type = #tpu.core_type<tc>, window_params = [{transform_indices = @transform_0, window_bounds = array<i64: 2, 8, 128>}, {pipeline_mode = #tpu.pipeline_mode<synchronous>, transform_indices = @transform_1, window_bounds = array<i64: 1, 128>}, {pipeline_mode = #tpu.pipeline_mode<synchronous>, transform_indices = @transform_2, window_bounds = array<i64: 1, 128>}, {pipeline_mode = #tpu.pipeline_mode<synchronous>, transform_indices = @transform_3, window_bounds = array<i64: 128, 64>}, {transform_indices = @transform_4, window_bounds = array<i64: 2, 8, 64>}]} {
    %c0 = arith.constant 0 : index
    %c0_0 = arith.constant 0 : index
    %c0_1 = arith.constant 0 : index
    %0 = vector.load %arg1[%c0, %c0_0, %c0_1] : memref<2x8x128xf32, #tpu.memory_space<vmem>>, vector<2x8x128xf32>
    %1 = vector.shape_cast %0 : vector<2x8x128xf32> to vector<16x128xf32>
    %c0_2 = arith.constant 0 : index
    %c0_3 = arith.constant 0 : index
    %2 = vector.load %arg2[%c0_2, %c0_3] : memref<1x128xf32, #tpu.memory_space<vmem>>, vector<1x128xf32>
    %c0_4 = arith.constant 0 : index
    %c0_5 = arith.constant 0 : index
    %3 = vector.load %arg3[%c0_4, %c0_5] : memref<1x128xf32, #tpu.memory_space<vmem>>, vector<1x128xf32>
    %cst = arith.constant dense<0.000000e+00> : vector<16xf32>
    %4 = vector.multi_reduction <add>, %1, %cst [1] : vector<16x128xf32> to vector<16xf32>
    %5 = vector.shape_cast %4 : vector<16xf32> to vector<16x1xf32>
    %cst_6 = arith.constant 1.280000e+02 : f32
    %6 = vector.broadcast %cst_6 : f32 to vector<16x1xf32>
    %7 = arith.divf %5, %6 : vector<16x1xf32>
    %8 = vector.broadcast %7 : vector<16x1xf32> to vector<16x128xf32>
    %9 = arith.subf %1, %8 : vector<16x128xf32>
    %10 = arith.mulf %9, %9 : vector<16x128xf32>
    %cst_7 = arith.constant dense<0.000000e+00> : vector<16xf32>
    %11 = vector.multi_reduction <add>, %10, %cst_7 [1] : vector<16x128xf32> to vector<16xf32>
    %12 = vector.shape_cast %11 : vector<16xf32> to vector<16x1xf32>
    %cst_8 = arith.constant 1.280000e+02 : f32
    %13 = vector.broadcast %cst_8 : f32 to vector<16x1xf32>
    %14 = arith.divf %12, %13 : vector<16x1xf32>
    %15 = vector.broadcast %7 : vector<16x1xf32> to vector<16x128xf32>
    %16 = arith.subf %1, %15 : vector<16x128xf32>
    %cst_9 = arith.constant 9.99999974E-6 : f32
    %17 = vector.broadcast %cst_9 : f32 to vector<16x1xf32>
    %18 = arith.addf %14, %17 : vector<16x1xf32>
    %19 = math.rsqrt %18 : vector<16x1xf32>
    %20 = vector.broadcast %19 : vector<16x1xf32> to vector<16x128xf32>
    %21 = arith.mulf %16, %20 : vector<16x128xf32>
    %22 = vector.broadcast %2 : vector<1x128xf32> to vector<16x128xf32>
    %23 = arith.mulf %21, %22 : vector<16x128xf32>
    %24 = vector.broadcast %3 : vector<1x128xf32> to vector<16x128xf32>
    %25 = arith.addf %23, %24 : vector<16x128xf32>
    %26 = arith.truncf %25 : vector<16x128xf32> to vector<16x128xbf16>
    %c0_10 = arith.constant 0 : index
    %c0_11 = arith.constant 0 : index
    %27 = vector.load %arg4[%c0_10, %c0_11] : memref<128x64xbf16, #tpu.memory_space<vmem>>, vector<128x64xbf16>
    %cst_12 = arith.constant dense<0.000000e+00> : vector<16x64xf32>
    %28 = tpu.matmul %26, %27, %cst_12 {dimension_numbers = #tpu.dot_dimension_numbers<[1], [0], [0], [1], [0, 0, 1, 1], [], []>} : vector<16x128xbf16>, vector<128x64xbf16>, vector<16x64xf32> -> vector<16x64xf32>
    %29 = vector.shape_cast %28 : vector<16x64xf32> to vector<2x8x64xf32>
    %c0_13 = arith.constant 0 : index
    %c0_14 = arith.constant 0 : index
    %c0_15 = arith.constant 0 : index
    %30 = vector.load %arg5[%c0_13, %c0_14, %c0_15] : memref<2x8x64xf32, #tpu.memory_space<vmem>>, vector<2x8x64xf32>
    tpu.vector_store %arg5[%c0_13, %c0_14, %c0_15], %29 {strides = array<i32>} : memref<2x8x64xf32, #tpu.memory_space<vmem>>, vector<2x8x64xf32>,
    return
  }
  func.func @transform_0(%arg0: i32) -> (i32, i32, i32) {
    %c0_i32 = arith.constant 0 : i32
    %c0_i32_0 = arith.constant 0 : i32
    %c0_i32_1 = arith.constant 0 : i32
    return %arg0, %c0_i32, %c0_i32_0 : i32, i32, i32
  }
  func.func @transform_1(%arg0: i32) -> (i32, i32) {
    %c0_i32 = arith.constant 0 : i32
    %c0_i32_0 = arith.constant 0 : i32
    %c0_i32_1 = arith.constant 0 : i32
    return %c0_i32, %c0_i32_0 : i32, i32
  }
  func.func @transform_2(%arg0: i32) -> (i32, i32) {
    %c0_i32 = arith.constant 0 : i32
    %c0_i32_0 = arith.constant 0 : i32
    %c0_i32_1 = arith.constant 0 : i32
    return %c0_i32, %c0_i32_0 : i32, i32
  }
  func.func @transform_3(%arg0: i32) -> (i32, i32) {
    %c0_i32 = arith.constant 0 : i32
    %c0_i32_0 = arith.constant 0 : i32
    %c0_i32_1 = arith.constant 0 : i32
    return %c0_i32, %c0_i32_0 : i32, i32
  }
  func.func @transform_4(%arg0: i32) -> (i32, i32, i32) {
    %c0_i32 = arith.constant 0 : i32
    %c0_i32_0 = arith.constant 0 : i32
    %c0_i32_1 = arith.constant 0 : i32
    return %arg0, %c0_i32, %c0_i32_0 : i32, i32, i32
  }
}

</mosaic_0001>

<llo_original>
// kernel: visual_transformer_forward.3
$region0: #{visual_transformer_forward.3}
  #allocation0 [shape = 'u32[]', space=smem, size = 0x4, offset = 0x4, fixed_abs, tag = 'smem constant byte address 0x4 - core index']
  #allocation1 [shape = 'u32[144,128]{1,0:T(1,128)}', space=vmem, size = 0x12000, scoped, tag = 'internal scratch']
  %s0 = inlined_call_operand.vmem [shape: bf16[2,8,192], index: 0, kind: input, shape index: {}]
  %s1 = inlined_call_operand.vmem [shape: bf16[192,128], index: 1, kind: input, shape index: {}]
  %s2 = inlined_call_operand.vmem [shape: f32[1,1,128], index: 2, kind: input, shape index: {}]
  %s3 = inlined_call_operand.vmem [shape: f32[8,128], index: 3, kind: input, shape index: {}]
  %s4 = inlined_call_operand.vmem [shape: f32[1,128], index: 4, kind: input, shape index: {}]
  %s5 = inlined_call_operand.vmem [shape: f32[1,128], index: 5, kind: input, shape index: {}]
  %s6 = inlined_call_operand.vmem [shape: f32[2,8,128], index: 6, kind: output, shape index: {}]
  %s7 = sld [smem:[#allocation0]]
  $region34: #{visual_transformer_forward.3} parent=0
    _
  %s9 = ssub.s32 1, %s7
  %s10 = scalar_select 0, %s9, %s7
  // Predicated region
  $region2: #{visual_transformer_forward.3} parent=0 // pred_check
    _
  $region3: #{visual_transformer_forward.3} parent=0 // pred_check_branch
    %12 = sbr.rel (0) target = $region5
  $region4: #{visual_transformer_forward.3} parent=0 // pred_region
    _
  $region5: #{visual_transformer_forward.3} parent=0 // pred_fallthru
    _
  // Predicated region
  $region6: #{visual_transformer_forward.3} parent=0 // pred_check
    _
  $region7: #{visual_transformer_forward.3} parent=0 // pred_check_branch
    %14 = sbr.rel (0) target = $region9
  $region8: #{visual_transformer_forward.3} parent=0 // pred_region
    _
  $region9: #{visual_transformer_forward.3} parent=0 // pred_fallthru
    _
  // Predicated region
  $region10: #{visual_transformer_forward.3} parent=0 // pred_check
    _
  $region11: #{visual_transformer_forward.3} parent=0 // pred_check_branch
    %16 = sbr.rel (0) target = $region13
  $region12: #{visual_transformer_forward.3} parent=0 // pred_region
    _
  $region13: #{visual_transformer_forward.3} parent=0 // pred_fallthru
    _
  // Predicated region
  $region14: #{visual_transformer_forward.3} parent=0 // pred_check
    _
  $region15: #{visual_transformer_forward.3} parent=0 // pred_check_branch
    %18 = sbr.rel (0) target = $region17
  $region16: #{visual_transformer_forward.3} parent=0 // pred_region
    _
  $region17: #{visual_transformer_forward.3} parent=0 // pred_fallthru
    _
  // Predicated region
  $region18: #{visual_transformer_forward.3} parent=0 // pred_check
    _
  $region19: #{visual_transformer_forward.3} parent=0 // pred_check_branch
    %20 = sbr.rel (0) target = $region21
  $region20: #{visual_transformer_forward.3} parent=0 // pred_region
    _
  $region21: #{visual_transformer_forward.3} parent=0 // pred_fallthru
    _
  // Predicated region
  $region22: #{visual_transformer_forward.3} parent=0 // pred_check
    _
  $region23: #{visual_transformer_forward.3} parent=0 // pred_check_branch
    %22 = sbr.rel (0) target = $region25
  $region24: #{visual_transformer_forward.3} parent=0 // pred_region
    _
  $region25: #{visual_transformer_forward.3} parent=0 // pred_fallthru
    _
  %v24 = vld [vmem:[%s0] sm:$0xff]
  %v25 = vld [vmem:[%s0 + $0x8] sm:$0xff]
  %v26 = vld [vmem:[%s1] sm:$0xf]
  %v27 = vld [vmem:[%s1 + $0x4] sm:$0xf]
  %v28 = vld [vmem:[%s1 + $0x8] sm:$0xf]
  %v29 = vld [vmem:[%s1 + $0xc] sm:$0xf]
  %v30 = vld [vmem:[%s1 + $0x10] sm:$0xf]
  %v31 = vld [vmem:[%s1 + $0x14] sm:$0xf]
  %v32 = vld [vmem:[%s1 + $0x18] sm:$0xf]
  %v33 = vld [vmem:[%s1 + $0x1c] sm:$0xf]
  %v34 = vld [vmem:[%s1 + $0x20] sm:$0xf]
  %v35 = vld [vmem:[%s1 + $0x24] sm:$0xf]
  %v36 = vld [vmem:[%s1 + $0x28] sm:$0xf]
  %v37 = vld [vmem:[%s1 + $0x2c] sm:$0xf]
  %v38 = vld [vmem:[%s1 + $0x30] sm:$0xf]
  %v39 = vld [vmem:[%s1 + $0x34] sm:$0xf]
  %v40 = vld [vmem:[%s1 + $0x38] sm:$0xf]
  %v41 = vld [vmem:[%s1 + $0x3c] sm:$0xf]
  %v42 = vld [vmem:[%s1 + $0x40] sm:$0xf]
  %v43 = vld [vmem:[%s1 + $0x44] sm:$0xf]
  %v44 = vld [vmem:[%s1 + $0x48] sm:$0xf]
  %v45 = vld [vmem:[%s1 + $0x4c] sm:$0xf]
  %v46 = vld [vmem:[%s1 + $0x50] sm:$0xf]
  %v47 = vld [vmem:[%s1 + $0x54] sm:$0xf]
  %v48 = vld [vmem:[%s1 + $0x58] sm:$0xf]
  %v49 = vld [vmem:[%s1 + $0x5c] sm:$0xf]
  %v52 = vunpack.c.l.b16 %v24
  %v53 = vunpack.c.h.b16 %v24
  %v54 = vunpack.c.l.b16 %v25
  %v55 = vunpack.c.h.b16 %v25
  %v56 = vpack.c.b16 %v54, %v52
  %v57 = vpack.c.b16 %v55, %v53
  %v83 = vunpack.c.l.b16 %v26
  %v84 = vunpack.c.l.b16 %v27
  %v85 = vunpack.c.l.b16 %v28
  %v86 = vunpack.c.l.b16 %v29
  %v87 = vunpack.c.l.b16 %v30
  %v88 = vunpack.c.l.b16 %v31
  %v89 = vunpack.c.l.b16 %v32
  %v90 = vunpack.c.l.b16 %v33
  %v91 = vunpack.c.l.b16 %v34
  %v92 = vunpack.c.l.b16 %v35
  %v93 = vunpack.c.l.b16 %v36
  %v94 = vunpack.c.l.b16 %v37
  %v95 = vunpack.c.l.b16 %v38
  %v96 = vunpack.c.l.b16 %v39
  %v97 = vunpack.c.l.b16 %v40
  %v98 = vunpack.c.l.b16 %v41
  %v99 = vunpack.c.l.b16 %v42
  %v100 = vunpack.c.l.b16 %v43
  %v101 = vunpack.c.l.b16 %v44
  %v102 = vunpack.c.l.b16 %v45
  %v103 = vunpack.c.l.b16 %v46
  %v104 = vunpack.c.l.b16 %v47
  %v105 = vunpack.c.l.b16 %v48
  %v106 = vunpack.c.l.b16 %v49
  %v107 = vpack.c.b16 %v84, %v83
  %v108 = vpack.c.b16 %v86, %v85
  %v109 = vpack.c.b16 %v88, %v87
  %v110 = vpack.c.b16 %v90, %v89
  %v111 = vpack.c.b16 %v92, %v91
  %v112 = vpack.c.b16 %v94, %v93
  %v113 = vpack.c.b16 %v96, %v95
  %v114 = vpack.c.b16 %v98, %v97
  %v115 = vpack.c.b16 %v100, %v99
  %v116 = vpack.c.b16 %v102, %v101
  %v117 = vpack.c.b16 %v104, %v103
  %v118 = vpack.c.b16 %v106, %v105
  %vm131 = vcmask 523264
  %v133 = vsel %vm131, %v57, 0
  %135 = vmatprep.subr.bf16.mxu0 0
  %136 = vmatpush1.bf16.msra.mxu0 %v107
  %137 = vmatprep.subr.bf16.mxu0 0
  %138 = vmatpush1.bf16.msra.mxu0 %v108
  %139 = vmatprep.subr.bf16.mxu0 0
  %140 = vmatpush1.bf16.msra.mxu0 %v109
  %141 = vmatprep.subr.bf16.mxu0 0
  %142 = vmatpush1.bf16.msra.mxu0 %v110
  %143 = vmatprep.subr.bf16.mxu0 0
  %144 = vmatpush1.bf16.msra.mxu0 %v111
  %145 = vmatprep.subr.bf16.mxu0 0
  %146 = vmatpush1.bf16.msra.mxu0 %v112
  %147 = vmatprep.subr.bf16.mxu0 0
  %148 = vmatpush1.bf16.msra.mxu0 %v113
  %149 = vmatprep.subr.bf16.mxu0 0
  %150 = vmatpush1.bf16.msra.mxu0 %v114
  %151 = vmatprep.subr.bf16.mxu0 0
  %152 = vmatpush1.bf16.msra.mxu0 %v115
  %153 = vmatprep.subr.bf16.mxu0 0
  %154 = vmatpush1.bf16.msra.mxu0 %v116
  %155 = vmatprep.subr.bf16.mxu0 0
  %156 = vmatpush1.bf16.msra.mxu0 %v117
  %157 = vmatprep.subr.bf16.mxu0 0
  %158 = vmatpush1.bf16.msra.mxu0 %v118
  %159 = vmatprep.subr.bf16.mxu0 0
  %160 = vmatpush1.bf16.msra.mxu0 0
  %161 = vmatprep.subr.bf16.mxu0 0
  %162 = vmatpush1.bf16.msra.mxu0 0
  %163 = vmatprep.subr.bf16.mxu0 0
  %164 = vmatpush1.bf16.msra.mxu0 0
  %165 = vmatprep.subr.bf16.mxu0 0
  %166 = vmatpush1.bf16.msra.mxu0 0
  %167 = vmatprep.mubr.bf16.mxu0 %v133
  %168 = vmatmul.mubr.bf16.gmra.mrb[0].mxu0 %v56
  %v169 = vpop.f32.mrb[0].mxu0
  %v170 = vadd.f32 0.0, %v169
  %v171 = vpop.f32.mrb[0].mxu0
  %v172 = vpop.f32.mrb[0].mxu0
  %v173 = vadd.f32 0.0, %v172
  %v174 = vpop.f32.mrb[0].mxu0
  %175 = vdwg.mxu0
  %v176 = vlaneseq
  %v177 = vshrl.u32 %v176, 7
  %vm178 = vcmp.eq.s32.totalorder %v177, 0
  %v179 = vld [vmem:[%s2] sm:$0x1]
  %v180 = vsel %vm178, 1, 0
  %vm181 = vcmp.eq.s32.totalorder %v180, 1
  %v183 = vlaneseq
  %v184 = vshrl.u32 %v183, 7
  %v185 = vsub.s32 0, %v184
  %v186 = vrot.slane %v179, %v185
  %v188 = vsel %vm181, %v186, 0.0
  %v189 = vadd.f32 %v170, %v188
  %v190 = vadd.f32 %v173, %v188
  %v191 = vld [vmem:[%s3] sm:$0xff]
  %v192 = vadd.f32 %v189, %v191
  %v193 = vadd.f32 %v190, %v191
  %v194 = vld [vmem:[%s4] sm:$0x1]
  %v195 = vld [vmem:[%s5] sm:$0x1]
  %196 = vadd.xlane.f32.xlu0 %v192
  %v197 = vpop.xlane.xlu0 %196
  %198 = vadd.xlane.f32.xlu0 %v193
  %v199 = vpop.xlane.xlu0 %198
  %v200 = vrcp.pop 128.0
  %v201 = vmul.f32 %v197, %v200
  %v202 = vmul.f32 %v199, %v200
  %v203 = vsub.f32 %v192, %v201
  %v204 = vsub.f32 %v193, %v202
  %v205 = vmul.f32 %v203, %v203
  %v206 = vmul.f32 %v204, %v204
  %207 = vadd.xlane.f32.xlu0 %v205
  %v208 = vpop.xlane.xlu0 %207
  %209 = vadd.xlane.f32.xlu0 %v206
  %v210 = vpop.xlane.xlu0 %209
  %v211 = vmul.f32 %v208, %v200
  %v212 = vmul.f32 %v210, %v200
  %v213 = vadd.f32 %v211, 1e-05
  %v214 = vadd.f32 %v212, 1e-05
  %v215 = vrsqrt.pop %v213
  %v216 = vrsqrt.pop %v214
  %v217 = vmul.f32 %v203, %v215
  %v218 = vmul.f32 %v204, %v216
  %v220 = vlaneseq
  %v221 = vshrl.u32 %v220, 7
  %v222 = vsub.s32 0, %v221
  %v223 = vrot.slane %v194, %v222
  %v225 = vmul.f32 %v217, %v223
  %v226 = vmul.f32 %v218, %v223
  %v228 = vlaneseq
  %v229 = vshrl.u32 %v228, 7
  %v230 = vsub.s32 0, %v229
  %v231 = vrot.slane %v195, %v230
  %v233 = vadd.f32 %v225, %v231
  %v234 = vadd.f32 %v226, %v231
  %235 = vst [vmem:[%s6] sm:$0xff] %v233
  %236 = vst [vmem:[%s6 + $0x8] sm:$0xff] %v234
  // Predicated region
  $region26: #{visual_transformer_forward.3} parent=0 // pred_check
    _
  $region27: #{visual_transformer_forward.3} parent=0 // pred_check_branch
    %238 = sbr.rel (0) target = $region29
  $region28: #{visual_transformer_forward.3} parent=0 // pred_region
    _
  $region29: #{visual_transformer_forward.3} parent=0 // pred_fallthru
    _
  // Predicated region
  $region30: #{visual_transformer_forward.3} parent=0 // pred_check
    _
  $region31: #{visual_transformer_forward.3} parent=0 // pred_check_branch
    %240 = sbr.rel (0) target = $region33
  $region32: #{visual_transformer_forward.3} parent=0 // pred_region
    _
  $region33: #{visual_transformer_forward.3} parent=0 // pred_fallthru
    _

// kernel: visual_transformer_forward.5
$region0: #{visual_transformer_forward.5}
  #allocation0 [shape = 'u32[]', space=smem, size = 0x4, offset = 0x4, fixed_abs, tag = 'smem constant byte address 0x4 - core index']
  #allocation1 [shape = 'u32[144,128]{1,0:T(1,128)}', space=vmem, size = 0x12000, scoped, tag = 'internal scratch']
  %s0 = inlined_call_operand.vmem [shape: f32[2,8,128], index: 0, kind: input, shape index: {}]
  %s1 = inlined_call_operand.vmem [shape: f32[1,128], index: 1, kind: input, shape index: {}]
  %s2 = inlined_call_operand.vmem [shape: f32[1,128], index: 2, kind: input, shape index: {}]
  %s3 = inlined_call_operand.vmem [shape: bf16[128,64], index: 3, kind: input, shape index: {}]
  %s4 = inlined_call_operand.vmem [shape: f32[2,8,64], index: 4, kind: output, shape index: {}]
  %s5 = sld [smem:[#allocation0]]
  $region26: #{visual_transformer_forward.5} parent=0
    _
  %s7 = ssub.s32 1, %s5
  %s8 = scalar_select 0, %s7, %s5
  // Predicated region
  $region2: #{visual_transformer_forward.5} parent=0 // pred_check
    _
  $region3: #{visual_transformer_forward.5} parent=0 // pred_check_branch
    %10 = sbr.rel (0) target = $region5
  $region4: #{visual_transformer_forward.5} parent=0 // pred_region
    _
  $region5: #{visual_transformer_forward.5} parent=0 // pred_fallthru
    _
  // Predicated region
  $region6: #{visual_transformer_forward.5} parent=0 // pred_check
    _
  $region7: #{visual_transformer_forward.5} parent=0 // pred_check_branch
    %12 = sbr.rel (0) target = $region9
  $region8: #{visual_transformer_forward.5} parent=0 // pred_region
    _
  $region9: #{visual_transformer_forward.5} parent=0 // pred_fallthru
    _
  // Predicated region
  $region10: #{visual_transformer_forward.5} parent=0 // pred_check
    _
  $region11: #{visual_transformer_forward.5} parent=0 // pred_check_branch
    %14 = sbr.rel (0) target = $region13
  $region12: #{visual_transformer_forward.5} parent=0 // pred_region
    _
  $region13: #{visual_transformer_forward.5} parent=0 // pred_fallthru
    _
  // Predicated region
  $region14: #{visual_transformer_forward.5} parent=0 // pred_check
    _
  $region15: #{visual_transformer_forward.5} parent=0 // pred_check_branch
    %16 = sbr.rel (0) target = $region17
  $region16: #{visual_transformer_forward.5} parent=0 // pred_region
    _
  $region17: #{visual_transformer_forward.5} parent=0 // pred_fallthru
    _
  %v18 = vld [vmem:[%s0] sm:$0xff]
  %v19 = vld [vmem:[%s0 + $0x8] sm:$0xff]
  %v20 = vld [vmem:[%s1] sm:$0x1]
  %v21 = vld [vmem:[%s2] sm:$0x1]
  %22 = vadd.xlane.f32.xlu0 %v18
  %v23 = vpop.xlane.xlu0 %22
  %24 = vadd.xlane.f32.xlu0 %v19
  %v25 = vpop.xlane.xlu0 %24
  %v26 = vrcp.pop 128.0
  %v27 = vmul.f32 %v23, %v26
  %v28 = vmul.f32 %v25, %v26
  %v29 = vsub.f32 %v18, %v27
  %v30 = vsub.f32 %v19, %v28
  %v31 = vmul.f32 %v29, %v29
  %v32 = vmul.f32 %v30, %v30
  %33 = vadd.xlane.f32.xlu0 %v31
  %v34 = vpop.xlane.xlu0 %33
  %35 = vadd.xlane.f32.xlu0 %v32
  %v36 = vpop.xlane.xlu0 %35
  %v37 = vmul.f32 %v34, %v26
  %v38 = vmul.f32 %v36, %v26
  %v39 = vadd.f32 %v37, 1e-05
  %v40 = vadd.f32 %v38, 1e-05
  %v41 = vrsqrt.pop %v39
  %v42 = vrsqrt.pop %v40
  %v43 = vmul.f32 %v29, %v41
  %v44 = vmul.f32 %v30, %v42
  %v46 = vlaneseq
  %v47 = vshrl.u32 %v46, 7
  %v48 = vsub.s32 0, %v47
  %v49 = vrot.slane %v20, %v48
  %v51 = vmul.f32 %v43, %v49
  %v52 = vmul.f32 %v44, %v49
  %v54 = vlaneseq
  %v55 = vshrl.u32 %v54, 7
  %v56 = vsub.s32 0, %v55
  %v57 = vrot.slane %v21, %v56
  %v59 = vadd.f32 %v51, %v57
  %v60 = vadd.f32 %v52, %v57
  %v61 = vpack.c.bf16 %v60, %v59
  %v62 = vld [vmem:[%s3] sm:$0xf]
  %v63 = vld [vmem:[%s3 + $0x4] sm:$0xf]
  %v64 = vld [vmem:[%s3 + $0x8] sm:$0xf]
  %v65 = vld [vmem:[%s3 + $0xc] sm:$0xf]
  %v66 = vld [vmem:[%s3 + $0x10] sm:$0xf]
  %v67 = vld [vmem:[%s3 + $0x14] sm:$0xf]
  %v68 = vld [vmem:[%s3 + $0x18] sm:$0xf]
  %v69 = vld [vmem:[%s3 + $0x1c] sm:$0xf]
  %v70 = vld [vmem:[%s3 + $0x20] sm:$0xf]
  %v71 = vld [vmem:[%s3 + $0x24] sm:$0xf]
  %v72 = vld [vmem:[%s3 + $0x28] sm:$0xf]
  %v73 = vld [vmem:[%s3 + $0x2c] sm:$0xf]
  %v74 = vld [vmem:[%s3 + $0x30] sm:$0xf]
  %v75 = vld [vmem:[%s3 + $0x34] sm:$0xf]
  %v76 = vld [vmem:[%s3 + $0x38] sm:$0xf]
  %v77 = vld [vmem:[%s3 + $0x3c] sm:$0xf]
  %v94 = vunpack.c.l.b16 %v62
  %v95 = vunpack.c.l.b16 %v63
  %v96 = vunpack.c.l.b16 %v64
  %v97 = vunpack.c.l.b16 %v65
  %v98 = vunpack.c.l.b16 %v66
  %v99 = vunpack.c.l.b16 %v67
  %v100 = vunpack.c.l.b16 %v68
  %v101 = vunpack.c.l.b16 %v69
  %v102 = vunpack.c.l.b16 %v70
  %v103 = vunpack.c.l.b16 %v71
  %v104 = vunpack.c.l.b16 %v72
  %v105 = vunpack.c.l.b16 %v73
  %v106 = vunpack.c.l.b16 %v74
  %v107 = vunpack.c.l.b16 %v75
  %v108 = vunpack.c.l.b16 %v76
  %v109 = vunpack.c.l.b16 %v77
  %v110 = vpack.c.b16 %v95, %v94
  %v111 = vpack.c.b16 %v97, %v96
  %v112 = vpack.c.b16 %v99, %v98
  %v113 = vpack.c.b16 %v101, %v100
  %v114 = vpack.c.b16 %v103, %v102
  %v115 = vpack.c.b16 %v105, %v104
  %v116 = vpack.c.b16 %v107, %v106
  %v117 = vpack.c.b16 %v109, %v108
  %126 = vmatprep.subr.bf16.mxu0 0
  %127 = vmatpush1.bf16.msra.mxu0 %v110
  %128 = vmatprep.subr.bf16.mxu0 0
  %129 = vmatpush1.bf16.msra.mxu0 %v111
  %130 = vmatprep.subr.bf16.mxu0 0
  %131 = vmatpush1.bf16.msra.mxu0 %v112
  %132 = vmatprep.subr.bf16.mxu0 0
  %133 = vmatpush1.bf16.msra.mxu0 %v113
  %134 = vmatprep.subr.bf16.mxu0 0
  %135 = vmatpush1.bf16.msra.mxu0 %v114
  %136 = vmatprep.subr.bf16.mxu0 0
  %137 = vmatpush1.bf16.msra.mxu0 %v115
  %138 = vmatprep.subr.bf16.mxu0 0
  %139 = vmatpush1.bf16.msra.mxu0 %v116
  %140 = vmatprep.subr.bf16.mxu0 0
  %141 = vmatpush1.bf16.msra.mxu0 %v117
  %142 = vmatprep.subr.bf16.mxu0 0
  %143 = vmatpush1.bf16.msra.mxu0 0
  %144 = vmatprep.subr.bf16.mxu0 0
  %145 = vmatpush1.bf16.msra.mxu0 0
  %146 = vmatprep.subr.bf16.mxu0 0
  %147 = vmatpush1.bf16.msra.mxu0 0
  %148 = vmatprep.subr.bf16.mxu0 0
  %149 = vmatpush1.bf16.msra.mxu0 0
  %150 = vmatprep.subr.bf16.mxu0 0
  %151 = vmatpush1.bf16.msra.mxu0 0
  %152 = vmatprep.subr.bf16.mxu0 0
  %153 = vmatpush1.bf16.msra.mxu0 0
  %154 = vmatprep.subr.bf16.mxu0 0
  %155 = vmatpush1.bf16.msra.mxu0 0
  %156 = vmatprep.subr.bf16.mxu0 0
  %157 = vmatpush1.bf16.msra.mxu0 0
  %158 = vmatprep.mubr.bf16.mxu0 0
  %159 = vmatmul.mubr.bf16.gmra.mrb[0].mxu0 %v61
  %v160 = vpop.f32.mrb[0].mxu0
  %v161 = vadd.f32 0.0, %v160
  %v162 = vpop.f32.mrb[0].mxu0
  %v163 = vpop.f32.mrb[0].mxu0
  %v164 = vadd.f32 0.0, %v163
  %v165 = vpop.f32.mrb[0].mxu0
  %166 = vdwg.mxu0
  %vm167 = vcmask 523264
  %168 = vst.msk [vmem:[%s4] sm:$0xff] %vm167, %v161
  %169 = vst.msk [vmem:[%s4 + $0x8] sm:$0xff] %vm167, %v164
  // Predicated region
  $region18: #{visual_transformer_forward.5} parent=0 // pred_check
    _
  $region19: #{visual_transformer_forward.5} parent=0 // pred_check_branch
    %171 = sbr.rel (0) target = $region21
  $region20: #{visual_transformer_forward.5} parent=0 // pred_region
    _
  $region21: #{visual_transformer_forward.5} parent=0 // pred_fallthru
    _
  // Predicated region
  $region22: #{visual_transformer_forward.5} parent=0 // pred_check
    _
  $region23: #{visual_transformer_forward.5} parent=0 // pred_check_branch
    %173 = sbr.rel (0) target = $region25
  $region24: #{visual_transformer_forward.5} parent=0 // pred_region
    _
  $region25: #{visual_transformer_forward.5} parent=0 // pred_fallthru
    _

// kernel: visual_transformer_forward.4
$region0: #{visual_transformer_forward.4}
  #allocation0 [shape = 'u32[]', space=smem, size = 0x4, offset = 0x4, fixed_abs, tag = 'smem constant byte address 0x4 - core index']
  #allocation1 [shape = 'u32[144,128]{1,0:T(1,128)}', space=vmem, size = 0x12000, scoped, tag = 'internal scratch']
  #allocation2 [shape = 'f32[2,8,128]{2,1,0:T(8,128)}', space=vmem, size = 0x2000, scoped, tag = 'scratch operand']
  %s0 = inlined_call_operand.vmem [shape: f32[2,8,128], index: 0, kind: input, shape index: {}, may-alias: {0,13}]
  %s1 = inlined_call_operand.vmem [shape: f32[2,1,128], index: 1, kind: input, shape index: {}]
  %s2 = inlined_call_operand.vmem [shape: f32[2,1,128], index: 2, kind: input, shape index: {}]
  %s3 = inlined_call_operand.hbm [shape: bf16[2,128,384], index: 3, kind: input, shape index: {}]
  %s4 = inlined_call_operand.vmem [shape: f32[2,1,384], index: 4, kind: input, shape index: {}]
  %s5 = inlined_call_operand.vmem [shape: bf16[2,128,128], index: 5, kind: input, shape index: {}]
  %s6 = inlined_call_operand.vmem [shape: f32[2,1,128], index: 6, kind: input, shape index: {}]
  %s7 = inlined_call_operand.vmem [shape: f32[2,1,128], index: 7, kind: input, shape index: {}]
  %s8 = inlined_call_operand.vmem [shape: f32[2,1,128], index: 8, kind: input, shape index: {}]
  %s9 = inlined_call_operand.vmem [shape: bf16[2,128,512], index: 9, kind: input, shape index: {}]
  %s10 = inlined_call_operand.vmem [shape: f32[2,1,512], index: 10, kind: input, shape index: {}]
  %s11 = inlined_call_operand.hbm [shape: bf16[2,512,128], index: 11, kind: input, shape index: {}]
  %s12 = inlined_call_operand.vmem [shape: f32[2,1,128], index: 12, kind: input, shape index: {}]
  %s13 = inlined_call_operand.vmem [shape: f32[2,8,128], index: 13, kind: output, shape index: {0}, may-alias: {0,13}]
  %s14 = inlined_call_operand.vmem [shape: f32[2,2,8,8], index: 14, kind: output, shape index: {1}]
  %15 = xla_tuple %s13, %s14
  %s16 = sld [smem:[#allocation0]]
  $region105: #{visual_transformer_forward.4} parent=0
    _
  %s18 = ssub.s32 1, %s16
  %s19 = scalar_select 0, %s18, %s16
  $region1: #{visual_transformer_forward.4} parent=0
    #allocation3 [shape = 'u8[196608]{0}', space=vmem, size = 0x30000, scoped, tag = 'input window, operand 3']
    #allocation4 [shape = 's32[2]{0}', space=sflag, size = 0x8, scoped, tag = 'scoped memory for visual_transformer_forward.4']
    #allocation5 [shape = 'u8[262144]{0}', space=vmem, size = 0x40000, scoped, tag = 'input window, operand 11']
    #allocation6 [shape = 's32[2]{0}', space=sflag, size = 0x8, scoped, tag = 'scoped memory for visual_transformer_forward.4']
    %20 = vsyncpa [#allocation4], 0
    %s21 = scalar_lea.sflag [#allocation4], 1
    %22 = vsyncpa %s21, 0
    %23 = vsyncpa [#allocation6], 0
    %s24 = scalar_lea.sflag [#allocation6], 1
    %25 = vsyncpa %s24, 0
    loop: start=0, step=1, limit=4
    $region2: #{visual_transformer_forward.4} parent=1 // loop_pre_header
      _
    $region3: #{visual_transformer_forward.4} parent=1 // loop_header
      %s27 = sphi 0, %s31
      %p28 = scmp.ge.s32.totalorder %s27, 4
      %s34 = sphi 0, %s46
      %s35 = sphi 0, %s42
      %s36 = sphi 0, %s34
      %s37 = sphi 0, %s35
      %s38 = sphi 0, %s36
      %s39 = sphi 0, %s37
      %s49 = sphi 0, %s51
      %s52 = sphi 0, %s49
      %s53 = sphi 0, %s52
      %s69 = sphi 0, %s53
      %s75 = sphi 0, %s77
      %s78 = sphi 0, %s75
      %s79 = sphi 0, %s78
      %s95 = sphi 0, %s79
      %s101 = sphi 0, %s103
      %s104 = sphi 0, %s101
      %s105 = sphi 0, %s104
      %s121 = sphi 0, %s105
      %s127 = sphi 0, %s129
      %s130 = sphi 0, %s127
      %s131 = sphi 0, %s130
      %s147 = sphi 0, %s131
      %s153 = sphi 0, %s155
      %s156 = sphi 0, %s153
      %s157 = sphi 0, %s156
      %s173 = sphi 0, %s157
      %s179 = sphi 0, %s181
      %s182 = sphi 0, %s179
      %s183 = sphi 0, %s182
      %s199 = sphi 0, %s183
      %s205 = sphi 0, %s207
      %s208 = sphi 0, %s205
      %s209 = sphi 0, %s208
      %s225 = sphi 0, %s209
      %s231 = sphi 0, %s233
      %s234 = sphi 0, %s231
      %s235 = sphi 0, %s234
      %s251 = sphi 0, %s235
      %s257 = sphi 0, %s259
      %s260 = sphi 0, %s257
      %s261 = sphi 0, %s260
      %s277 = sphi 0, %s261
      %s283 = sphi 0, %s285
      %s286 = sphi 0, %s283
      %s287 = sphi 0, %s286
      %s303 = sphi 0, %s287
      %s309 = sphi 0, %s311
      %s312 = sphi 0, %s309
      %s313 = sphi 0, %s312
      %s329 = sphi 0, %s313
      %s335 = sphi 0, %s337
      %s338 = sphi 0, %s335
      %s339 = sphi 0, %s338
      %s355 = sphi 0, %s339
      %s361 = sphi 0, %s363
      %s364 = sphi 0, %s361
      %s365 = sphi 0, %s364
      %s381 = sphi 0, %s365
      %s387 = sphi 0, %s389
      %s390 = sphi 0, %s387
      %s391 = sphi 0, %s390
      %s407 = sphi 0, %s391
      %s415 = sphi 0, %s417
      %s418 = sphi 0, %s415
      %s419 = sphi 0, %s418
      %s435 = sphi 0, %s419
    $region4: #{visual_transformer_forward.4} parent=1 // loop_header_branch
      %30 = sbr.rel (%p28) target = $region8
    $region5: #{visual_transformer_forward.4} parent=1 // loop_body
      %s32 = ssub.s32 %s27, 1
      %s33 = ssub.s32 %s27, 2
      %s40 = sadd.s32 1, %s35
      %p41 = scmp.ge.s32.totalorder %s40, 2
      %s42 = scalar_select %p41, 0, %s40
      %s43 = sadd.s32 1, %s34
      %s44 = scalar_select %p41, %s43, %s34
      %p45 = scmp.ge.s32.totalorder %s44, 1
      %s46 = scalar_select %p45, 0, %s44
      %s47 = ssub.s32 %s34, %s46
      %p48 = scmp.eq.s32.totalorder %s47, 0
      %s50 = sadd.s32 %s49, 1
      %s51 = scalar_select %p48, %s49, %s50
      %p54 = pneg %p48
      %p55 = scmp.eq.s32.totalorder %s27, 1
      %p56 = por %p54, %p55
      %p57 = scmp.ne.s32.totalorder %s49, %s52
      %p58 = scmp.eq.s32.totalorder %s27, 0
      %p59 = por %p57, %p58
      %p60 = scmp.ne.s32.totalorder %s49, %s52
      %p61 = scmp.eq.s32.totalorder %s32, 1
      %p62 = por %p60, %p61
      %p63 = scmp.ne.s32.totalorder %s52, %s53
      %p64 = scmp.eq.s32.totalorder %s32, 0
      %p65 = por %p63, %p64
      %p66 = scmp.ne.s32.totalorder %s52, %s53
      %p67 = scmp.eq.s32.totalorder %s33, 1
      %p68 = por %p66, %p67
      %p70 = scmp.ne.s32.totalorder %s53, %s69
      %p71 = scmp.eq.s32.totalorder %s33, 0
      %p72 = por %p70, %p71
      %s73 = ssub.s32 %s35, %s42
      %p74 = scmp.eq.s32.totalorder %s73, 0
      %s76 = sadd.s32 %s75, 1
      %s77 = scalar_select %p74, %s75, %s76
      %p80 = pneg %p74
      %p81 = scmp.eq.s32.totalorder %s27, 1
      %p82 = por %p80, %p81
      %p83 = scmp.ne.s32.totalorder %s75, %s78
      %p84 = scmp.eq.s32.totalorder %s27, 0
      %p85 = por %p83, %p84
      %p86 = scmp.ne.s32.totalorder %s75, %s78
      %p87 = scmp.eq.s32.totalorder %s32, 1
      %p88 = por %p86, %p87
      %p89 = scmp.ne.s32.totalorder %s78, %s79
      %p90 = scmp.eq.s32.totalorder %s32, 0
      %p91 = por %p89, %p90
      %p92 = scmp.ne.s32.totalorder %s78, %s79
      %p93 = scmp.eq.s32.totalorder %s33, 1
      %p94 = por %p92, %p93
      %p96 = scmp.ne.s32.totalorder %s79, %s95
      %p97 = scmp.eq.s32.totalorder %s33, 0
      %p98 = por %p96, %p97
      %s99 = ssub.s32 %s35, %s42
      %p100 = scmp.eq.s32.totalorder %s99, 0
      %s102 = sadd.s32 %s101, 1
      %s103 = scalar_select %p100, %s101, %s102
      %p106 = pneg %p100
      %p107 = scmp.eq.s32.totalorder %s27, 1
      %p108 = por %p106, %p107
      %p109 = scmp.ne.s32.totalorder %s101, %s104
      %p110 = scmp.eq.s32.totalorder %s27, 0
      %p111 = por %p109, %p110
      %p112 = scmp.ne.s32.totalorder %s101, %s104
      %p113 = scmp.eq.s32.totalorder %s32, 1
      %p114 = por %p112, %p113
      %p115 = scmp.ne.s32.totalorder %s104, %s105
      %p116 = scmp.eq.s32.totalorder %s32, 0
      %p117 = por %p115, %p116
      %p118 = scmp.ne.s32.totalorder %s104, %s105
      %p119 = scmp.eq.s32.totalorder %s33, 1
      %p120 = por %p118, %p119
      %p122 = scmp.ne.s32.totalorder %s105, %s121
      %p123 = scmp.eq.s32.totalorder %s33, 0
      %p124 = por %p122, %p123
      %s125 = ssub.s32 %s35, %s42
      %p126 = scmp.eq.s32.totalorder %s125, 0
      %s128 = sadd.s32 %s127, 1
      %s129 = scalar_select %p126, %s127, %s128
      %p132 = pneg %p126
      %p133 = scmp.eq.s32.totalorder %s27, 1
      %p134 = por %p132, %p133
      %p135 = scmp.ne.s32.totalorder %s127, %s130
      %p136 = scmp.eq.s32.totalorder %s27, 0
      %p137 = por %p135, %p136
      %p138 = scmp.ne.s32.totalorder %s127, %s130
      %p139 = scmp.eq.s32.totalorder %s32, 1
      %p140 = por %p138, %p139
      %p141 = scmp.ne.s32.totalorder %s130, %s131
      %p142 = scmp.eq.s32.totalorder %s32, 0
      %p143 = por %p141, %p142
      %p144 = scmp.ne.s32.totalorder %s130, %s131
      %p145 = scmp.eq.s32.totalorder %s33, 1
      %p146 = por %p144, %p145
      %p148 = scmp.ne.s32.totalorder %s131, %s147
      %p149 = scmp.eq.s32.totalorder %s33, 0
      %p150 = por %p148, %p149
      %s151 = ssub.s32 %s35, %s42
      %p152 = scmp.eq.s32.totalorder %s151, 0
      %s154 = sadd.s32 %s153, 1
      %s155 = scalar_select %p152, %s153, %s154
      %p158 = pneg %p152
      %p159 = scmp.eq.s32.totalorder %s27, 1
      %p160 = por %p158, %p159
      %p161 = scmp.ne.s32.totalorder %s153, %s156
      %p162 = scmp.eq.s32.totalorder %s27, 0
      %p163 = por %p161, %p162
      %p164 = scmp.ne.s32.totalorder %s153, %s156
      %p165 = scmp.eq.s32.totalorder %s32, 1
      %p166 = por %p164, %p165
      %p167 = scmp.ne.s32.totalorder %s156, %s157
      %p168 = scmp.eq.s32.totalorder %s32, 0
      %p169 = por %p167, %p168
      %p170 = scmp.ne.s32.totalorder %s156, %s157
      %p171 = scmp.eq.s32.totalorder %s33, 1
      %p172 = por %p170, %p171
      %p174 = scmp.ne.s32.totalorder %s157, %s173
      %p175 = scmp.eq.s32.totalorder %s33, 0
      %p176 = por %p174, %p175
      %s177 = ssub.s32 %s35, %s42
      %p178 = scmp.eq.s32.totalorder %s177, 0
      %s180 = sadd.s32 %s179, 1
      %s181 = scalar_select %p178, %s179, %s180
      %p184 = pneg %p178
      %p185 = scmp.eq.s32.totalorder %s27, 1
      %p186 = por %p184, %p185
      %p187 = scmp.ne.s32.totalorder %s179, %s182
      %p188 = scmp.eq.s32.totalorder %s27, 0
      %p189 = por %p187, %p188
      %p190 = scmp.ne.s32.totalorder %s179, %s182
      %p191 = scmp.eq.s32.totalorder %s32, 1
      %p192 = por %p190, %p191
      %p193 = scmp.ne.s32.totalorder %s182, %s183
      %p194 = scmp.eq.s32.totalorder %s32, 0
      %p195 = por %p193, %p194
      %p196 = scmp.ne.s32.totalorder %s182, %s183
      %p197 = scmp.eq.s32.totalorder %s33, 1
      %p198 = por %p196, %p197
      %p200 = scmp.ne.s32.totalorder %s183, %s199
      %p201 = scmp.eq.s32.totalorder %s33, 0
      %p202 = por %p200, %p201
      %s203 = ssub.s32 %s35, %s42
      %p204 = scmp.eq.s32.totalorder %s203, 0
      %s206 = sadd.s32 %s205, 1
      %s207 = scalar_select %p204, %s205, %s206
      %p210 = pneg %p204
      %p211 = scmp.eq.s32.totalorder %s27, 1
      %p212 = por %p210, %p211
      %p213 = scmp.ne.s32.totalorder %s205, %s208
      %p214 = scmp.eq.s32.totalorder %s27, 0
      %p215 = por %p213, %p214
      %p216 = scmp.ne.s32.totalorder %s205, %s208
      %p217 = scmp.eq.s32.totalorder %s32, 1
      %p218 = por %p216, %p217
      %p219 = scmp.ne.s32.totalorder %s208, %s209
      %p220 = scmp.eq.s32.totalorder %s32, 0
      %p221 = por %p219, %p220
      %p222 = scmp.ne.s32.totalorder %s208, %s209
      %p223 = scmp.eq.s32.totalorder %s33, 1
      %p224 = por %p222, %p223
      %p226 = scmp.ne.s32.totalorder %s209, %s225
      %p227 = scmp.eq.s32.totalorder %s33, 0
      %p228 = por %p226, %p227
      %s229 = ssub.s32 %s35, %s42
      %p230 = scmp.eq.s32.totalorder %s229, 0
      %s232 = sadd.s32 %s231, 1
      %s233 = scalar_select %p230, %s231, %s232
      %p236 = pneg %p230
      %p237 = scmp.eq.s32.totalorder %s27, 1
      %p238 = por %p236, %p237
      %p239 = scmp.ne.s32.totalorder %s231, %s234
      %p240 = scmp.eq.s32.totalorder %s27, 0
      %p241 = por %p239, %p240
      %p242 = scmp.ne.s32.totalorder %s231, %s234
      %p243 = scmp.eq.s32.totalorder %s32, 1
      %p244 = por %p242, %p243
      %p245 = scmp.ne.s32.totalorder %s234, %s235
      %p246 = scmp.eq.s32.totalorder %s32, 0
      %p247 = por %p245, %p246
      %p248 = scmp.ne.s32.totalorder %s234, %s235
      %p249 = scmp.eq.s32.totalorder %s33, 1
      %p250 = por %p248, %p249
      %p252 = scmp.ne.s32.totalorder %s235, %s251
      %p253 = scmp.eq.s32.totalorder %s33, 0
      %p254 = por %p252, %p253
      %s255 = ssub.s32 %s35, %s42
      %p256 = scmp.eq.s32.totalorder %s255, 0
      %s258 = sadd.s32 %s257, 1
      %s259 = scalar_select %p256, %s257, %s258
      %p262 = pneg %p256
      %p263 = scmp.eq.s32.totalorder %s27, 1
      %p264 = por %p262, %p263
      %p265 = scmp.ne.s32.totalorder %s257, %s260
      %p266 = scmp.eq.s32.totalorder %s27, 0
      %p267 = por %p265, %p266
      %p268 = scmp.ne.s32.totalorder %s257, %s260
      %p269 = scmp.eq.s32.totalorder %s32, 1
      %p270 = por %p268, %p269
      %p271 = scmp.ne.s32.totalorder %s260, %s261
      %p272 = scmp.eq.s32.totalorder %s32, 0
      %p273 = por %p271, %p272
      %p274 = scmp.ne.s32.totalorder %s260, %s261
      %p275 = scmp.eq.s32.totalorder %s33, 1
      %p276 = por %p274, %p275
      %p278 = scmp.ne.s32.totalorder %s261, %s277
      %p279 = scmp.eq.s32.totalorder %s33, 0
      %p280 = por %p278, %p279
      %s281 = ssub.s32 %s35, %s42
      %p282 = scmp.eq.s32.totalorder %s281, 0
      %s284 = sadd.s32 %s283, 1
      %s285 = scalar_select %p282, %s283, %s284
      %p288 = pneg %p282
      %p289 = scmp.eq.s32.totalorder %s27, 1
      %p290 = por %p288, %p289
      %p291 = scmp.ne.s32.totalorder %s283, %s286
      %p292 = scmp.eq.s32.totalorder %s27, 0
      %p293 = por %p291, %p292
      %p294 = scmp.ne.s32.totalorder %s283, %s286
      %p295 = scmp.eq.s32.totalorder %s32, 1
      %p296 = por %p294, %p295
      %p297 = scmp.ne.s32.totalorder %s286, %s287
      %p298 = scmp.eq.s32.totalorder %s32, 0
      %p299 = por %p297, %p298
      %p300 = scmp.ne.s32.totalorder %s286, %s287
      %p301 = scmp.eq.s32.totalorder %s33, 1
      %p302 = por %p300, %p301
      %p304 = scmp.ne.s32.totalorder %s287, %s303
      %p305 = scmp.eq.s32.totalorder %s33, 0
      %p306 = por %p304, %p305
      %s307 = ssub.s32 %s35, %s42
      %p308 = scmp.eq.s32.totalorder %s307, 0
      %s310 = sadd.s32 %s309, 1
      %s311 = scalar_select %p308, %s309, %s310
      %p314 = pneg %p308
      %p315 = scmp.eq.s32.totalorder %s27, 1
      %p316 = por %p314, %p315
      %p317 = scmp.ne.s32.totalorder %s309, %s312
      %p318 = scmp.eq.s32.totalorder %s27, 0
      %p319 = por %p317, %p318
      %p320 = scmp.ne.s32.totalorder %s309, %s312
      %p321 = scmp.eq.s32.totalorder %s32, 1
      %p322 = por %p320, %p321
      %p323 = scmp.ne.s32.totalorder %s312, %s313
      %p324 = scmp.eq.s32.totalorder %s32, 0
      %p325 = por %p323, %p324
      %p326 = scmp.ne.s32.totalorder %s312, %s313
      %p327 = scmp.eq.s32.totalorder %s33, 1
      %p328 = por %p326, %p327
      %p330 = scmp.ne.s32.totalorder %s313, %s329
      %p331 = scmp.eq.s32.totalorder %s33, 0
      %p332 = por %p330, %p331
      %s333 = ssub.s32 %s35, %s42
      %p334 = scmp.eq.s32.totalorder %s333, 0
      %s336 = sadd.s32 %s335, 1
      %s337 = scalar_select %p334, %s335, %s336
      %p340 = pneg %p334
      %p341 = scmp.eq.s32.totalorder %s27, 1
      %p342 = por %p340, %p341
      %p343 = scmp.ne.s32.totalorder %s335, %s338
      %p344 = scmp.eq.s32.totalorder %s27, 0
      %p345 = por %p343, %p344
      %p346 = scmp.ne.s32.totalorder %s335, %s338
      %p347 = scmp.eq.s32.totalorder %s32, 1
      %p348 = por %p346, %p347
      %p349 = scmp.ne.s32.totalorder %s338, %s339
      %p350 = scmp.eq.s32.totalorder %s32, 0
      %p351 = por %p349, %p350
      %p352 = scmp.ne.s32.totalorder %s338, %s339
      %p353 = scmp.eq.s32.totalorder %s33, 1
      %p354 = por %p352, %p353
      %p356 = scmp.ne.s32.totalorder %s339, %s355
      %p357 = scmp.eq.s32.totalorder %s33, 0
      %p358 = por %p356, %p357
      %s359 = ssub.s32 %s35, %s42
      %p360 = scmp.eq.s32.totalorder %s359, 0
      %s362 = sadd.s32 %s361, 1
      %s363 = scalar_select %p360, %s361, %s362
      %p366 = pneg %p360
      %p367 = scmp.eq.s32.totalorder %s27, 1
      %p368 = por %p366, %p367
      %p369 = scmp.ne.s32.totalorder %s361, %s364
      %p370 = scmp.eq.s32.totalorder %s27, 0
      %p371 = por %p369, %p370
      %p372 = scmp.ne.s32.totalorder %s361, %s364
      %p373 = scmp.eq.s32.totalorder %s32, 1
      %p374 = por %p372, %p373
      %p375 = scmp.ne.s32.totalorder %s364, %s365
      %p376 = scmp.eq.s32.totalorder %s32, 0
      %p377 = por %p375, %p376
      %p378 = scmp.ne.s32.totalorder %s364, %s365
      %p379 = scmp.eq.s32.totalorder %s33, 1
      %p380 = por %p378, %p379
      %p382 = scmp.ne.s32.totalorder %s365, %s381
      %p383 = scmp.eq.s32.totalorder %s33, 0
      %p384 = por %p382, %p383
      %s385 = ssub.s32 %s34, %s46
      %p386 = scmp.eq.s32.totalorder %s385, 0
      %s388 = sadd.s32 %s387, 1
      %s389 = scalar_select %p386, %s387, %s388
      %p392 = pneg %p386
      %p393 = scmp.eq.s32.totalorder %s27, 1
      %p394 = por %p392, %p393
      %p395 = scmp.ne.s32.totalorder %s387, %s390
      %p396 = scmp.eq.s32.totalorder %s27, 0
      %p397 = por %p395, %p396
      %p398 = scmp.ne.s32.totalorder %s387, %s390
      %p399 = scmp.eq.s32.totalorder %s32, 1
      %p400 = por %p398, %p399
      %p401 = scmp.ne.s32.totalorder %s390, %s391
      %p402 = scmp.eq.s32.totalorder %s32, 0
      %p403 = por %p401, %p402
      %p404 = scmp.ne.s32.totalorder %s390, %s391
      %p405 = scmp.eq.s32.totalorder %s33, 1
      %p406 = por %p404, %p405
      %p408 = scmp.ne.s32.totalorder %s391, %s407
      %p409 = scmp.eq.s32.totalorder %s33, 0
      %p410 = por %p408, %p409
      %s411 = ssub.s32 %s35, %s42
      %s412 = ssub.s32 %s34, %s46
      %s413 = sor.u32 %s411, %s412
      %p414 = scmp.eq.s32.totalorder %s413, 0
      %s416 = sadd.s32 %s415, 1
      %s417 = scalar_select %p414, %s415, %s416
      %p420 = pneg %p414
      %p421 = scmp.eq.s32.totalorder %s27, 1
      %p422 = por %p420, %p421
      %p423 = scmp.ne.s32.totalorder %s415, %s418
      %p424 = scmp.eq.s32.totalorder %s27, 0
      %p425 = por %p423, %p424
      %p426 = scmp.ne.s32.totalorder %s415, %s418
      %p427 = scmp.eq.s32.totalorder %s32, 1
      %p428 = por %p426, %p427
      %p429 = scmp.ne.s32.totalorder %s418, %s419
      %p430 = scmp.eq.s32.totalorder %s32, 0
      %p431 = por %p429, %p430
      %p432 = scmp.ne.s32.totalorder %s418, %s419
      %p433 = scmp.eq.s32.totalorder %s33, 1
      %p434 = por %p432, %p433
      %p436 = scmp.ne.s32.totalorder %s419, %s435
      %p437 = scmp.eq.s32.totalorder %s33, 0
      %p438 = por %p436, %p437
      %p439 = scmp.le.s32.totalorder 1, %s27
      %p440 = scmp.lt.s32.totalorder %s27, 3
      %p441 = pnand %p439, %p440
      %p442 = pneg %p441
      // Predicated region
      $region9: #{visual_transformer_forward.4} parent=5 // pred_check
        _
      $region10: #{visual_transformer_forward.4} parent=5 // pred_check_branch
        %444 = sbr.rel (%p441) target = $region12
      $region11: #{visual_transformer_forward.4} parent=5 // pred_region
        %s445 = ssub.s32 %s27, 1
        // Predicated region
        $region13: #{visual_transformer_forward.4} parent=11 // pred_check
          %p446 = pneg %p65
        $region14: #{visual_transformer_forward.4} parent=11 // pred_check_branch
          %448 = sbr.rel (%p446) target = $region16
        $region15: #{visual_transformer_forward.4} parent=11 // pred_region
          %s449 = smul.u32 2, %s36
          %p450 = scmp.lt.s32.totalorder %s449, 1
          %s451 = scalar_select %p450, %s449, 1
          %s452 = smul.addr %s451, 8
          %s453 = scalar_lea.vmem %s0, %s452
          %s454 = smul.u32 2, %s36
        $region16: #{visual_transformer_forward.4} parent=11 // pred_fallthru
          _
      $region12: #{visual_transformer_forward.4} parent=5 // pred_fallthru
        _
      %p455 = scmp.lt.s32.totalorder %s27, 2
      // Predicated region
      $region17: #{visual_transformer_forward.4} parent=5 // pred_check
        %p456 = pneg %p455
      $region18: #{visual_transformer_forward.4} parent=5 // pred_check_branch
        %458 = sbr.rel (%p456) target = $region20
      $region19: #{visual_transformer_forward.4} parent=5 // pred_region
        // Predicated region
        $region21: #{visual_transformer_forward.4} parent=19 // pred_check
          %p459 = pneg %p85
        $region22: #{visual_transformer_forward.4} parent=19 // pred_check_branch
          %461 = sbr.rel (%p459) target = $region24
        $region23: #{visual_transformer_forward.4} parent=19 // pred_region
          %p462 = scmp.lt.s32.totalorder %s35, 1
          %s463 = scalar_select %p462, %s35, 1
          %s464 = scalar_lea.vmem %s1, %s463
        $region24: #{visual_transformer_forward.4} parent=19 // pred_fallthru
          _
        // Predicated region
        $region25: #{visual_transformer_forward.4} parent=19 // pred_check
          %p465 = pneg %p111
        $region26: #{visual_transformer_forward.4} parent=19 // pred_check_branch
          %467 = sbr.rel (%p465) target = $region28
        $region27: #{visual_transformer_forward.4} parent=19 // pred_region
          %p468 = scmp.lt.s32.totalorder %s35, 1
          %s469 = scalar_select %p468, %s35, 1
          %s470 = scalar_lea.vmem %s2, %s469
        $region28: #{visual_transformer_forward.4} parent=19 // pred_fallthru
          _
        // Predicated region
        $region29: #{visual_transformer_forward.4} parent=19 // pred_check
          %p471 = pneg %p137
        $region30: #{visual_transformer_forward.4} parent=19 // pred_check_branch
          %473 = sbr.rel (%p471) target = $region32
        $region31: #{visual_transformer_forward.4} parent=19 // pred_region
          %s474 = sand.u32 %s127, 1
          %s475 = scalar_lea.sflag [#allocation4], %s474
          %s476 = sand.u32 %s127, 1
          %s477 = smul.addr %s476, 192
          %s478 = scalar_lea.vmem [#allocation3], %s477
          %s480 = ssub.s32 3072, 3072
          %481 = vsyncadd %s475, %s480
          %s482 = smul.addr %s35, 48
          %s483 = smul.addr %s482, 64
          %s484 = scalar_lea.hbm %s3, %s483
          %s485 = sshll.u32 %s478, 4
          %s486 = int_to_ptr.vmem [resolvable:$true] %s485
          %491 = dma.hbm_to_vmem [thread:$0]  %s484, 3072, %s486, %s475, 192, 192, 12
        $region32: #{visual_transformer_forward.4} parent=19 // pred_fallthru
          _
        // Predicated region
        $region33: #{visual_transformer_forward.4} parent=19 // pred_check
          %p492 = pneg %p163
        $region34: #{visual_transformer_forward.4} parent=19 // pred_check_branch
          %494 = sbr.rel (%p492) target = $region36
        $region35: #{visual_transformer_forward.4} parent=19 // pred_region
          %p495 = scmp.lt.s32.totalorder %s35, 1
          %s496 = scalar_select %p495, %s35, 1
          %s497 = smul.addr %s496, 3
          %s498 = scalar_lea.vmem %s4, %s497
        $region36: #{visual_transformer_forward.4} parent=19 // pred_fallthru
          _
        // Predicated region
        $region37: #{visual_transformer_forward.4} parent=19 // pred_check
          %p499 = pneg %p189
        $region38: #{visual_transformer_forward.4} parent=19 // pred_check_branch
          %501 = sbr.rel (%p499) target = $region40
        $region39: #{visual_transformer_forward.4} parent=19 // pred_region
          %p502 = scmp.lt.s32.totalorder %s35, 1
          %s503 = scalar_select %p502, %s35, 1
          %s504 = smul.addr %s503, 16
          %s505 = smul.addr %s504, 4
          %s506 = scalar_lea.vmem %s5, %s505
        $region40: #{visual_transformer_forward.4} parent=19 // pred_fallthru
          _
        // Predicated region
        $region41: #{visual_transformer_forward.4} parent=19 // pred_check
          %p507 = pneg %p215
        $region42: #{visual_transformer_forward.4} parent=19 // pred_check_branch
          %509 = sbr.rel (%p507) target = $region44
        $region43: #{visual_transformer_forward.4} parent=19 // pred_region
          %p510 = scmp.lt.s32.totalorder %s35, 1
          %s511 = scalar_select %p510, %s35, 1
          %s512 = scalar_lea.vmem %s6, %s511
        $region44: #{visual_transformer_forward.4} parent=19 // pred_fallthru
          _
        // Predicated region
        $region45: #{visual_transformer_forward.4} parent=19 // pred_check
          %p513 = pneg %p241
        $region46: #{visual_transformer_forward.4} parent=19 // pred_check_branch
          %515 = sbr.rel (%p513) target = $region48
        $region47: #{visual_transformer_forward.4} parent=19 // pred_region
          %p516 = scmp.lt.s32.totalorder %s35, 1
          %s517 = scalar_select %p516, %s35, 1
          %s518 = scalar_lea.vmem %s7, %s517
        $region48: #{visual_transformer_forward.4} parent=19 // pred_fallthru
          _
        // Predicated region
        $region49: #{visual_transformer_forward.4} parent=19 // pred_check
          %p519 = pneg %p267
        $region50: #{visual_transformer_forward.4} parent=19 // pred_check_branch
          %521 = sbr.rel (%p519) target = $region52
        $region51: #{visual_transformer_forward.4} parent=19 // pred_region
          %p522 = scmp.lt.s32.totalorder %s35, 1
          %s523 = scalar_select %p522, %s35, 1
          %s524 = scalar_lea.vmem %s8, %s523
        $region52: #{visual_transformer_forward.4} parent=19 // pred_fallthru
          _
        // Predicated region
        $region53: #{visual_transformer_forward.4} parent=19 // pred_check
          %p525 = pneg %p293
        $region54: #{visual_transformer_forward.4} parent=19 // pred_check_branch
          %527 = sbr.rel (%p525) target = $region56
        $region55: #{visual_transformer_forward.4} parent=19 // pred_region
          %p528 = scmp.lt.s32.totalorder %s35, 1
          %s529 = scalar_select %p528, %s35, 1
          %s530 = smul.addr %s529, 64
          %s531 = smul.addr %s530, 4
          %s532 = scalar_lea.vmem %s9, %s531
        $region56: #{visual_transformer_forward.4} parent=19 // pred_fallthru
          _
        // Predicated region
        $region57: #{visual_transformer_forward.4} parent=19 // pred_check
          %p533 = pneg %p319
        $region58: #{visual_transformer_forward.4} parent=19 // pred_check_branch
          %535 = sbr.rel (%p533) target = $region60
        $region59: #{visual_transformer_forward.4} parent=19 // pred_region
          %p536 = scmp.lt.s32.totalorder %s35, 1
          %s537 = scalar_select %p536, %s35, 1
          %s538 = smul.addr %s537, 4
          %s539 = scalar_lea.vmem %s10, %s538
        $region60: #{visual_transformer_forward.4} parent=19 // pred_fallthru
          _
        // Predicated region
        $region61: #{visual_transformer_forward.4} parent=19 // pred_check
          %p540 = pneg %p345
        $region62: #{visual_transformer_forward.4} parent=19 // pred_check_branch
          %542 = sbr.rel (%p540) target = $region64
        $region63: #{visual_transformer_forward.4} parent=19 // pred_region
          %s543 = sand.u32 %s335, 1
          %s544 = scalar_lea.sflag [#allocation6], %s543
          %s545 = sand.u32 %s335, 1
          %s546 = smul.addr %s545, 256
          %s547 = scalar_lea.vmem [#allocation5], %s546
          %s549 = ssub.s32 4096, 4096
          %550 = vsyncadd %s544, %s549
          %s551 = smul.addr %s35, 64
          %s552 = smul.addr %s551, 64
          %s553 = scalar_lea.hbm %s11, %s552
          %s554 = sshll.u32 %s547, 4
          %s555 = int_to_ptr.vmem [resolvable:$true] %s554
          %560 = dma.hbm_to_vmem [thread:$0]  %s553, 4096, %s555, %s544, 64, 64, 4
        $region64: #{visual_transformer_forward.4} parent=19 // pred_fallthru
          _
        // Predicated region
        $region65: #{visual_transformer_forward.4} parent=19 // pred_check
          %p561 = pneg %p371
        $region66: #{visual_transformer_forward.4} parent=19 // pred_check_branch
          %563 = sbr.rel (%p561) target = $region68
        $region67: #{visual_transformer_forward.4} parent=19 // pred_region
          %p564 = scmp.lt.s32.totalorder %s35, 1
          %s565 = scalar_select %p564, %s35, 1
          %s566 = scalar_lea.vmem %s12, %s565
        $region68: #{visual_transformer_forward.4} parent=19 // pred_fallthru
          _
      $region20: #{visual_transformer_forward.4} parent=5 // pred_fallthru
        _
      %p567 = scmp.le.s32.totalorder 1, %s27
      %p568 = scmp.lt.s32.totalorder %s27, 3
      %p569 = pnand %p567, %p568
      %p570 = pneg %p569
      // Predicated region
      $region69: #{visual_transformer_forward.4} parent=5 // pred_check
        _
      $region70: #{visual_transformer_forward.4} parent=5 // pred_check_branch
        %572 = sbr.rel (%p569) target = $region72
      $region71: #{visual_transformer_forward.4} parent=5 // pred_region
        %s573 = ssub.s32 %s27, 1
        %s574 = sand.u32 %s130, 1
        %s575 = scalar_lea.sflag [#allocation4], %s574
        %s576 = sand.u32 %s130, 1
        %s577 = smul.addr %s576, 192
        %s578 = scalar_lea.vmem [#allocation3], %s577
        // Predicated region
        $region73: #{visual_transformer_forward.4} parent=71 // pred_check
          %p579 = pneg %p143
        $region74: #{visual_transformer_forward.4} parent=71 // pred_check_branch
          %581 = sbr.rel (%p579) target = $region76
        $region75: #{visual_transformer_forward.4} parent=71 // pred_region
          %582 = dma.done %s575, 3072
        $region76: #{visual_transformer_forward.4} parent=71 // pred_fallthru
          _
        %s583 = sand.u32 %s338, 1
        %s584 = scalar_lea.sflag [#allocation6], %s583
        %s585 = sand.u32 %s338, 1
        %s586 = smul.addr %s585, 256
        %s587 = scalar_lea.vmem [#allocation5], %s586
        // Predicated region
        $region77: #{visual_transformer_forward.4} parent=71 // pred_check
          %p588 = pneg %p351
        $region78: #{visual_transformer_forward.4} parent=71 // pred_check_branch
          %590 = sbr.rel (%p588) target = $region80
        $region79: #{visual_transformer_forward.4} parent=71 // pred_region
          %591 = dma.done %s584, 4096
        $region80: #{visual_transformer_forward.4} parent=71 // pred_fallthru
          _
        %s592 = smul.u32 2, %s36
        %p593 = scmp.lt.s32.totalorder %s592, 1
        %s594 = scalar_select %p593, %s592, 1
        %s595 = smul.addr %s594, 8
        %s596 = scalar_lea.vmem %s0, %s595
        %p597 = pneg %p65
        %p598 = pneg %p62
        %p599 = scmp.lt.s32.totalorder %s37, 1
        %s600 = scalar_select %p599, %s37, 1
        %s601 = scalar_lea.vmem %s1, %s600
        %p602 = pneg %p91
        %p603 = pneg %p88
        %p604 = scmp.lt.s32.totalorder %s37, 1
        %s605 = scalar_select %p604, %s37, 1
        %s606 = scalar_lea.vmem %s2, %s605
        %p607 = pneg %p117
        %p608 = pneg %p114
        %s609 = sand.u32 %s130, 1
        %s610 = scalar_lea.sflag [#allocation4], %s609
        %s611 = sand.u32 %s130, 1
        %s612 = smul.addr %s611, 192
        %s613 = scalar_lea.vmem [#allocation3], %s612
        %p614 = pneg %p143
        %p615 = pneg %p140
        %p616 = scmp.lt.s32.totalorder %s37, 1
        %s617 = scalar_select %p616, %s37, 1
        %s618 = smul.addr %s617, 3
        %s619 = scalar_lea.vmem %s4, %s618
        %p620 = pneg %p169
        %p621 = pneg %p166
        %p622 = scmp.lt.s32.totalorder %s37, 1
        %s623 = scalar_select %p622, %s37, 1
        %s624 = smul.addr %s623, 16
        %s625 = smul.addr %s624, 4
        %s626 = scalar_lea.vmem %s5, %s625
        %p627 = pneg %p195
        %p628 = pneg %p192
        %p629 = scmp.lt.s32.totalorder %s37, 1
        %s630 = scalar_select %p629, %s37, 1
        %s631 = scalar_lea.vmem %s6, %s630
        %p632 = pneg %p221
        %p633 = pneg %p218
        %p634 = scmp.lt.s32.totalorder %s37, 1
        %s635 = scalar_select %p634, %s37, 1
        %s636 = scalar_lea.vmem %s7, %s635
        %p637 = pneg %p247
        %p638 = pneg %p244
        %p639 = scmp.lt.s32.totalorder %s37, 1
        %s640 = scalar_select %p639, %s37, 1
        %s641 = scalar_lea.vmem %s8, %s640
        %p642 = pneg %p273
        %p643 = pneg %p270
        %p644 = scmp.lt.s32.totalorder %s37, 1
        %s645 = scalar_select %p644, %s37, 1
        %s646 = smul.addr %s645, 64
        %s647 = smul.addr %s646, 4
        %s648 = scalar_lea.vmem %s9, %s647
        %p649 = pneg %p299
        %p650 = pneg %p296
        %p651 = scmp.lt.s32.totalorder %s37, 1
        %s652 = scalar_select %p651, %s37, 1
        %s653 = smul.addr %s652, 4
        %s654 = scalar_lea.vmem %s10, %s653
        %p655 = pneg %p325
        %p656 = pneg %p322
        %s657 = sand.u32 %s338, 1
        %s658 = scalar_lea.sflag [#allocation6], %s657
        %s659 = sand.u32 %s338, 1
        %s660 = smul.addr %s659, 256
        %s661 = scalar_lea.vmem [#allocation5], %s660
        %p662 = pneg %p351
        %p663 = pneg %p348
        %p664 = scmp.lt.s32.totalorder %s37, 1
        %s665 = scalar_select %p664, %s37, 1
        %s666 = scalar_lea.vmem %s12, %s665
        %p667 = pneg %p377
        %p668 = pneg %p374
        %p669 = pneg %p403
        %p670 = pneg %p400
        %s671 = smul.u32 2, %s36
        %p672 = scmp.lt.s32.totalorder %s671, 1
        %s673 = scalar_select %p672, %s671, 1
        %s674 = smul.addr %s673, 8
        %s675 = scalar_lea.vmem %s13, %s674
        %p676 = pneg %p431
        %p677 = pneg %p428
        %s678 = smul.u32 2, %s36
        %p679 = scmp.lt.s32.totalorder %s37, 1
        %s680 = scalar_select %p679, %s37, 1
        %p681 = scmp.lt.s32.totalorder %s678, 1
        %s682 = scalar_select %p681, %s678, 1
        %s683 = smul.addr %s680, 2
        %s684 = sadd.s32 %s682, %s683
        %s685 = smul.addr %s684, 8
        %s686 = scalar_lea.vmem %s14, %s685
        %s687 = smul.u32 2, %s36
        %p688 = scmp.lt.s32.totalorder %s687, 1
        %s689 = scalar_select %p688, %s687, 1
        %s690 = smul.addr %s689, 8
        %s691 = scalar_lea.vmem %s0, %s690
        %s692 = smul.u32 2, %s36
        %p693 = scmp.lt.s32.totalorder %s37, 1
        %s694 = scalar_select %p693, %s37, 1
        %s695 = scalar_lea.vmem %s1, %s694
        %p696 = scmp.lt.s32.totalorder %s37, 1
        %s697 = scalar_select %p696, %s37, 1
        %s698 = scalar_lea.vmem %s2, %s697
        %p699 = scmp.lt.s32.totalorder %s37, 1
        %s700 = scalar_select %p699, %s37, 1
        %s701 = smul.addr %s700, 3
        %s702 = scalar_lea.vmem %s4, %s701
        %p703 = scmp.lt.s32.totalorder %s37, 1
        %s704 = scalar_select %p703, %s37, 1
        %s705 = smul.addr %s704, 16
        %s706 = smul.addr %s705, 4
        %s707 = scalar_lea.vmem %s5, %s706
        %p708 = scmp.lt.s32.totalorder %s37, 1
        %s709 = scalar_select %p708, %s37, 1
        %s710 = scalar_lea.vmem %s6, %s709
        %p711 = scmp.lt.s32.totalorder %s37, 1
        %s712 = scalar_select %p711, %s37, 1
        %s713 = scalar_lea.vmem %s7, %s712
        %p714 = scmp.lt.s32.totalorder %s37, 1
        %s715 = scalar_select %p714, %s37, 1
        %s716 = scalar_lea.vmem %s8, %s715
        %p717 = scmp.lt.s32.totalorder %s37, 1
        %s718 = scalar_select %p717, %s37, 1
        %s719 = smul.addr %s718, 64
        %s720 = smul.addr %s719, 4
        %s721 = scalar_lea.vmem %s9, %s720
        %p722 = scmp.lt.s32.totalorder %s37, 1
        %s723 = scalar_select %p722, %s37, 1
        %s724 = smul.addr %s723, 4
        %s725 = scalar_lea.vmem %s10, %s724
        %p726 = scmp.lt.s32.totalorder %s37, 1
        %s727 = scalar_select %p726, %s37, 1
        %s728 = scalar_lea.vmem %s12, %s727
        %s729 = smul.u32 2, %s36
        %p730 = scmp.lt.s32.totalorder %s729, 1
        %s731 = scalar_select %p730, %s729, 1
        %s732 = smul.addr %s731, 8
        %s733 = scalar_lea.vmem %s13, %s732
        %s734 = smul.u32 2, %s36
        %s735 = smul.u32 2, %s36
        %p736 = scmp.lt.s32.totalorder %s37, 1
        %s737 = scalar_select %p736, %s37, 1
        %p738 = scmp.lt.s32.totalorder %s735, 1
        %s739 = scalar_select %p738, %s735, 1
        %s740 = smul.addr %s737, 2
        %s741 = sadd.s32 %s739, %s740
        %s742 = smul.addr %s741, 8
        %s743 = scalar_lea.vmem %s14, %s742
        %s744 = smul.u32 2, %s36
        %p746 = scmp.eq.s32.totalorder %s37, 0
        // Predicated region
        $region81: #{visual_transformer_forward.4} parent=71 // pred_check
          %p747 = pneg %p746
        $region82: #{visual_transformer_forward.4} parent=71 // pred_check_branch
          %749 = sbr.rel (%p747) target = $region84
        $region83: #{visual_transformer_forward.4} parent=71 // pred_region
          %v750 = vld [vmem:[%s691] sm:$0xff]
          %v751 = vld [vmem:[%s691 + $0x8] sm:$0xff]
          %752 = vst [vmem:[%s733] sm:$0xff] %v750
          %753 = vst [vmem:[%s733 + $0x8] sm:$0xff] %v751
        $region84: #{visual_transformer_forward.4} parent=71 // pred_fallthru
          _
        %v754 = vld [vmem:[%s733] sm:$0xff]
        %v755 = vld [vmem:[%s733 + $0x8] sm:$0xff]
        %v756 = vld [vmem:[%s695] sm:$0x1]
        %v757 = vld [vmem:[%s698] sm:$0x1]
        %758 = vadd.xlane.f32.xlu0 %v754
        %v759 = vpop.xlane.xlu0 %758
        %760 = vadd.xlane.f32.xlu0 %v755
        %v761 = vpop.xlane.xlu0 %760
        %v762 = vrcp.pop 128.0
        %v763 = vmul.f32 %v759, %v762
        %v764 = vmul.f32 %v761, %v762
        %v765 = vsub.f32 %v754, %v763
        %v766 = vsub.f32 %v755, %v764
        %v767 = vmul.f32 %v765, %v765
        %v768 = vmul.f32 %v766, %v766
        %769 = vadd.xlane.f32.xlu0 %v767
        %v770 = vpop.xlane.xlu0 %769
        %771 = vadd.xlane.f32.xlu0 %v768
        %v772 = vpop.xlane.xlu0 %771
        %v773 = vmul.f32 %v770, %v762
        %v774 = vmul.f32 %v772, %v762
        %v775 = vadd.f32 %v773, 1e-05
        %v776 = vadd.f32 %v774, 1e-05
        %v777 = vrsqrt.pop %v775
        %v778 = vrsqrt.pop %v776
        %v779 = vmul.f32 %v765, %v777
        %v780 = vmul.f32 %v766, %v778
        %v782 = vlaneseq
        %v783 = vshrl.u32 %v782, 7
        %v784 = vsub.s32 0, %v783
        %v785 = vrot.slane %v756, %v784
        %v787 = vmul.f32 %v779, %v785
        %v788 = vmul.f32 %v780, %v785
        %v790 = vlaneseq
        %v791 = vshrl.u32 %v790, 7
        %v792 = vsub.s32 0, %v791
        %v793 = vrot.slane %v757, %v792
        %v795 = vadd.f32 %v787, %v793
        %v796 = vadd.f32 %v788, %v793
        %v797 = vpack.c.bf16 %v796, %v795
        %v798 = vld [vmem:[%s578] sm:$0xff]
        %v799 = vld [vmem:[%s578 + $0x8] sm:$0xf]
        %v800 = vld [vmem:[%s578 + $0xc] sm:$0xff]
        %v801 = vld [vmem:[%s578 + $0x14] sm:$0xf]
        %v802 = vld [vmem:[%s578 + $0x18] sm:$0xff]
        %v803 = vld [vmem:[%s578 + $0x20] sm:$0xf]
        %v804 = vld [vmem:[%s578 + $0x24] sm:$0xff]
        %v805 = vld [vmem:[%s578 + $0x2c] sm:$0xf]
        %v806 = vld [vmem:[%s578 + $0x30] sm:$0xff]
        %v807 = vld [vmem:[%s578 + $0x38] sm:$0xf]
        %v808 = vld [vmem:[%s578 + $0x3c] sm:$0xff]
        %v809 = vld [vmem:[%s578 + $0x44] sm:$0xf]
        %v810 = vld [vmem:[%s578 + $0x48] sm:$0xff]
        %v811 = vld [vmem:[%s578 + $0x50] sm:$0xf]
        %v812 = vld [vmem:[%s578 + $0x54] sm:$0xff]
        %v813 = vld [vmem:[%s578 + $0x5c] sm:$0xf]
        %v814 = vld [vmem:[%s578 + $0x60] sm:$0xff]
        %v815 = vld [vmem:[%s578 + $0x68] sm:$0xf]
        %v816 = vld [vmem:[%s578 + $0x6c] sm:$0xff]
        %v817 = vld [vmem:[%s578 + $0x74] sm:$0xf]
        %v818 = vld [vmem:[%s578 + $0x78] sm:$0xff]
        %v819 = vld [vmem:[%s578 + $0x80] sm:$0xf]
        %v820 = vld [vmem:[%s578 + $0x84] sm:$0xff]
        %v821 = vld [vmem:[%s578 + $0x8c] sm:$0xf]
        %v822 = vld [vmem:[%s578 + $0x90] sm:$0xff]
        %v823 = vld [vmem:[%s578 + $0x98] sm:$0xf]
        %v824 = vld [vmem:[%s578 + $0x9c] sm:$0xff]
        %v825 = vld [vmem:[%s578 + $0xa4] sm:$0xf]
        %v826 = vld [vmem:[%s578 + $0xa8] sm:$0xff]
        %v827 = vld [vmem:[%s578 + $0xb0] sm:$0xf]
        %v828 = vld [vmem:[%s578 + $0xb4] sm:$0xff]
        %v829 = vld [vmem:[%s578 + $0xbc] sm:$0xf]
        %v830 = vld [vmem:[%s702] sm:$0x7]
        %v832 = vlaneseq
        %v833 = vshrl.u32 %v832, 7
        %v834 = vsub.s32 0, %v833
        %v835 = vrot.slane %v830, %v834
        %v836 = vlaneseq
        %v837 = vshrl.u32 %v836, 7
        %v838 = vsub.s32 1, %v837
        %v839 = vrot.slane %v830, %v838
        %v840 = vlaneseq
        %v841 = vshrl.u32 %v840, 7
        %v842 = vsub.s32 2, %v841
        %v843 = vrot.slane %v830, %v842
        %v879 = vunpack.c.l.b16 %v798
        %v880 = vunpack.c.h.b16 %v798
        %v881 = vunpack.c.l.b16 %v799
        %v882 = vunpack.c.l.b16 %v800
        %v883 = vunpack.c.h.b16 %v800
        %v884 = vunpack.c.l.b16 %v801
        %v885 = vunpack.c.l.b16 %v802
        %v886 = vunpack.c.h.b16 %v802
        %v887 = vunpack.c.l.b16 %v803
        %v888 = vunpack.c.l.b16 %v804
        %v889 = vunpack.c.h.b16 %v804
        %v890 = vunpack.c.l.b16 %v805
        %v891 = vunpack.c.l.b16 %v806
        %v892 = vunpack.c.h.b16 %v806
        %v893 = vunpack.c.l.b16 %v807
        %v894 = vunpack.c.l.b16 %v808
        %v895 = vunpack.c.h.b16 %v808
        %v896 = vunpack.c.l.b16 %v809
        %v897 = vunpack.c.l.b16 %v810
        %v898 = vunpack.c.h.b16 %v810
        %v899 = vunpack.c.l.b16 %v811
        %v900 = vunpack.c.l.b16 %v812
        %v901 = vunpack.c.h.b16 %v812
        %v902 = vunpack.c.l.b16 %v813
        %v903 = vunpack.c.l.b16 %v814
        %v904 = vunpack.c.h.b16 %v814
        %v905 = vunpack.c.l.b16 %v815
        %v906 = vunpack.c.l.b16 %v816
        %v907 = vunpack.c.h.b16 %v816
        %v908 = vunpack.c.l.b16 %v817
        %v909 = vunpack.c.l.b16 %v818
        %v910 = vunpack.c.h.b16 %v818
        %v911 = vunpack.c.l.b16 %v819
        %v912 = vunpack.c.l.b16 %v820
        %v913 = vunpack.c.h.b16 %v820
        %v914 = vunpack.c.l.b16 %v821
        %v915 = vunpack.c.l.b16 %v822
        %v916 = vunpack.c.h.b16 %v822
        %v917 = vunpack.c.l.b16 %v823
        %v918 = vunpack.c.l.b16 %v824
        %v919 = vunpack.c.h.b16 %v824
        %v920 = vunpack.c.l.b16 %v825
        %v921 = vunpack.c.l.b16 %v826
        %v922 = vunpack.c.h.b16 %v826
        %v923 = vunpack.c.l.b16 %v827
        %v924 = vunpack.c.l.b16 %v828
        %v925 = vunpack.c.h.b16 %v828
        %v926 = vunpack.c.l.b16 %v829
        %v927 = vpack.c.b16 %v882, %v879
        %v928 = vpack.c.b16 %v883, %v880
        %v929 = vpack.c.b16 %v884, %v881
        %v930 = vpack.c.b16 %v888, %v885
        %v931 = vpack.c.b16 %v889, %v886
        %v932 = vpack.c.b16 %v890, %v887
        %v933 = vpack.c.b16 %v894, %v891
        %v934 = vpack.c.b16 %v895, %v892
        %v935 = vpack.c.b16 %v896, %v893
        %v936 = vpack.c.b16 %v900, %v897
        %v937 = vpack.c.b16 %v901, %v898
        %v938 = vpack.c.b16 %v902, %v899
        %v939 = vpack.c.b16 %v906, %v903
        %v940 = vpack.c.b16 %v907, %v904
        %v941 = vpack.c.b16 %v908, %v905
        %v942 = vpack.c.b16 %v912, %v909
        %v943 = vpack.c.b16 %v913, %v910
        %v944 = vpack.c.b16 %v914, %v911
        %v945 = vpack.c.b16 %v918, %v915
        %v946 = vpack.c.b16 %v919, %v916
        %v947 = vpack.c.b16 %v920, %v917
        %v948 = vpack.c.b16 %v924, %v921
        %v949 = vpack.c.b16 %v925, %v922
        %v950 = vpack.c.b16 %v926, %v923
        %975 = vmatprep.subr.bf16.mxu0 %v928
        %976 = vmatpush1.bf16.msra.mxu0 %v927
        %977 = vmatprep.subr.bf16.mxu0 %v931
        %978 = vmatpush1.bf16.msra.mxu0 %v930
        %979 = vmatprep.subr.bf16.mxu0 %v934
        %980 = vmatpush1.bf16.msra.mxu0 %v933
        %981 = vmatprep.subr.bf16.mxu0 %v937
        %982 = vmatpush1.bf16.msra.mxu0 %v936
        %983 = vmatprep.subr.bf16.mxu0 %v940
        %984 = vmatpush1.bf16.msra.mxu0 %v939
        %985 = vmatprep.subr.bf16.mxu0 %v943
        %986 = vmatpush1.bf16.msra.mxu0 %v942
        %987 = vmatprep.subr.bf16.mxu0 %v946
        %988 = vmatpush1.bf16.msra.mxu0 %v945
        %989 = vmatprep.subr.bf16.mxu0 %v949
        %990 = vmatpush1.bf16.msra.mxu0 %v948
        %991 = vmatprep.subr.bf16.mxu0 0
        %992 = vmatpush1.bf16.msra.mxu0 0
        %993 = vmatprep.subr.bf16.mxu0 0
        %994 = vmatpush1.bf16.msra.mxu0 0
        %995 = vmatprep.subr.bf16.mxu0 0
        %996 = vmatpush1.bf16.msra.mxu0 0
        %997 = vmatprep.subr.bf16.mxu0 0
        %998 = vmatpush1.bf16.msra.mxu0 0
        %999 = vmatprep.subr.bf16.mxu0 0
        %1000 = vmatpush1.bf16.msra.mxu0 0
        %1001 = vmatprep.subr.bf16.mxu0 0
        %1002 = vmatpush1.bf16.msra.mxu0 0
        %1003 = vmatprep.subr.bf16.mxu0 0
        %1004 = vmatpush1.bf16.msra.mxu0 0
        %1005 = vmatprep.subr.bf16.mxu0 0
        %1006 = vmatpush1.bf16.msra.mxu0 0
        %1007 = vmatprep.mubr.bf16.mxu0 0
        %1008 = vmatmul.mubr.bf16.gmra.mrb[0].mxu0 %v797
        %v1009 = vpop.f32.mrb[0].mxu0
        %v1010 = vadd.f32 %v835, %v1009
        %v1011 = vpop.f32.mrb[0].mxu0
        %v1012 = vadd.f32 %v839, %v1011
        %v1013 = vpop.f32.mrb[0].mxu0
        %v1014 = vadd.f32 %v835, %v1013
        %v1015 = vpop.f32.mrb[0].mxu0
        %v1016 = vadd.f32 %v839, %v1015
        %1017 = vdwg.mxu0
        %1018 = vmatprep.subr.bf16.mxu0 0
        %1019 = vmatpush1.bf16.msra.mxu0 %v929
        %1020 = vmatprep.subr.bf16.mxu0 0
        %1021 = vmatpush1.bf16.msra.mxu0 %v932
        %1022 = vmatprep.subr.bf16.mxu0 0
        %1023 = vmatpush1.bf16.msra.mxu0 %v935
        %1024 = vmatprep.subr.bf16.mxu0 0
        %1025 = vmatpush1.bf16.msra.mxu0 %v938
        %1026 = vmatprep.subr.bf16.mxu0 0
        %1027 = vmatpush1.bf16.msra.mxu0 %v941
        %1028 = vmatprep.subr.bf16.mxu0 0
        %1029 = vmatpush1.bf16.msra.mxu0 %v944
        %1030 = vmatprep.subr.bf16.mxu0 0
        %1031 = vmatpush1.bf16.msra.mxu0 %v947
        %1032 = vmatprep.subr.bf16.mxu0 0
        %1033 = vmatpush1.bf16.msra.mxu0 %v950
        %1034 = vmatprep.subr.bf16.mxu0 0
        %1035 = vmatpush1.bf16.msra.mxu0 0
        %1036 = vmatprep.subr.bf16.mxu0 0
        %1037 = vmatpush1.bf16.msra.mxu0 0
        %1038 = vmatprep.subr.bf16.mxu0 0
        %1039 = vmatpush1.bf16.msra.mxu0 0
        %1040 = vmatprep.subr.bf16.mxu0 0
        %1041 = vmatpush1.bf16.msra.mxu0 0
        %1042 = vmatprep.subr.bf16.mxu0 0
        %1043 = vmatpush1.bf16.msra.mxu0 0
        %1044 = vmatprep.subr.bf16.mxu0 0
        %1045 = vmatpush1.bf16.msra.mxu0 0
        %1046 = vmatprep.subr.bf16.mxu0 0
        %1047 = vmatpush1.bf16.msra.mxu0 0
        %1048 = vmatprep.subr.bf16.mxu0 0
        %1049 = vmatpush1.bf16.msra.mxu0 0
        %1050 = vmatprep.mubr.bf16.mxu0 0
        %1051 = vmatmul.mubr.bf16.gmra.mrb[0].mxu0 %v797
        %v1052 = vpop.f32.mrb[0].mxu0
        %v1053 = vadd.f32 %v843, %v1052
        %v1054 = vpop.f32.mrb[0].mxu0
        %v1055 = vpop.f32.mrb[0].mxu0
        %v1056 = vadd.f32 %v843, %v1055
        %v1057 = vpop.f32.mrb[0].mxu0
        %1058 = vdwg.mxu0
        %v1059 = vmul.f32 %v1010, 0.17677669
        %v1060 = vmul.f32 %v1014, 0.17677669
        %v1061 = vpack.c.bf16 %v1060, %v1059
        %v1063 = vunpack.c.l.b16 %v1061
        %v1064 = vunpack.c.h.b16 %v1061
        %v1065 = vpack.c.b16 %v1063, %v1063
        %v1066 = vpack.c.b16 %v1064, %v1064
        %v1067 = vpack.c.bf16 %v1016, %v1012
        %v1069 = vunpack.c.l.b16 %v1067
        %v1070 = vunpack.c.h.b16 %v1067
        %v1071 = vpack.c.b16 %v1069, %v1069
        %v1072 = vpack.c.b16 %v1070, %v1070
        %v1073 = vpack.c.bf16 %v1056, %v1053
        %v1075 = vunpack.c.l.b16 %v1073
        %v1076 = vunpack.c.h.b16 %v1073
        %v1077 = vpack.c.b16 %v1075, %v1075
        %v1078 = vpack.c.b16 %v1076, %v1076
        %v1079 = vlaneseq
        %v1080 = vand.u32 %v1079, 127
        %vm1081 = vcmp.lt.s32.totalorder %v1080, 5
        %vm1082 = vcmask 261120
        %v1084 = vsel %vm1082, %v1065, 0
        %v1087 = vsel %vm1082, %v1071, 0
        %1089 = vmatprep.subr.bf16.mxu0 0
        %1090 = vmatpush1.bf16.xpose.msra.mxu0 %v1087
        %1091 = vmatprep.subr.bf16.mxu0 0
        %1092 = vmatpush1.bf16.xpose.msra.mxu0 0
        %1093 = vmatprep.subr.bf16.mxu0 0
        %1094 = vmatpush1.bf16.xpose.msra.mxu0 0
        %1095 = vmatprep.subr.bf16.mxu0 0
        %1096 = vmatpush1.bf16.xpose.msra.mxu0 0
        %1097 = vmatprep.subr.bf16.mxu0 0
        %1098 = vmatpush1.bf16.xpose.msra.mxu0 0
        %1099 = vmatprep.subr.bf16.mxu0 0
        %1100 = vmatpush1.bf16.xpose.msra.mxu0 0
        %1101 = vmatprep.subr.bf16.mxu0 0
        %1102 = vmatpush1.bf16.xpose.msra.mxu0 0
        %1103 = vmatprep.subr.bf16.mxu0 0
        %1104 = vmatpush1.bf16.xpose.msra.mxu0 0
        %1105 = vmatprep.subr.bf16.mxu0 0
        %1106 = vmatpush1.bf16.xpose.msra.mxu0 0
        %1107 = vmatprep.subr.bf16.mxu0 0
        %1108 = vmatpush1.bf16.xpose.msra.mxu0 0
        %1109 = vmatprep.subr.bf16.mxu0 0
        %1110 = vmatpush1.bf16.xpose.msra.mxu0 0
        %1111 = vmatprep.subr.bf16.mxu0 0
        %1112 = vmatpush1.bf16.xpose.msra.mxu0 0
        %1113 = vmatprep.subr.bf16.mxu0 0
        %1114 = vmatpush1.bf16.xpose.msra.mxu0 0
        %1115 = vmatprep.subr.bf16.mxu0 0
        %1116 = vmatpush1.bf16.xpose.msra.mxu0 0
        %1117 = vmatprep.subr.bf16.mxu0 0
        %1118 = vmatpush1.bf16.xpose.msra.mxu0 0
        %1119 = vmatprep.subr.bf16.mxu0 0
        %1120 = vmatpush1.bf16.xpose.msra.mxu0 0
        %1121 = vmatprep.mubr.bf16.mxu0 0
        %1122 = vmatmul.mubr.bf16.gmra.mrb[0].mxu0 %v1084
        %v1123 = vpop.f32.mrb[0].mxu0
        %v1124 = vadd.f32 0.0, %v1123
        %v1125 = vpop.f32.mrb[0].mxu0
        %v1126 = vpop.f32.mrb[0].mxu0
        %v1127 = vpop.f32.mrb[0].mxu0
        %1128 = vdwg.mxu0
        %v1130 = vsel %vm1082, %v1066, 0
        %v1133 = vsel %vm1082, %v1072, 0
        %1135 = vmatprep.subr.bf16.mxu0 0
        %1136 = vmatpush1.bf16.xpose.msra.mxu0 %v1133
        %1137 = vmatprep.subr.bf16.mxu0 0
        %1138 = vmatpush1.bf16.xpose.msra.mxu0 0
        %1139 = vmatprep.subr.bf16.mxu0 0
        %1140 = vmatpush1.bf16.xpose.msra.mxu0 0
        %1141 = vmatprep.subr.bf16.mxu0 0
        %1142 = vmatpush1.bf16.xpose.msra.mxu0 0
        %1143 = vmatprep.subr.bf16.mxu0 0
        %1144 = vmatpush1.bf16.xpose.msra.mxu0 0
        %1145 = vmatprep.subr.bf16.mxu0 0
        %1146 = vmatpush1.bf16.xpose.msra.mxu0 0
        %1147 = vmatprep.subr.bf16.mxu0 0
        %1148 = vmatpush1.bf16.xpose.msra.mxu0 0
        %1149 = vmatprep.subr.bf16.mxu0 0
        %1150 = vmatpush1.bf16.xpose.msra.mxu0 0
        %1151 = vmatprep.subr.bf16.mxu0 0
        %1152 = vmatpush1.bf16.xpose.msra.mxu0 0
        %1153 = vmatprep.subr.bf16.mxu0 0
        %1154 = vmatpush1.bf16.xpose.msra.mxu0 0
        %1155 = vmatprep.subr.bf16.mxu0 0
        %1156 = vmatpush1.bf16.xpose.msra.mxu0 0
        %1157 = vmatprep.subr.bf16.mxu0 0
        %1158 = vmatpush1.bf16.xpose.msra.mxu0 0
        %1159 = vmatprep.subr.bf16.mxu0 0
        %1160 = vmatpush1.bf16.xpose.msra.mxu0 0
        %1161 = vmatprep.subr.bf16.mxu0 0
        %1162 = vmatpush1.bf16.xpose.msra.mxu0 0
        %1163 = vmatprep.subr.bf16.mxu0 0
        %1164 = vmatpush1.bf16.xpose.msra.mxu0 0
        %1165 = vmatprep.subr.bf16.mxu0 0
        %1166 = vmatpush1.bf16.xpose.msra.mxu0 0
        %1167 = vmatprep.mubr.bf16.mxu0 0
        %1168 = vmatmul.mubr.bf16.gmra.mrb[0].mxu0 %v1130
        %v1169 = vpop.f32.mrb[0].mxu0
        %v1170 = vadd.f32 0.0, %v1169
        %v1171 = vpop.f32.mrb[0].mxu0
        %v1172 = vpop.f32.mrb[0].mxu0
        %v1173 = vpop.f32.mrb[0].mxu0
        %1174 = vdwg.mxu0
        %v1175 = vsel %vm1081, 1, 0
        %vm1176 = vcmp.eq.s32.totalorder %v1175, 1
        %v1177 = vsel %vm1176, %v1124, -1e+30
        %v1178 = vsel %vm1176, %v1170, -1e+30
        %vm1179 = vcmask 64512
        %v1180 = vsel %vm1179, %v1177, -inf
        %1181 = vmax.xlane.f32.xlu0 %v1180
        %v1182 = vpop.xlane.xlu0 %1181
        %v1183 = vsel %vm1179, %v1178, -inf
        %1184 = vmax.xlane.f32.xlu0 %v1183
        %v1185 = vpop.xlane.xlu0 %1184
        %v1186 = vsub.f32 %v1177, %v1182
        %v1187 = vsub.f32 %v1178, %v1185
        %v1188 = vmul.f32 %v1186, 1.442695
        %v1189 = vpow.pop %v1188
        %v1190 = vmul.f32 %v1187, 1.442695
        %v1191 = vpow.pop %v1190
        %v1192 = vsel %vm1179, %v1189, 0.0
        %1193 = vadd.xlane.f32.xlu0 %v1192
        %v1194 = vpop.xlane.xlu0 %1193
        %v1195 = vsel %vm1179, %v1191, 0.0
        %1196 = vadd.xlane.f32.xlu0 %v1195
        %v1197 = vpop.xlane.xlu0 %1196
        %v1198 = vrcp.pop %v1194
        %v1199 = vrcp.pop %v1197
        %v1200 = vmul.f32 %v1189, %v1198
        %v1201 = vmul.f32 %v1191, %v1199
        %v1202 = vadd.f32 %v1200, 0.0
        %v1203 = vadd.f32 %v1201, 0.0
        %v1204 = vpack.c.bf16 %v1200, %v1200
        %v1205 = vpack.c.bf16 %v1201, %v1201
        %v1207 = vsel %vm1179, %v1204, 0
        %vm1209 = vcmask 1043456
        %v1211 = vsel %vm1209, %v1077, 0
        %1213 = vmatprep.subr.bf16.mxu0 0
        %1214 = vmatpush1.bf16.msra.mxu0 %v1211
        %1215 = vmatprep.subr.bf16.mxu0 0
        %1216 = vmatpush1.bf16.msra.mxu0 0
        %1217 = vmatprep.subr.bf16.mxu0 0
        %1218 = vmatpush1.bf16.msra.mxu0 0
        %1219 = vmatprep.subr.bf16.mxu0 0
        %1220 = vmatpush1.bf16.msra.mxu0 0
        %1221 = vmatprep.subr.bf16.mxu0 0
        %1222 = vmatpush1.bf16.msra.mxu0 0
        %1223 = vmatprep.subr.bf16.mxu0 0
        %1224 = vmatpush1.bf16.msra.mxu0 0
        %1225 = vmatprep.subr.bf16.mxu0 0
        %1226 = vmatpush1.bf16.msra.mxu0 0
        %1227 = vmatprep.subr.bf16.mxu0 0
        %1228 = vmatpush1.bf16.msra.mxu0 0
        %1229 = vmatprep.subr.bf16.mxu0 0
        %1230 = vmatpush1.bf16.msra.mxu0 0
        %1231 = vmatprep.subr.bf16.mxu0 0
        %1232 = vmatpush1.bf16.msra.mxu0 0
        %1233 = vmatprep.subr.bf16.mxu0 0
        %1234 = vmatpush1.bf16.msra.mxu0 0
        %1235 = vmatprep.subr.bf16.mxu0 0
        %1236 = vmatpush1.bf16.msra.mxu0 0
        %1237 = vmatprep.subr.bf16.mxu0 0
        %1238 = vmatpush1.bf16.msra.mxu0 0
        %1239 = vmatprep.subr.bf16.mxu0 0
        %1240 = vmatpush1.bf16.msra.mxu0 0
        %1241 = vmatprep.subr.bf16.mxu0 0
        %1242 = vmatpush1.bf16.msra.mxu0 0
        %1243 = vmatprep.subr.bf16.mxu0 0
        %1244 = vmatpush1.bf16.msra.mxu0 0
        %1245 = vmatprep.mubr.bf16.mxu0 0
        %1246 = vmatmul.mubr.bf16.gmra.mrb[0].mxu0 %v1207
        %v1247 = vpop.f32.mrb[0].mxu0
        %v1248 = vadd.f32 0.0, %v1247
        %v1249 = vpop.f32.mrb[0].mxu0
        %v1250 = vpop.f32.mrb[0].mxu0
        %v1251 = vpop.f32.mrb[0].mxu0
        %1252 = vdwg.mxu0
        %v1254 = vsel %vm1179, %v1205, 0
        %v1257 = vsel %vm1209, %v1078, 0
        %1259 = vmatprep.subr.bf16.mxu0 0
        %1260 = vmatpush1.bf16.msra.mxu0 %v1257
        %1261 = vmatprep.subr.bf16.mxu0 0
        %1262 = vmatpush1.bf16.msra.mxu0 0
        %1263 = vmatprep.subr.bf16.mxu0 0
        %1264 = vmatpush1.bf16.msra.mxu0 0
        %1265 = vmatprep.subr.bf16.mxu0 0
        %1266 = vmatpush1.bf16.msra.mxu0 0
        %1267 = vmatprep.subr.bf16.mxu0 0
        %1268 = vmatpush1.bf16.msra.mxu0 0
        %1269 = vmatprep.subr.bf16.mxu0 0
        %1270 = vmatpush1.bf16.msra.mxu0 0
        %1271 = vmatprep.subr.bf16.mxu0 0
        %1272 = vmatpush1.bf16.msra.mxu0 0
        %1273 = vmatprep.subr.bf16.mxu0 0
        %1274 = vmatpush1.bf16.msra.mxu0 0
        %1275 = vmatprep.subr.bf16.mxu0 0
        %1276 = vmatpush1.bf16.msra.mxu0 0
        %1277 = vmatprep.subr.bf16.mxu0 0
        %1278 = vmatpush1.bf16.msra.mxu0 0
        %1279 = vmatprep.subr.bf16.mxu0 0
        %1280 = vmatpush1.bf16.msra.mxu0 0
        %1281 = vmatprep.subr.bf16.mxu0 0
        %1282 = vmatpush1.bf16.msra.mxu0 0
        %1283 = vmatprep.subr.bf16.mxu0 0
        %1284 = vmatpush1.bf16.msra.mxu0 0
        %1285 = vmatprep.subr.bf16.mxu0 0
        %1286 = vmatpush1.bf16.msra.mxu0 0
        %1287 = vmatprep.subr.bf16.mxu0 0
        %1288 = vmatpush1.bf16.msra.mxu0 0
        %1289 = vmatprep.subr.bf16.mxu0 0
        %1290 = vmatpush1.bf16.msra.mxu0 0
        %1291 = vmatprep.mubr.bf16.mxu0 0
        %1292 = vmatmul.mubr.bf16.gmra.mrb[0].mxu0 %v1254
        %v1293 = vpop.f32.mrb[0].mxu0
        %v1294 = vadd.f32 0.0, %v1293
        %v1295 = vpop.f32.mrb[0].mxu0
        %v1296 = vpop.f32.mrb[0].mxu0
        %v1297 = vpop.f32.mrb[0].mxu0
        %1298 = vdwg.mxu0
        %1299 = vst.msk [vmem:[#allocation2] sm:$0xff] %vm1082, %v1248
        %1300 = vst.msk [vmem:[#allocation2 + $0x8] sm:$0xff] %vm1082, %v1294
        %1301 = vrot.lane.b32.xlu0 %v1065, 96
        %v1302 = vpop.permute.xlu0 %1301
        %1303 = vrot.lane.b32.xlu0 %v1071, 96
        %v1304 = vpop.permute.xlu0 %1303
        %v1306 = vsel %vm1082, %v1302, 0
        %v1309 = vsel %vm1082, %v1304, 0
        %1311 = vmatprep.subr.bf16.mxu0 0
        %1312 = vmatpush1.bf16.xpose.msra.mxu0 %v1309
        %1313 = vmatprep.subr.bf16.mxu0 0
        %1314 = vmatpush1.bf16.xpose.msra.mxu0 0
        %1315 = vmatprep.subr.bf16.mxu0 0
        %1316 = vmatpush1.bf16.xpose.msra.mxu0 0
        %1317 = vmatprep.subr.bf16.mxu0 0
        %1318 = vmatpush1.bf16.xpose.msra.mxu0 0
        %1319 = vmatprep.subr.bf16.mxu0 0
        %1320 = vmatpush1.bf16.xpose.msra.mxu0 0
        %1321 = vmatprep.subr.bf16.mxu0 0
        %1322 = vmatpush1.bf16.xpose.msra.mxu0 0
        %1323 = vmatprep.subr.bf16.mxu0 0
        %1324 = vmatpush1.bf16.xpose.msra.mxu0 0
        %1325 = vmatprep.subr.bf16.mxu0 0
        %1326 = vmatpush1.bf16.xpose.msra.mxu0 0
        %1327 = vmatprep.subr.bf16.mxu0 0
        %1328 = vmatpush1.bf16.xpose.msra.mxu0 0
        %1329 = vmatprep.subr.bf16.mxu0 0
        %1330 = vmatpush1.bf16.xpose.msra.mxu0 0
        %1331 = vmatprep.subr.bf16.mxu0 0
        %1332 = vmatpush1.bf16.xpose.msra.mxu0 0
        %1333 = vmatprep.subr.bf16.mxu0 0
        %1334 = vmatpush1.bf16.xpose.msra.mxu0 0
        %1335 = vmatprep.subr.bf16.mxu0 0
        %1336 = vmatpush1.bf16.xpose.msra.mxu0 0
        %1337 = vmatprep.subr.bf16.mxu0 0
        %1338 = vmatpush1.bf16.xpose.msra.mxu0 0
        %1339 = vmatprep.subr.bf16.mxu0 0
        %1340 = vmatpush1.bf16.xpose.msra.mxu0 0
        %1341 = vmatprep.subr.bf16.mxu0 0
        %1342 = vmatpush1.bf16.xpose.msra.mxu0 0
        %1343 = vmatprep.mubr.bf16.mxu0 0
        %1344 = vmatmul.mubr.bf16.gmra.mrb[0].mxu0 %v1306
        %v1345 = vpop.f32.mrb[0].mxu0
        %v1346 = vadd.f32 0.0, %v1345
        %v1347 = vpop.f32.mrb[0].mxu0
        %v1348 = vpop.f32.mrb[0].mxu0
        %v1349 = vpop.f32.mrb[0].mxu0
        %1350 = vdwg.mxu0
        %1351 = vrot.lane.b32.xlu0 %v1066, 96
        %v1352 = vpop.permute.xlu0 %1351
        %1353 = vrot.lane.b32.xlu0 %v1072, 96
        %v1354 = vpop.permute.xlu0 %1353
        %v1356 = vsel %vm1082, %v1352, 0
        %v1359 = vsel %vm1082, %v1354, 0
        %1361 = vmatprep.subr.bf16.mxu0 0
        %1362 = vmatpush1.bf16.xpose.msra.mxu0 %v1359
        %1363 = vmatprep.subr.bf16.mxu0 0
        %1364 = vmatpush1.bf16.xpose.msra.mxu0 0
        %1365 = vmatprep.subr.bf16.mxu0 0
        %1366 = vmatpush1.bf16.xpose.msra.mxu0 0
        %1367 = vmatprep.subr.bf16.mxu0 0
        %1368 = vmatpush1.bf16.xpose.msra.mxu0 0
        %1369 = vmatprep.subr.bf16.mxu0 0
        %1370 = vmatpush1.bf16.xpose.msra.mxu0 0
        %1371 = vmatprep.subr.bf16.mxu0 0
        %1372 = vmatpush1.bf16.xpose.msra.mxu0 0
        %1373 = vmatprep.subr.bf16.mxu0 0
        %1374 = vmatpush1.bf16.xpose.msra.mxu0 0
        %1375 = vmatprep.subr.bf16.mxu0 0
        %1376 = vmatpush1.bf16.xpose.msra.mxu0 0
        %1377 = vmatprep.subr.bf16.mxu0 0
        %1378 = vmatpush1.bf16.xpose.msra.mxu0 0
        %1379 = vmatprep.subr.bf16.mxu0 0
        %1380 = vmatpush1.bf16.xpose.msra.mxu0 0
        %1381 = vmatprep.subr.bf16.mxu0 0
        %1382 = vmatpush1.bf16.xpose.msra.mxu0 0
        %1383 = vmatprep.subr.bf16.mxu0 0
        %1384 = vmatpush1.bf16.xpose.msra.mxu0 0
        %1385 = vmatprep.subr.bf16.mxu0 0
        %1386 = vmatpush1.bf16.xpose.msra.mxu0 0
        %1387 = vmatprep.subr.bf16.mxu0 0
        %1388 = vmatpush1.bf16.xpose.msra.mxu0 0
        %1389 = vmatprep.subr.bf16.mxu0 0
        %1390 = vmatpush1.bf16.xpose.msra.mxu0 0
        %1391 = vmatprep.subr.bf16.mxu0 0
        %1392 = vmatpush1.bf16.xpose.msra.mxu0 0
        %1393 = vmatprep.mubr.bf16.mxu0 0
        %1394 = vmatmul.mubr.bf16.gmra.mrb[0].mxu0 %v1356
        %v1395 = vpop.f32.mrb[0].mxu0
        %v1396 = vadd.f32 0.0, %v1395
        %v1397 = vpop.f32.mrb[0].mxu0
        %v1398 = vpop.f32.mrb[0].mxu0
        %v1399 = vpop.f32.mrb[0].mxu0
        %1400 = vdwg.mxu0
        %v1401 = vsel %vm1176, %v1346, -1e+30
        %v1402 = vsel %vm1176, %v1396, -1e+30
        %v1403 = vsel %vm1179, %v1401, -inf
        %1404 = vmax.xlane.f32.xlu0 %v1403
        %v1405 = vpop.xlane.xlu0 %1404
        %v1406 = vsel %vm1179, %v1402, -inf
        %1407 = vmax.xlane.f32.xlu0 %v1406
        %v1408 = vpop.xlane.xlu0 %1407
        %v1409 = vsub.f32 %v1401, %v1405
        %v1410 = vsub.f32 %v1402, %v1408
        %v1411 = vmul.f32 %v1409, 1.442695
        %v1412 = vpow.pop %v1411
        %v1413 = vmul.f32 %v1410, 1.442695
        %v1414 = vpow.pop %v1413
        %v1415 = vsel %vm1179, %v1412, 0.0
        %1416 = vadd.xlane.f32.xlu0 %v1415
        %v1417 = vpop.xlane.xlu0 %1416
        %v1418 = vsel %vm1179, %v1414, 0.0
        %1419 = vadd.xlane.f32.xlu0 %v1418
        %v1420 = vpop.xlane.xlu0 %1419
        %v1421 = vrcp.pop %v1417
        %v1422 = vrcp.pop %v1420
        %v1423 = vmul.f32 %v1412, %v1421
        %v1424 = vmul.f32 %v1414, %v1422
        %v1425 = vadd.f32 %v1202, %v1423
        %v1426 = vadd.f32 %v1203, %v1424
        %v1427 = vpack.c.bf16 %v1423, %v1423
        %v1428 = vpack.c.bf16 %v1424, %v1424
        %1429 = vrot.lane.b32.xlu0 %v1077, 96
        %v1430 = vpop.permute.xlu0 %1429
        %v1432 = vsel %vm1179, %v1427, 0
        %v1435 = vsel %vm1209, %v1430, 0
        %1437 = vmatprep.subr.bf16.mxu0 0
        %1438 = vmatpush1.bf16.msra.mxu0 %v1435
        %1439 = vmatprep.subr.bf16.mxu0 0
        %1440 = vmatpush1.bf16.msra.mxu0 0
        %1441 = vmatprep.subr.bf16.mxu0 0
        %1442 = vmatpush1.bf16.msra.mxu0 0
        %1443 = vmatprep.subr.bf16.mxu0 0
        %1444 = vmatpush1.bf16.msra.mxu0 0
        %1445 = vmatprep.subr.bf16.mxu0 0
        %1446 = vmatpush1.bf16.msra.mxu0 0
        %1447 = vmatprep.subr.bf16.mxu0 0
        %1448 = vmatpush1.bf16.msra.mxu0 0
        %1449 = vmatprep.subr.bf16.mxu0 0
        %1450 = vmatpush1.bf16.msra.mxu0 0
        %1451 = vmatprep.subr.bf16.mxu0 0
        %1452 = vmatpush1.bf16.msra.mxu0 0
        %1453 = vmatprep.subr.bf16.mxu0 0
        %1454 = vmatpush1.bf16.msra.mxu0 0
        %1455 = vmatprep.subr.bf16.mxu0 0
        %1456 = vmatpush1.bf16.msra.mxu0 0
        %1457 = vmatprep.subr.bf16.mxu0 0
        %1458 = vmatpush1.bf16.msra.mxu0 0
        %1459 = vmatprep.subr.bf16.mxu0 0
        %1460 = vmatpush1.bf16.msra.mxu0 0
        %1461 = vmatprep.subr.bf16.mxu0 0
        %1462 = vmatpush1.bf16.msra.mxu0 0
        %1463 = vmatprep.subr.bf16.mxu0 0
        %1464 = vmatpush1.bf16.msra.mxu0 0
        %1465 = vmatprep.subr.bf16.mxu0 0
        %1466 = vmatpush1.bf16.msra.mxu0 0
        %1467 = vmatprep.subr.bf16.mxu0 0
        %1468 = vmatpush1.bf16.msra.mxu0 0
        %1469 = vmatprep.mubr.bf16.mxu0 0
        %1470 = vmatmul.mubr.bf16.gmra.mrb[0].mxu0 %v1432
        %v1471 = vpop.f32.mrb[0].mxu0
        %v1472 = vadd.f32 0.0, %v1471
        %v1473 = vpop.f32.mrb[0].mxu0
        %v1474 = vpop.f32.mrb[0].mxu0
        %v1475 = vpop.f32.mrb[0].mxu0
        %1476 = vdwg.mxu0
        %1477 = vrot.lane.b32.xlu0 %v1078, 96
        %v1478 = vpop.permute.xlu0 %1477
        %v1480 = vsel %vm1179, %v1428, 0
        %v1483 = vsel %vm1209, %v1478, 0
        %1485 = vmatprep.subr.bf16.mxu0 0
        %1486 = vmatpush1.bf16.msra.mxu0 %v1483
        %1487 = vmatprep.subr.bf16.mxu0 0
        %1488 = vmatpush1.bf16.msra.mxu0 0
        %1489 = vmatprep.subr.bf16.mxu0 0
        %1490 = vmatpush1.bf16.msra.mxu0 0
        %1491 = vmatprep.subr.bf16.mxu0 0
        %1492 = vmatpush1.bf16.msra.mxu0 0
        %1493 = vmatprep.subr.bf16.mxu0 0
        %1494 = vmatpush1.bf16.msra.mxu0 0
        %1495 = vmatprep.subr.bf16.mxu0 0
        %1496 = vmatpush1.bf16.msra.mxu0 0
        %1497 = vmatprep.subr.bf16.mxu0 0
        %1498 = vmatpush1.bf16.msra.mxu0 0
        %1499 = vmatprep.subr.bf16.mxu0 0
        %1500 = vmatpush1.bf16.msra.mxu0 0
        %1501 = vmatprep.subr.bf16.mxu0 0
        %1502 = vmatpush1.bf16.msra.mxu0 0
        %1503 = vmatprep.subr.bf16.mxu0 0
        %1504 = vmatpush1.bf16.msra.mxu0 0
        %1505 = vmatprep.subr.bf16.mxu0 0
        %1506 = vmatpush1.bf16.msra.mxu0 0
        %1507 = vmatprep.subr.bf16.mxu0 0
        %1508 = vmatpush1.bf16.msra.mxu0 0
        %1509 = vmatprep.subr.bf16.mxu0 0
        %1510 = vmatpush1.bf16.msra.mxu0 0
        %1511 = vmatprep.subr.bf16.mxu0 0
        %1512 = vmatpush1.bf16.msra.mxu0 0
        %1513 = vmatprep.subr.bf16.mxu0 0
        %1514 = vmatpush1.bf16.msra.mxu0 0
        %1515 = vmatprep.subr.bf16.mxu0 0
        %1516 = vmatpush1.bf16.msra.mxu0 0
        %1517 = vmatprep.mubr.bf16.mxu0 0
        %1518 = vmatmul.mubr.bf16.gmra.mrb[0].mxu0 %v1480
        %v1519 = vpop.f32.mrb[0].mxu0
        %v1520 = vadd.f32 0.0, %v1519
        %v1521 = vpop.f32.mrb[0].mxu0
        %v1522 = vpop.f32.mrb[0].mxu0
        %v1523 = vpop.f32.mrb[0].mxu0
        %1524 = vdwg.mxu0
        %1527 = vrot.lane.b32.xlu0 %v1472, 32
        %v1528 = vpop.permute.xlu0 %1527
        %1529 = vrot.lane.b32.xlu0 %v1520, 32
        %v1530 = vpop.permute.xlu0 %1529
        %vm1533 = vcmask 523520
        %1534 = vst.msk [vmem:[#allocation2] sm:$0xff] %vm1533, %v1528
        %1535 = vst.msk [vmem:[#allocation2 + $0x8] sm:$0xff] %vm1533, %v1530
        %1536 = vrot.lane.b32.xlu0 %v1065, 64
        %v1537 = vpop.permute.xlu0 %1536
        %1538 = vrot.lane.b32.xlu0 %v1071, 64
        %v1539 = vpop.permute.xlu0 %1538
        %v1541 = vsel %vm1082, %v1537, 0
        %v1544 = vsel %vm1082, %v1539, 0
        %1546 = vmatprep.subr.bf16.mxu0 0
        %1547 = vmatpush1.bf16.xpose.msra.mxu0 %v1544
        %1548 = vmatprep.subr.bf16.mxu0 0
        %1549 = vmatpush1.bf16.xpose.msra.mxu0 0
        %1550 = vmatprep.subr.bf16.mxu0 0
        %1551 = vmatpush1.bf16.xpose.msra.mxu0 0
        %1552 = vmatprep.subr.bf16.mxu0 0
        %1553 = vmatpush1.bf16.xpose.msra.mxu0 0
        %1554 = vmatprep.subr.bf16.mxu0 0
        %1555 = vmatpush1.bf16.xpose.msra.mxu0 0
        %1556 = vmatprep.subr.bf16.mxu0 0
        %1557 = vmatpush1.bf16.xpose.msra.mxu0 0
        %1558 = vmatprep.subr.bf16.mxu0 0
        %1559 = vmatpush1.bf16.xpose.msra.mxu0 0
        %1560 = vmatprep.subr.bf16.mxu0 0
        %1561 = vmatpush1.bf16.xpose.msra.mxu0 0
        %1562 = vmatprep.subr.bf16.mxu0 0
        %1563 = vmatpush1.bf16.xpose.msra.mxu0 0
        %1564 = vmatprep.subr.bf16.mxu0 0
        %1565 = vmatpush1.bf16.xpose.msra.mxu0 0
        %1566 = vmatprep.subr.bf16.mxu0 0
        %1567 = vmatpush1.bf16.xpose.msra.mxu0 0
        %1568 = vmatprep.subr.bf16.mxu0 0
        %1569 = vmatpush1.bf16.xpose.msra.mxu0 0
        %1570 = vmatprep.subr.bf16.mxu0 0
        %1571 = vmatpush1.bf16.xpose.msra.mxu0 0
        %1572 = vmatprep.subr.bf16.mxu0 0
        %1573 = vmatpush1.bf16.xpose.msra.mxu0 0
        %1574 = vmatprep.subr.bf16.mxu0 0
        %1575 = vmatpush1.bf16.xpose.msra.mxu0 0
        %1576 = vmatprep.subr.bf16.mxu0 0
        %1577 = vmatpush1.bf16.xpose.msra.mxu0 0
        %1578 = vmatprep.mubr.bf16.mxu0 0
        %1579 = vmatmul.mubr.bf16.gmra.mrb[0].mxu0 %v1541
        %v1580 = vpop.f32.mrb[0].mxu0
        %v1581 = vadd.f32 0.0, %v1580
        %v1582 = vpop.f32.mrb[0].mxu0
        %v1583 = vpop.f32.mrb[0].mxu0
        %v1584 = vpop.f32.mrb[0].mxu0
        %1585 = vdwg.mxu0
        %1586 = vrot.lane.b32.xlu0 %v1066, 64
        %v1587 = vpop.permute.xlu0 %1586
        %1588 = vrot.lane.b32.xlu0 %v1072, 64
        %v1589 = vpop.permute.xlu0 %1588
        %v1591 = vsel %vm1082, %v1587, 0
        %v1594 = vsel %vm1082, %v1589, 0
        %1596 = vmatprep.subr.bf16.mxu0 0
        %1597 = vmatpush1.bf16.xpose.msra.mxu0 %v1594
        %1598 = vmatprep.subr.bf16.mxu0 0
        %1599 = vmatpush1.bf16.xpose.msra.mxu0 0
        %1600 = vmatprep.subr.bf16.mxu0 0
        %1601 = vmatpush1.bf16.xpose.msra.mxu0 0
        %1602 = vmatprep.subr.bf16.mxu0 0
        %1603 = vmatpush1.bf16.xpose.msra.mxu0 0
        %1604 = vmatprep.subr.bf16.mxu0 0
        %1605 = vmatpush1.bf16.xpose.msra.mxu0 0
        %1606 = vmatprep.subr.bf16.mxu0 0
        %1607 = vmatpush1.bf16.xpose.msra.mxu0 0
        %1608 = vmatprep.subr.bf16.mxu0 0
        %1609 = vmatpush1.bf16.xpose.msra.mxu0 0
        %1610 = vmatprep.subr.bf16.mxu0 0
        %1611 = vmatpush1.bf16.xpose.msra.mxu0 0
        %1612 = vmatprep.subr.bf16.mxu0 0
        %1613 = vmatpush1.bf16.xpose.msra.mxu0 0
        %1614 = vmatprep.subr.bf16.mxu0 0
        %1615 = vmatpush1.bf16.xpose.msra.mxu0 0
        %1616 = vmatprep.subr.bf16.mxu0 0
        %1617 = vmatpush1.bf16.xpose.msra.mxu0 0
        %1618 = vmatprep.subr.bf16.mxu0 0
        %1619 = vmatpush1.bf16.xpose.msra.mxu0 0
        %1620 = vmatprep.subr.bf16.mxu0 0
        %1621 = vmatpush1.bf16.xpose.msra.mxu0 0
        %1622 = vmatprep.subr.bf16.mxu0 0
        %1623 = vmatpush1.bf16.xpose.msra.mxu0 0
        %1624 = vmatprep.subr.bf16.mxu0 0
        %1625 = vmatpush1.bf16.xpose.msra.mxu0 0
        %1626 = vmatprep.subr.bf16.mxu0 0
        %1627 = vmatpush1.bf16.xpose.msra.mxu0 0
        %1628 = vmatprep.mubr.bf16.mxu0 0
        %1629 = vmatmul.mubr.bf16.gmra.mrb[0].mxu0 %v1591
        %v1630 = vpop.f32.mrb[0].mxu0
        %v1631 = vadd.f32 0.0, %v1630
        %v1632 = vpop.f32.mrb[0].mxu0
        %v1633 = vpop.f32.mrb[0].mxu0
        %v1634 = vpop.f32.mrb[0].mxu0
        %1635 = vdwg.mxu0
        %v1636 = vsel %vm1176, %v1581, -1e+30
        %v1637 = vsel %vm1176, %v1631, -1e+30
        %v1638 = vsel %vm1179, %v1636, -inf
        %1639 = vmax.xlane.f32.xlu0 %v1638
        %v1640 = vpop.xlane.xlu0 %1639
        %v1641 = vsel %vm1179, %v1637, -inf
        %1642 = vmax.xlane.f32.xlu0 %v1641
        %v1643 = vpop.xlane.xlu0 %1642
        %v1644 = vsub.f32 %v1636, %v1640
        %v1645 = vsub.f32 %v1637, %v1643
        %v1646 = vmul.f32 %v1644, 1.442695
        %v1647 = vpow.pop %v1646
        %v1648 = vmul.f32 %v1645, 1.442695
        %v1649 = vpow.pop %v1648
        %v1650 = vsel %vm1179, %v1647, 0.0
        %1651 = vadd.xlane.f32.xlu0 %v1650
        %v1652 = vpop.xlane.xlu0 %1651
        %v1653 = vsel %vm1179, %v1649, 0.0
        %1654 = vadd.xlane.f32.xlu0 %v1653
        %v1655 = vpop.xlane.xlu0 %1654
        %v1656 = vrcp.pop %v1652
        %v1657 = vrcp.pop %v1655
        %v1658 = vmul.f32 %v1647, %v1656
        %v1659 = vmul.f32 %v1649, %v1657
        %v1660 = vadd.f32 %v1425, %v1658
        %v1661 = vadd.f32 %v1426, %v1659
        %v1662 = vpack.c.bf16 %v1658, %v1658
        %v1663 = vpack.c.bf16 %v1659, %v1659
        %1664 = vrot.lane.b32.xlu0 %v1077, 64
        %v1665 = vpop.permute.xlu0 %1664
        %v1667 = vsel %vm1179, %v1662, 0
        %v1670 = vsel %vm1209, %v1665, 0
        %1672 = vmatprep.subr.bf16.mxu0 0
        %1673 = vmatpush1.bf16.msra.mxu0 %v1670
        %1674 = vmatprep.subr.bf16.mxu0 0
        %1675 = vmatpush1.bf16.msra.mxu0 0
        %1676 = vmatprep.subr.bf16.mxu0 0
        %1677 = vmatpush1.bf16.msra.mxu0 0
        %1678 = vmatprep.subr.bf16.mxu0 0
        %1679 = vmatpush1.bf16.msra.mxu0 0
        %1680 = vmatprep.subr.bf16.mxu0 0
        %1681 = vmatpush1.bf16.msra.mxu0 0
        %1682 = vmatprep.subr.bf16.mxu0 0
        %1683 = vmatpush1.bf16.msra.mxu0 0
        %1684 = vmatprep.subr.bf16.mxu0 0
        %1685 = vmatpush1.bf16.msra.mxu0 0
        %1686 = vmatprep.subr.bf16.mxu0 0
        %1687 = vmatpush1.bf16.msra.mxu0 0
        %1688 = vmatprep.subr.bf16.mxu0 0
        %1689 = vmatpush1.bf16.msra.mxu0 0
        %1690 = vmatprep.subr.bf16.mxu0 0
        %1691 = vmatpush1.bf16.msra.mxu0 0
        %1692 = vmatprep.subr.bf16.mxu0 0
        %1693 = vmatpush1.bf16.msra.mxu0 0
        %1694 = vmatprep.subr.bf16.mxu0 0
        %1695 = vmatpush1.bf16.msra.mxu0 0
        %1696 = vmatprep.subr.bf16.mxu0 0
        %1697 = vmatpush1.bf16.msra.mxu0 0
        %1698 = vmatprep.subr.bf16.mxu0 0
        %1699 = vmatpush1.bf16.msra.mxu0 0
        %1700 = vmatprep.subr.bf16.mxu0 0
        %1701 = vmatpush1.bf16.msra.mxu0 0
        %1702 = vmatprep.subr.bf16.mxu0 0
        %1703 = vmatpush1.bf16.msra.mxu0 0
        %1704 = vmatprep.mubr.bf16.mxu0 0
        %1705 = vmatmul.mubr.bf16.gmra.mrb[0].mxu0 %v1667
        %v1706 = vpop.f32.mrb[0].mxu0
        %v1707 = vadd.f32 0.0, %v1706
        %v1708 = vpop.f32.mrb[0].mxu0
        %v1709 = vpop.f32.mrb[0].mxu0
        %v1710 = vpop.f32.mrb[0].mxu0
        %1711 = vdwg.mxu0
        %1712 = vrot.lane.b32.xlu0 %v1078, 64
        %v1713 = vpop.permute.xlu0 %1712
        %v1715 = vsel %vm1179, %v1663, 0
        %v1718 = vsel %vm1209, %v1713, 0
        %1720 = vmatprep.subr.bf16.mxu0 0
        %1721 = vmatpush1.bf16.msra.mxu0 %v1718
        %1722 = vmatprep.subr.bf16.mxu0 0
        %1723 = vmatpush1.bf16.msra.mxu0 0
        %1724 = vmatprep.subr.bf16.mxu0 0
        %1725 = vmatpush1.bf16.msra.mxu0 0
        %1726 = vmatprep.subr.bf16.mxu0 0
        %1727 = vmatpush1.bf16.msra.mxu0 0
        %1728 = vmatprep.subr.bf16.mxu0 0
        %1729 = vmatpush1.bf16.msra.mxu0 0
        %1730 = vmatprep.subr.bf16.mxu0 0
        %1731 = vmatpush1.bf16.msra.mxu0 0
        %1732 = vmatprep.subr.bf16.mxu0 0
        %1733 = vmatpush1.bf16.msra.mxu0 0
        %1734 = vmatprep.subr.bf16.mxu0 0
        %1735 = vmatpush1.bf16.msra.mxu0 0
        %1736 = vmatprep.subr.bf16.mxu0 0
        %1737 = vmatpush1.bf16.msra.mxu0 0
        %1738 = vmatprep.subr.bf16.mxu0 0
        %1739 = vmatpush1.bf16.msra.mxu0 0
        %1740 = vmatprep.subr.bf16.mxu0 0
        %1741 = vmatpush1.bf16.msra.mxu0 0
        %1742 = vmatprep.subr.bf16.mxu0 0
        %1743 = vmatpush1.bf16.msra.mxu0 0
        %1744 = vmatprep.subr.bf16.mxu0 0
        %1745 = vmatpush1.bf16.msra.mxu0 0
        %1746 = vmatprep.subr.bf16.mxu0 0
        %1747 = vmatpush1.bf16.msra.mxu0 0
        %1748 = vmatprep.subr.bf16.mxu0 0
        %1749 = vmatpush1.bf16.msra.mxu0 0
        %1750 = vmatprep.subr.bf16.mxu0 0
        %1751 = vmatpush1.bf16.msra.mxu0 0
        %1752 = vmatprep.mubr.bf16.mxu0 0
        %1753 = vmatmul.mubr.bf16.gmra.mrb[0].mxu0 %v1715
        %v1754 = vpop.f32.mrb[0].mxu0
        %v1755 = vadd.f32 0.0, %v1754
        %v1756 = vpop.f32.mrb[0].mxu0
        %v1757 = vpop.f32.mrb[0].mxu0
        %v1758 = vpop.f32.mrb[0].mxu0
        %1759 = vdwg.mxu0
        %1762 = vrot.lane.b32.xlu0 %v1707, 64
        %v1763 = vpop.permute.xlu0 %1762
        %1764 = vrot.lane.b32.xlu0 %v1755, 64
        %v1765 = vpop.permute.xlu0 %1764
        %vm1768 = vcmask 785920
        %1769 = vst.msk [vmem:[#allocation2] sm:$0xff] %vm1768, %v1763
        %1770 = vst.msk [vmem:[#allocation2 + $0x8] sm:$0xff] %vm1768, %v1765
        %1771 = vrot.lane.b32.xlu0 %v1065, 32
        %v1772 = vpop.permute.xlu0 %1771
        %1773 = vrot.lane.b32.xlu0 %v1071, 32
        %v1774 = vpop.permute.xlu0 %1773
        %v1776 = vsel %vm1082, %v1772, 0
        %v1779 = vsel %vm1082, %v1774, 0
        %1781 = vmatprep.subr.bf16.mxu0 0
        %1782 = vmatpush1.bf16.xpose.msra.mxu0 %v1779
        %1783 = vmatprep.subr.bf16.mxu0 0
        %1784 = vmatpush1.bf16.xpose.msra.mxu0 0
        %1785 = vmatprep.subr.bf16.mxu0 0
        %1786 = vmatpush1.bf16.xpose.msra.mxu0 0
        %1787 = vmatprep.subr.bf16.mxu0 0
        %1788 = vmatpush1.bf16.xpose.msra.mxu0 0
        %1789 = vmatprep.subr.bf16.mxu0 0
        %1790 = vmatpush1.bf16.xpose.msra.mxu0 0
        %1791 = vmatprep.subr.bf16.mxu0 0
        %1792 = vmatpush1.bf16.xpose.msra.mxu0 0
        %1793 = vmatprep.subr.bf16.mxu0 0
        %1794 = vmatpush1.bf16.xpose.msra.mxu0 0
        %1795 = vmatprep.subr.bf16.mxu0 0
        %1796 = vmatpush1.bf16.xpose.msra.mxu0 0
        %1797 = vmatprep.subr.bf16.mxu0 0
        %1798 = vmatpush1.bf16.xpose.msra.mxu0 0
        %1799 = vmatprep.subr.bf16.mxu0 0
        %1800 = vmatpush1.bf16.xpose.msra.mxu0 0
        %1801 = vmatprep.subr.bf16.mxu0 0
        %1802 = vmatpush1.bf16.xpose.msra.mxu0 0
        %1803 = vmatprep.subr.bf16.mxu0 0
        %1804 = vmatpush1.bf16.xpose.msra.mxu0 0
        %1805 = vmatprep.subr.bf16.mxu0 0
        %1806 = vmatpush1.bf16.xpose.msra.mxu0 0
        %1807 = vmatprep.subr.bf16.mxu0 0
        %1808 = vmatpush1.bf16.xpose.msra.mxu0 0
        %1809 = vmatprep.subr.bf16.mxu0 0
        %1810 = vmatpush1.bf16.xpose.msra.mxu0 0
        %1811 = vmatprep.subr.bf16.mxu0 0
        %1812 = vmatpush1.bf16.xpose.msra.mxu0 0
        %1813 = vmatprep.mubr.bf16.mxu0 0
        %1814 = vmatmul.mubr.bf16.gmra.mrb[0].mxu0 %v1776
        %v1815 = vpop.f32.mrb[0].mxu0
        %v1816 = vadd.f32 0.0, %v1815
        %v1817 = vpop.f32.mrb[0].mxu0
        %v1818 = vpop.f32.mrb[0].mxu0
        %v1819 = vpop.f32.mrb[0].mxu0
        %1820 = vdwg.mxu0
        %1821 = vrot.lane.b32.xlu0 %v1066, 32
        %v1822 = vpop.permute.xlu0 %1821
        %1823 = vrot.lane.b32.xlu0 %v1072, 32
        %v1824 = vpop.permute.xlu0 %1823
        %v1826 = vsel %vm1082, %v1822, 0
        %v1829 = vsel %vm1082, %v1824, 0
        %1831 = vmatprep.subr.bf16.mxu0 0
        %1832 = vmatpush1.bf16.xpose.msra.mxu0 %v1829
        %1833 = vmatprep.subr.bf16.mxu0 0
        %1834 = vmatpush1.bf16.xpose.msra.mxu0 0
        %1835 = vmatprep.subr.bf16.mxu0 0
        %1836 = vmatpush1.bf16.xpose.msra.mxu0 0
        %1837 = vmatprep.subr.bf16.mxu0 0
        %1838 = vmatpush1.bf16.xpose.msra.mxu0 0
        %1839 = vmatprep.subr.bf16.mxu0 0
        %1840 = vmatpush1.bf16.xpose.msra.mxu0 0
        %1841 = vmatprep.subr.bf16.mxu0 0
        %1842 = vmatpush1.bf16.xpose.msra.mxu0 0
        %1843 = vmatprep.subr.bf16.mxu0 0
        %1844 = vmatpush1.bf16.xpose.msra.mxu0 0
        %1845 = vmatprep.subr.bf16.mxu0 0
        %1846 = vmatpush1.bf16.xpose.msra.mxu0 0
        %1847 = vmatprep.subr.bf16.mxu0 0
        %1848 = vmatpush1.bf16.xpose.msra.mxu0 0
        %1849 = vmatprep.subr.bf16.mxu0 0
        %1850 = vmatpush1.bf16.xpose.msra.mxu0 0
        %1851 = vmatprep.subr.bf16.mxu0 0
        %1852 = vmatpush1.bf16.xpose.msra.mxu0 0
        %1853 = vmatprep.subr.bf16.mxu0 0
        %1854 = vmatpush1.bf16.xpose.msra.mxu0 0
        %1855 = vmatprep.subr.bf16.mxu0 0
        %1856 = vmatpush1.bf16.xpose.msra.mxu0 0
        %1857 = vmatprep.subr.bf16.mxu0 0
        %1858 = vmatpush1.bf16.xpose.msra.mxu0 0
        %1859 = vmatprep.subr.bf16.mxu0 0
        %1860 = vmatpush1.bf16.xpose.msra.mxu0 0
        %1861 = vmatprep.subr.bf16.mxu0 0
        %1862 = vmatpush1.bf16.xpose.msra.mxu0 0
        %1863 = vmatprep.mubr.bf16.mxu0 0
        %1864 = vmatmul.mubr.bf16.gmra.mrb[0].mxu0 %v1826
        %v1865 = vpop.f32.mrb[0].mxu0
        %v1866 = vadd.f32 0.0, %v1865
        %v1867 = vpop.f32.mrb[0].mxu0
        %v1868 = vpop.f32.mrb[0].mxu0
        %v1869 = vpop.f32.mrb[0].mxu0
        %1870 = vdwg.mxu0
        %v1871 = vsel %vm1176, %v1816, -1e+30
        %v1872 = vsel %vm1176, %v1866, -1e+30
        %v1873 = vsel %vm1179, %v1871, -inf
        %1874 = vmax.xlane.f32.xlu0 %v1873
        %v1875 = vpop.xlane.xlu0 %1874
        %v1876 = vsel %vm1179, %v1872, -inf
        %1877 = vmax.xlane.f32.xlu0 %v1876
        %v1878 = vpop.xlane.xlu0 %1877
        %v1879 = vsub.f32 %v1871, %v1875
        %v1880 = vsub.f32 %v1872, %v1878
        %v1881 = vmul.f32 %v1879, 1.442695
        %v1882 = vpow.pop %v1881
        %v1883 = vmul.f32 %v1880, 1.442695
        %v1884 = vpow.pop %v1883
        %v1885 = vsel %vm1179, %v1882, 0.0
        %1886 = vadd.xlane.f32.xlu0 %v1885
        %v1887 = vpop.xlane.xlu0 %1886
        %v1888 = vsel %vm1179, %v1884, 0.0
        %1889 = vadd.xlane.f32.xlu0 %v1888
        %v1890 = vpop.xlane.xlu0 %1889
        %v1891 = vrcp.pop %v1887
        %v1892 = vrcp.pop %v1890
        %v1893 = vmul.f32 %v1882, %v1891
        %v1894 = vmul.f32 %v1884, %v1892
        %v1895 = vadd.f32 %v1660, %v1893
        %v1896 = vadd.f32 %v1661, %v1894
        %v1897 = vpack.c.bf16 %v1893, %v1893
        %v1898 = vpack.c.bf16 %v1894, %v1894
        %1899 = vrot.lane.b32.xlu0 %v1077, 32
        %v1900 = vpop.permute.xlu0 %1899
        %v1902 = vsel %vm1179, %v1897, 0
        %v1905 = vsel %vm1209, %v1900, 0
        %1907 = vmatprep.subr.bf16.mxu0 0
        %1908 = vmatpush1.bf16.msra.mxu0 %v1905
        %1909 = vmatprep.subr.bf16.mxu0 0
        %1910 = vmatpush1.bf16.msra.mxu0 0
        %1911 = vmatprep.subr.bf16.mxu0 0
        %1912 = vmatpush1.bf16.msra.mxu0 0
        %1913 = vmatprep.subr.bf16.mxu0 0
        %1914 = vmatpush1.bf16.msra.mxu0 0
        %1915 = vmatprep.subr.bf16.mxu0 0
        %1916 = vmatpush1.bf16.msra.mxu0 0
        %1917 = vmatprep.subr.bf16.mxu0 0
        %1918 = vmatpush1.bf16.msra.mxu0 0
        %1919 = vmatprep.subr.bf16.mxu0 0
        %1920 = vmatpush1.bf16.msra.mxu0 0
        %1921 = vmatprep.subr.bf16.mxu0 0
        %1922 = vmatpush1.bf16.msra.mxu0 0
        %1923 = vmatprep.subr.bf16.mxu0 0
        %1924 = vmatpush1.bf16.msra.mxu0 0
        %1925 = vmatprep.subr.bf16.mxu0 0
        %1926 = vmatpush1.bf16.msra.mxu0 0
        %1927 = vmatprep.subr.bf16.mxu0 0
        %1928 = vmatpush1.bf16.msra.mxu0 0
        %1929 = vmatprep.subr.bf16.mxu0 0
        %1930 = vmatpush1.bf16.msra.mxu0 0
        %1931 = vmatprep.subr.bf16.mxu0 0
        %1932 = vmatpush1.bf16.msra.mxu0 0
        %1933 = vmatprep.subr.bf16.mxu0 0
        %1934 = vmatpush1.bf16.msra.mxu0 0
        %1935 = vmatprep.subr.bf16.mxu0 0
        %1936 = vmatpush1.bf16.msra.mxu0 0
        %1937 = vmatprep.subr.bf16.mxu0 0
        %1938 = vmatpush1.bf16.msra.mxu0 0
        %1939 = vmatprep.mubr.bf16.mxu0 0
        %1940 = vmatmul.mubr.bf16.gmra.mrb[0].mxu0 %v1902
        %v1941 = vpop.f32.mrb[0].mxu0
        %v1942 = vadd.f32 0.0, %v1941
        %v1943 = vpop.f32.mrb[0].mxu0
        %v1944 = vpop.f32.mrb[0].mxu0
        %v1945 = vpop.f32.mrb[0].mxu0
        %1946 = vdwg.mxu0
        %1947 = vrot.lane.b32.xlu0 %v1078, 32
        %v1948 = vpop.permute.xlu0 %1947
        %v1950 = vsel %vm1179, %v1898, 0
        %v1953 = vsel %vm1209, %v1948, 0
        %1955 = vmatprep.subr.bf16.mxu0 0
        %1956 = vmatpush1.bf16.msra.mxu0 %v1953
        %1957 = vmatprep.subr.bf16.mxu0 0
        %1958 = vmatpush1.bf16.msra.mxu0 0
        %1959 = vmatprep.subr.bf16.mxu0 0
        %1960 = vmatpush1.bf16.msra.mxu0 0
        %1961 = vmatprep.subr.bf16.mxu0 0
        %1962 = vmatpush1.bf16.msra.mxu0 0
        %1963 = vmatprep.subr.bf16.mxu0 0
        %1964 = vmatpush1.bf16.msra.mxu0 0
        %1965 = vmatprep.subr.bf16.mxu0 0
        %1966 = vmatpush1.bf16.msra.mxu0 0
        %1967 = vmatprep.subr.bf16.mxu0 0
        %1968 = vmatpush1.bf16.msra.mxu0 0
        %1969 = vmatprep.subr.bf16.mxu0 0
        %1970 = vmatpush1.bf16.msra.mxu0 0
        %1971 = vmatprep.subr.bf16.mxu0 0
        %1972 = vmatpush1.bf16.msra.mxu0 0
        %1973 = vmatprep.subr.bf16.mxu0 0
        %1974 = vmatpush1.bf16.msra.mxu0 0
        %1975 = vmatprep.subr.bf16.mxu0 0
        %1976 = vmatpush1.bf16.msra.mxu0 0
        %1977 = vmatprep.subr.bf16.mxu0 0
        %1978 = vmatpush1.bf16.msra.mxu0 0
        %1979 = vmatprep.subr.bf16.mxu0 0
        %1980 = vmatpush1.bf16.msra.mxu0 0
        %1981 = vmatprep.subr.bf16.mxu0 0
        %1982 = vmatpush1.bf16.msra.mxu0 0
        %1983 = vmatprep.subr.bf16.mxu0 0
        %1984 = vmatpush1.bf16.msra.mxu0 0
        %1985 = vmatprep.subr.bf16.mxu0 0
        %1986 = vmatpush1.bf16.msra.mxu0 0
        %1987 = vmatprep.mubr.bf16.mxu0 0
        %1988 = vmatmul.mubr.bf16.gmra.mrb[0].mxu0 %v1950
        %v1989 = vpop.f32.mrb[0].mxu0
        %v1990 = vadd.f32 0.0, %v1989
        %v1991 = vpop.f32.mrb[0].mxu0
        %v1992 = vpop.f32.mrb[0].mxu0
        %v1993 = vpop.f32.mrb[0].mxu0
        %1994 = vdwg.mxu0
        %1997 = vrot.lane.b32.xlu0 %v1942, 96
        %v1998 = vpop.permute.xlu0 %1997
        %1999 = vrot.lane.b32.xlu0 %v1990, 96
        %v2000 = vpop.permute.xlu0 %1999
        %vm2003 = vcmask 1048320
        %2004 = vst.msk [vmem:[#allocation2] sm:$0xff] %vm2003, %v1998
        %2005 = vst.msk [vmem:[#allocation2 + $0x8] sm:$0xff] %vm2003, %v2000
        %v2006 = vmul.f32 %v1895, 0.25
        %v2007 = vmul.f32 %v1896, 0.25
        %2008 = vst.msk [vmem:[%s743] sm:$0xff] %vm1179, %v2006
        %2009 = vst.msk [vmem:[%s743 + $0x8] sm:$0xff] %vm1179, %v2007
        %v2010 = vld [vmem:[#allocation2] sm:$0xff]
        %v2011 = vld [vmem:[#allocation2 + $0x8] sm:$0xff]
        %v2012 = vpack.c.bf16 %v2011, %v2010
        %v2013 = vld [vmem:[%s707] sm:$0xf]
        %v2014 = vld [vmem:[%s707 + $0x4] sm:$0xf]
        %v2015 = vld [vmem:[%s707 + $0x8] sm:$0xf]
        %v2016 = vld [vmem:[%s707 + $0xc] sm:$0xf]
        %v2017 = vld [vmem:[%s707 + $0x10] sm:$0xf]
        %v2018 = vld [vmem:[%s707 + $0x14] sm:$0xf]
        %v2019 = vld [vmem:[%s707 + $0x18] sm:$0xf]
        %v2020 = vld [vmem:[%s707 + $0x1c] sm:$0xf]
        %v2021 = vld [vmem:[%s707 + $0x20] sm:$0xf]
        %v2022 = vld [vmem:[%s707 + $0x24] sm:$0xf]
        %v2023 = vld [vmem:[%s707 + $0x28] sm:$0xf]
        %v2024 = vld [vmem:[%s707 + $0x2c] sm:$0xf]
        %v2025 = vld [vmem:[%s707 + $0x30] sm:$0xf]
        %v2026 = vld [vmem:[%s707 + $0x34] sm:$0xf]
        %v2027 = vld [vmem:[%s707 + $0x38] sm:$0xf]
        %v2028 = vld [vmem:[%s707 + $0x3c] sm:$0xf]
        %v2029 = vld [vmem:[%s710] sm:$0x1]
        %v2031 = vlaneseq
        %v2032 = vshrl.u32 %v2031, 7
        %v2033 = vsub.s32 0, %v2032
        %v2034 = vrot.slane %v2029, %v2033
        %v2052 = vunpack.c.l.b16 %v2013
        %v2053 = vunpack.c.l.b16 %v2014
        %v2054 = vunpack.c.l.b16 %v2015
        %v2055 = vunpack.c.l.b16 %v2016
        %v2056 = vunpack.c.l.b16 %v2017
        %v2057 = vunpack.c.l.b16 %v2018
        %v2058 = vunpack.c.l.b16 %v2019
        %v2059 = vunpack.c.l.b16 %v2020
        %v2060 = vunpack.c.l.b16 %v2021
        %v2061 = vunpack.c.l.b16 %v2022
        %v2062 = vunpack.c.l.b16 %v2023
        %v2063 = vunpack.c.l.b16 %v2024
        %v2064 = vunpack.c.l.b16 %v2025
        %v2065 = vunpack.c.l.b16 %v2026
        %v2066 = vunpack.c.l.b16 %v2027
        %v2067 = vunpack.c.l.b16 %v2028
        %v2068 = vpack.c.b16 %v2053, %v2052
        %v2069 = vpack.c.b16 %v2055, %v2054
        %v2070 = vpack.c.b16 %v2057, %v2056
        %v2071 = vpack.c.b16 %v2059, %v2058
        %v2072 = vpack.c.b16 %v2061, %v2060
        %v2073 = vpack.c.b16 %v2063, %v2062
        %v2074 = vpack.c.b16 %v2065, %v2064
        %v2075 = vpack.c.b16 %v2067, %v2066
        %2084 = vmatprep.subr.bf16.mxu0 0
        %2085 = vmatpush1.bf16.msra.mxu0 %v2068
        %2086 = vmatprep.subr.bf16.mxu0 0
        %2087 = vmatpush1.bf16.msra.mxu0 %v2069
        %2088 = vmatprep.subr.bf16.mxu0 0
        %2089 = vmatpush1.bf16.msra.mxu0 %v2070
        %2090 = vmatprep.subr.bf16.mxu0 0
        %2091 = vmatpush1.bf16.msra.mxu0 %v2071
        %2092 = vmatprep.subr.bf16.mxu0 0
        %2093 = vmatpush1.bf16.msra.mxu0 %v2072
        %2094 = vmatprep.subr.bf16.mxu0 0
        %2095 = vmatpush1.bf16.msra.mxu0 %v2073
        %2096 = vmatprep.subr.bf16.mxu0 0
        %2097 = vmatpush1.bf16.msra.mxu0 %v2074
        %2098 = vmatprep.subr.bf16.mxu0 0
        %2099 = vmatpush1.bf16.msra.mxu0 %v2075
        %2100 = vmatprep.subr.bf16.mxu0 0
        %2101 = vmatpush1.bf16.msra.mxu0 0
        %2102 = vmatprep.subr.bf16.mxu0 0
        %2103 = vmatpush1.bf16.msra.mxu0 0
        %2104 = vmatprep.subr.bf16.mxu0 0
        %2105 = vmatpush1.bf16.msra.mxu0 0
        %2106 = vmatprep.subr.bf16.mxu0 0
        %2107 = vmatpush1.bf16.msra.mxu0 0
        %2108 = vmatprep.subr.bf16.mxu0 0
        %2109 = vmatpush1.bf16.msra.mxu0 0
        %2110 = vmatprep.subr.bf16.mxu0 0
        %2111 = vmatpush1.bf16.msra.mxu0 0
        %2112 = vmatprep.subr.bf16.mxu0 0
        %2113 = vmatpush1.bf16.msra.mxu0 0
        %2114 = vmatprep.subr.bf16.mxu0 0
        %2115 = vmatpush1.bf16.msra.mxu0 0
        %2116 = vmatprep.mubr.bf16.mxu0 0
        %2117 = vmatmul.mubr.bf16.gmra.mrb[0].mxu0 %v2012
        %v2118 = vpop.f32.mrb[0].mxu0
        %v2119 = vadd.f32 %v2034, %v2118
        %v2120 = vpop.f32.mrb[0].mxu0
        %v2121 = vpop.f32.mrb[0].mxu0
        %v2122 = vadd.f32 %v2034, %v2121
        %v2123 = vpop.f32.mrb[0].mxu0
        %2124 = vdwg.mxu0
        %v2125 = vadd.f32 %v754, %v2119
        %v2126 = vadd.f32 %v755, %v2122
        %v2127 = vld [vmem:[%s713] sm:$0x1]
        %v2128 = vld [vmem:[%s716] sm:$0x1]
        %2129 = vadd.xlane.f32.xlu0 %v2125
        %v2130 = vpop.xlane.xlu0 %2129
        %2131 = vadd.xlane.f32.xlu0 %v2126
        %v2132 = vpop.xlane.xlu0 %2131
        %v2133 = vmul.f32 %v2130, %v762
        %v2134 = vmul.f32 %v2132, %v762
        %v2135 = vsub.f32 %v2125, %v2133
        %v2136 = vsub.f32 %v2126, %v2134
        %v2137 = vmul.f32 %v2135, %v2135
        %v2138 = vmul.f32 %v2136, %v2136
        %2139 = vadd.xlane.f32.xlu0 %v2137
        %v2140 = vpop.xlane.xlu0 %2139
        %2141 = vadd.xlane.f32.xlu0 %v2138
        %v2142 = vpop.xlane.xlu0 %2141
        %v2143 = vmul.f32 %v2140, %v762
        %v2144 = vmul.f32 %v2142, %v762
        %v2145 = vadd.f32 %v2143, 1e-05
        %v2146 = vadd.f32 %v2144, 1e-05
        %v2147 = vrsqrt.pop %v2145
        %v2148 = vrsqrt.pop %v2146
        %v2149 = vmul.f32 %v2135, %v2147
        %v2150 = vmul.f32 %v2136, %v2148
        %v2152 = vlaneseq
        %v2153 = vshrl.u32 %v2152, 7
        %v2154 = vsub.s32 0, %v2153
        %v2155 = vrot.slane %v2127, %v2154
        %v2157 = vmul.f32 %v2149, %v2155
        %v2158 = vmul.f32 %v2150, %v2155
        %v2160 = vlaneseq
        %v2161 = vshrl.u32 %v2160, 7
        %v2162 = vsub.s32 0, %v2161
        %v2163 = vrot.slane %v2128, %v2162
        %v2165 = vadd.f32 %v2157, %v2163
        %v2166 = vadd.f32 %v2158, %v2163
        %v2167 = vpack.c.bf16 %v2166, %v2165
        %v2168 = vld [vmem:[%s721] sm:$0xff]
        %v2169 = vld [vmem:[%s721 + $0x8] sm:$0xff]
        %v2170 = vld [vmem:[%s721 + $0x10] sm:$0xff]
        %v2171 = vld [vmem:[%s721 + $0x18] sm:$0xff]
        %v2172 = vld [vmem:[%s721 + $0x20] sm:$0xff]
        %v2173 = vld [vmem:[%s721 + $0x28] sm:$0xff]
        %v2174 = vld [vmem:[%s721 + $0x30] sm:$0xff]
        %v2175 = vld [vmem:[%s721 + $0x38] sm:$0xff]
        %v2176 = vld [vmem:[%s721 + $0x40] sm:$0xff]
        %v2177 = vld [vmem:[%s721 + $0x48] sm:$0xff]
        %v2178 = vld [vmem:[%s721 + $0x50] sm:$0xff]
        %v2179 = vld [vmem:[%s721 + $0x58] sm:$0xff]
        %v2180 = vld [vmem:[%s721 + $0x60] sm:$0xff]
        %v2181 = vld [vmem:[%s721 + $0x68] sm:$0xff]
        %v2182 = vld [vmem:[%s721 + $0x70] sm:$0xff]
        %v2183 = vld [vmem:[%s721 + $0x78] sm:$0xff]
        %v2184 = vld [vmem:[%s721 + $0x80] sm:$0xff]
        %v2185 = vld [vmem:[%s721 + $0x88] sm:$0xff]
        %v2186 = vld [vmem:[%s721 + $0x90] sm:$0xff]
        %v2187 = vld [vmem:[%s721 + $0x98] sm:$0xff]
        %v2188 = vld [vmem:[%s721 + $0xa0] sm:$0xff]
        %v2189 = vld [vmem:[%s721 + $0xa8] sm:$0xff]
        %v2190 = vld [vmem:[%s721 + $0xb0] sm:$0xff]
        %v2191 = vld [vmem:[%s721 + $0xb8] sm:$0xff]
        %v2192 = vld [vmem:[%s721 + $0xc0] sm:$0xff]
        %v2193 = vld [vmem:[%s721 + $0xc8] sm:$0xff]
        %v2194 = vld [vmem:[%s721 + $0xd0] sm:$0xff]
        %v2195 = vld [vmem:[%s721 + $0xd8] sm:$0xff]
        %v2196 = vld [vmem:[%s721 + $0xe0] sm:$0xff]
        %v2197 = vld [vmem:[%s721 + $0xe8] sm:$0xff]
        %v2198 = vld [vmem:[%s721 + $0xf0] sm:$0xff]
        %v2199 = vld [vmem:[%s721 + $0xf8] sm:$0xff]
        %v2200 = vld [vmem:[%s725] sm:$0xf]
        %v2202 = vlaneseq
        %v2203 = vshrl.u32 %v2202, 7
        %v2204 = vsub.s32 0, %v2203
        %v2205 = vrot.slane %v2200, %v2204
        %v2206 = vlaneseq
        %v2207 = vshrl.u32 %v2206, 7
        %v2208 = vsub.s32 1, %v2207
        %v2209 = vrot.slane %v2200, %v2208
        %v2210 = vlaneseq
        %v2211 = vshrl.u32 %v2210, 7
        %v2212 = vsub.s32 2, %v2211
        %v2213 = vrot.slane %v2200, %v2212
        %v2214 = vlaneseq
        %v2215 = vshrl.u32 %v2214, 7
        %v2216 = vsub.s32 3, %v2215
        %v2217 = vrot.slane %v2200, %v2216
        %v2254 = vunpack.c.l.b16 %v2168
        %v2255 = vunpack.c.h.b16 %v2168
        %v2256 = vunpack.c.l.b16 %v2169
        %v2257 = vunpack.c.h.b16 %v2169
        %v2258 = vunpack.c.l.b16 %v2170
        %v2259 = vunpack.c.h.b16 %v2170
        %v2260 = vunpack.c.l.b16 %v2171
        %v2261 = vunpack.c.h.b16 %v2171
        %v2262 = vunpack.c.l.b16 %v2172
        %v2263 = vunpack.c.h.b16 %v2172
        %v2264 = vunpack.c.l.b16 %v2173
        %v2265 = vunpack.c.h.b16 %v2173
        %v2266 = vunpack.c.l.b16 %v2174
        %v2267 = vunpack.c.h.b16 %v2174
        %v2268 = vunpack.c.l.b16 %v2175
        %v2269 = vunpack.c.h.b16 %v2175
        %v2270 = vunpack.c.l.b16 %v2176
        %v2271 = vunpack.c.h.b16 %v2176
        %v2272 = vunpack.c.l.b16 %v2177
        %v2273 = vunpack.c.h.b16 %v2177
        %v2274 = vunpack.c.l.b16 %v2178
        %v2275 = vunpack.c.h.b16 %v2178
        %v2276 = vunpack.c.l.b16 %v2179
        %v2277 = vunpack.c.h.b16 %v2179
        %v2278 = vunpack.c.l.b16 %v2180
        %v2279 = vunpack.c.h.b16 %v2180
        %v2280 = vunpack.c.l.b16 %v2181
        %v2281 = vunpack.c.h.b16 %v2181
        %v2282 = vunpack.c.l.b16 %v2182
        %v2283 = vunpack.c.h.b16 %v2182
        %v2284 = vunpack.c.l.b16 %v2183
        %v2285 = vunpack.c.h.b16 %v2183
        %v2286 = vunpack.c.l.b16 %v2184
        %v2287 = vunpack.c.h.b16 %v2184
        %v2288 = vunpack.c.l.b16 %v2185
        %v2289 = vunpack.c.h.b16 %v2185
        %v2290 = vunpack.c.l.b16 %v2186
        %v2291 = vunpack.c.h.b16 %v2186
        %v2292 = vunpack.c.l.b16 %v2187
        %v2293 = vunpack.c.h.b16 %v2187
        %v2294 = vunpack.c.l.b16 %v2188
        %v2295 = vunpack.c.h.b16 %v2188
        %v2296 = vunpack.c.l.b16 %v2189
        %v2297 = vunpack.c.h.b16 %v2189
        %v2298 = vunpack.c.l.b16 %v2190
        %v2299 = vunpack.c.h.b16 %v2190
        %v2300 = vunpack.c.l.b16 %v2191
        %v2301 = vunpack.c.h.b16 %v2191
        %v2302 = vunpack.c.l.b16 %v2192
        %v2303 = vunpack.c.h.b16 %v2192
        %v2304 = vunpack.c.l.b16 %v2193
        %v2305 = vunpack.c.h.b16 %v2193
        %v2306 = vunpack.c.l.b16 %v2194
        %v2307 = vunpack.c.h.b16 %v2194
        %v2308 = vunpack.c.l.b16 %v2195
        %v2309 = vunpack.c.h.b16 %v2195
        %v2310 = vunpack.c.l.b16 %v2196
        %v2311 = vunpack.c.h.b16 %v2196
        %v2312 = vunpack.c.l.b16 %v2197
        %v2313 = vunpack.c.h.b16 %v2197
        %v2314 = vunpack.c.l.b16 %v2198
        %v2315 = vunpack.c.h.b16 %v2198
        %v2316 = vunpack.c.l.b16 %v2199
        %v2317 = vunpack.c.h.b16 %v2199
        %v2318 = vpack.c.b16 %v2258, %v2254
        %v2319 = vpack.c.b16 %v2259, %v2255
        %v2320 = vpack.c.b16 %v2260, %v2256
        %v2321 = vpack.c.b16 %v2261, %v2257
        %v2322 = vpack.c.b16 %v2266, %v2262
        %v2323 = vpack.c.b16 %v2267, %v2263
        %v2324 = vpack.c.b16 %v2268, %v2264
        %v2325 = vpack.c.b16 %v2269, %v2265
        %v2326 = vpack.c.b16 %v2274, %v2270
        %v2327 = vpack.c.b16 %v2275, %v2271
        %v2328 = vpack.c.b16 %v2276, %v2272
        %v2329 = vpack.c.b16 %v2277, %v2273
        %v2330 = vpack.c.b16 %v2282, %v2278
        %v2331 = vpack.c.b16 %v2283, %v2279
        %v2332 = vpack.c.b16 %v2284, %v2280
        %v2333 = vpack.c.b16 %v2285, %v2281
        %v2334 = vpack.c.b16 %v2290, %v2286
        %v2335 = vpack.c.b16 %v2291, %v2287
        %v2336 = vpack.c.b16 %v2292, %v2288
        %v2337 = vpack.c.b16 %v2293, %v2289
        %v2338 = vpack.c.b16 %v2298, %v2294
        %v2339 = vpack.c.b16 %v2299, %v2295
        %v2340 = vpack.c.b16 %v2300, %v2296
        %v2341 = vpack.c.b16 %v2301, %v2297
        %v2342 = vpack.c.b16 %v2306, %v2302
        %v2343 = vpack.c.b16 %v2307, %v2303
        %v2344 = vpack.c.b16 %v2308, %v2304
        %v2345 = vpack.c.b16 %v2309, %v2305
        %v2346 = vpack.c.b16 %v2314, %v2310
        %v2347 = vpack.c.b16 %v2315, %v2311
        %v2348 = vpack.c.b16 %v2316, %v2312
        %v2349 = vpack.c.b16 %v2317, %v2313
        %2382 = vmatprep.subr.bf16.mxu0 %v2319
        %2383 = vmatpush1.bf16.msra.mxu0 %v2318
        %2384 = vmatprep.subr.bf16.mxu0 %v2323
        %2385 = vmatpush1.bf16.msra.mxu0 %v2322
        %2386 = vmatprep.subr.bf16.mxu0 %v2327
        %2387 = vmatpush1.bf16.msra.mxu0 %v2326
        %2388 = vmatprep.subr.bf16.mxu0 %v2331
        %2389 = vmatpush1.bf16.msra.mxu0 %v2330
        %2390 = vmatprep.subr.bf16.mxu0 %v2335
        %2391 = vmatpush1.bf16.msra.mxu0 %v2334
        %2392 = vmatprep.subr.bf16.mxu0 %v2339
        %2393 = vmatpush1.bf16.msra.mxu0 %v2338
        %2394 = vmatprep.subr.bf16.mxu0 %v2343
        %2395 = vmatpush1.bf16.msra.mxu0 %v2342
        %2396 = vmatprep.subr.bf16.mxu0 %v2347
        %2397 = vmatpush1.bf16.msra.mxu0 %v2346
        %2398 = vmatprep.subr.bf16.mxu0 0
        %2399 = vmatpush1.bf16.msra.mxu0 0
        %2400 = vmatprep.subr.bf16.mxu0 0
        %2401 = vmatpush1.bf16.msra.mxu0 0
        %2402 = vmatprep.subr.bf16.mxu0 0
        %2403 = vmatpush1.bf16.msra.mxu0 0
        %2404 = vmatprep.subr.bf16.mxu0 0
        %2405 = vmatpush1.bf16.msra.mxu0 0
        %2406 = vmatprep.subr.bf16.mxu0 0
        %2407 = vmatpush1.bf16.msra.mxu0 0
        %2408 = vmatprep.subr.bf16.mxu0 0
        %2409 = vmatpush1.bf16.msra.mxu0 0
        %2410 = vmatprep.subr.bf16.mxu0 0
        %2411 = vmatpush1.bf16.msra.mxu0 0
        %2412 = vmatprep.subr.bf16.mxu0 0
        %2413 = vmatpush1.bf16.msra.mxu0 0
        %2414 = vmatprep.mubr.bf16.mxu0 0
        %2415 = vmatmul.mubr.bf16.gmra.mrb[0].mxu0 %v2167
        %v2416 = vpop.f32.mrb[0].mxu0
        %v2417 = vadd.f32 %v2205, %v2416
        %v2418 = vpop.f32.mrb[0].mxu0
        %v2419 = vadd.f32 %v2209, %v2418
        %v2420 = vpop.f32.mrb[0].mxu0
        %v2421 = vadd.f32 %v2205, %v2420
        %v2422 = vpop.f32.mrb[0].mxu0
        %v2423 = vadd.f32 %v2209, %v2422
        %2424 = vdwg.mxu0
        %2425 = vmatprep.subr.bf16.mxu0 %v2321
        %2426 = vmatpush1.bf16.msra.mxu0 %v2320
        %2427 = vmatprep.subr.bf16.mxu0 %v2325
        %2428 = vmatpush1.bf16.msra.mxu0 %v2324
        %2429 = vmatprep.subr.bf16.mxu0 %v2329
        %2430 = vmatpush1.bf16.msra.mxu0 %v2328
        %2431 = vmatprep.subr.bf16.mxu0 %v2333
        %2432 = vmatpush1.bf16.msra.mxu0 %v2332
        %2433 = vmatprep.subr.bf16.mxu0 %v2337
        %2434 = vmatpush1.bf16.msra.mxu0 %v2336
        %2435 = vmatprep.subr.bf16.mxu0 %v2341
        %2436 = vmatpush1.bf16.msra.mxu0 %v2340
        %2437 = vmatprep.subr.bf16.mxu0 %v2345
        %2438 = vmatpush1.bf16.msra.mxu0 %v2344
        %2439 = vmatprep.subr.bf16.mxu0 %v2349
        %2440 = vmatpush1.bf16.msra.mxu0 %v2348
        %2441 = vmatprep.subr.bf16.mxu0 0
        %2442 = vmatpush1.bf16.msra.mxu0 0
        %2443 = vmatprep.subr.bf16.mxu0 0
        %2444 = vmatpush1.bf16.msra.mxu0 0
        %2445 = vmatprep.subr.bf16.mxu0 0
        %2446 = vmatpush1.bf16.msra.mxu0 0
        %2447 = vmatprep.subr.bf16.mxu0 0
        %2448 = vmatpush1.bf16.msra.mxu0 0
        %2449 = vmatprep.subr.bf16.mxu0 0
        %2450 = vmatpush1.bf16.msra.mxu0 0
        %2451 = vmatprep.subr.bf16.mxu0 0
        %2452 = vmatpush1.bf16.msra.mxu0 0
        %2453 = vmatprep.subr.bf16.mxu0 0
        %2454 = vmatpush1.bf16.msra.mxu0 0
        %2455 = vmatprep.subr.bf16.mxu0 0
        %2456 = vmatpush1.bf16.msra.mxu0 0
        %2457 = vmatprep.mubr.bf16.mxu0 0
        %2458 = vmatmul.mubr.bf16.gmra.mrb[0].mxu0 %v2167
        %v2459 = vpop.f32.mrb[0].mxu0
        %v2460 = vadd.f32 %v2213, %v2459
        %v2461 = vpop.f32.mrb[0].mxu0
        %v2462 = vadd.f32 %v2217, %v2461
        %v2463 = vpop.f32.mrb[0].mxu0
        %v2464 = vadd.f32 %v2213, %v2463
        %v2465 = vpop.f32.mrb[0].mxu0
        %v2466 = vadd.f32 %v2217, %v2465
        %2467 = vdwg.mxu0
        %v2468 = vmul.f32 %v2417, 1.702
        %v2469 = vmul.f32 %v2419, 1.702
        %v2470 = vmul.f32 %v2460, 1.702
        %v2471 = vmul.f32 %v2462, 1.702
        %v2472 = vmul.f32 %v2421, 1.702
        %v2473 = vmul.f32 %v2423, 1.702
        %v2474 = vmul.f32 %v2464, 1.702
        %v2475 = vmul.f32 %v2466, 1.702
        %v2476 = vxor.u32 %v2468, 2147483648
        %v2477 = vxor.u32 %v2469, 2147483648
        %v2478 = vxor.u32 %v2470, 2147483648
        %v2479 = vxor.u32 %v2471, 2147483648
        %v2480 = vxor.u32 %v2472, 2147483648
        %v2481 = vxor.u32 %v2473, 2147483648
        %v2482 = vxor.u32 %v2474, 2147483648
        %v2483 = vxor.u32 %v2475, 2147483648
        %v2484 = vmul.f32 %v2476, 1.442695
        %v2485 = vpow.pop %v2484
        %v2486 = vmul.f32 %v2477, 1.442695
        %v2487 = vpow.pop %v2486
        %v2488 = vmul.f32 %v2478, 1.442695
        %v2489 = vpow.pop %v2488
        %v2490 = vmul.f32 %v2479, 1.442695
        %v2491 = vpow.pop %v2490
        %v2492 = vmul.f32 %v2480, 1.442695
        %v2493 = vpow.pop %v2492
        %v2494 = vmul.f32 %v2481, 1.442695
        %v2495 = vpow.pop %v2494
        %v2496 = vmul.f32 %v2482, 1.442695
        %v2497 = vpow.pop %v2496
        %v2498 = vmul.f32 %v2483, 1.442695
        %v2499 = vpow.pop %v2498
        %v2500 = vadd.f32 %v2485, 1.0
        %v2501 = vadd.f32 %v2487, 1.0
        %v2502 = vadd.f32 %v2489, 1.0
        %v2503 = vadd.f32 %v2491, 1.0
        %v2504 = vadd.f32 %v2493, 1.0
        %v2505 = vadd.f32 %v2495, 1.0
        %v2506 = vadd.f32 %v2497, 1.0
        %v2507 = vadd.f32 %v2499, 1.0
        %v2508 = vrcp.pop %v2500
        %v2509 = vmul.f32 1.0, %v2508
        %v2510 = vrcp.pop %v2501
        %v2511 = vmul.f32 1.0, %v2510
        %v2512 = vrcp.pop %v2502
        %v2513 = vmul.f32 1.0, %v2512
        %v2514 = vrcp.pop %v2503
        %v2515 = vmul.f32 1.0, %v2514
        %v2516 = vrcp.pop %v2504
        %v2517 = vmul.f32 1.0, %v2516
        %v2518 = vrcp.pop %v2505
        %v2519 = vmul.f32 1.0, %v2518
        %v2520 = vrcp.pop %v2506
        %v2521 = vmul.f32 1.0, %v2520
        %v2522 = vrcp.pop %v2507
        %v2523 = vmul.f32 1.0, %v2522
        %v2524 = vmul.f32 %v2417, %v2509
        %v2525 = vmul.f32 %v2419, %v2511
        %v2526 = vmul.f32 %v2460, %v2513
        %v2527 = vmul.f32 %v2462, %v2515
        %v2528 = vmul.f32 %v2421, %v2517
        %v2529 = vmul.f32 %v2423, %v2519
        %v2530 = vmul.f32 %v2464, %v2521
        %v2531 = vmul.f32 %v2466, %v2523
        %v2532 = vpack.c.bf16 %v2528, %v2524
        %v2533 = vpack.c.bf16 %v2529, %v2525
        %v2534 = vpack.c.bf16 %v2530, %v2526
        %v2535 = vpack.c.bf16 %v2531, %v2527
        %v2536 = vld [vmem:[%s587] sm:$0xf]
        %v2537 = vld [vmem:[%s587 + $0x4] sm:$0xf]
        %v2538 = vld [vmem:[%s587 + $0x8] sm:$0xf]
        %v2539 = vld [vmem:[%s587 + $0xc] sm:$0xf]
        %v2540 = vld [vmem:[%s587 + $0x10] sm:$0xf]
        %v2541 = vld [vmem:[%s587 + $0x14] sm:$0xf]
        %v2542 = vld [vmem:[%s587 + $0x18] sm:$0xf]
        %v2543 = vld [vmem:[%s587 + $0x1c] sm:$0xf]
        %v2544 = vld [vmem:[%s587 + $0x20] sm:$0xf]
        %v2545 = vld [vmem:[%s587 + $0x24] sm:$0xf]
        %v2546 = vld [vmem:[%s587 + $0x28] sm:$0xf]
        %v2547 = vld [vmem:[%s587 + $0x2c] sm:$0xf]
        %v2548 = vld [vmem:[%s587 + $0x30] sm:$0xf]
        %v2549 = vld [vmem:[%s587 + $0x34] sm:$0xf]
        %v2550 = vld [vmem:[%s587 + $0x38] sm:$0xf]
        %v2551 = vld [vmem:[%s587 + $0x3c] sm:$0xf]
        %v2552 = vld [vmem:[%s587 + $0x40] sm:$0xf]
        %v2553 = vld [vmem:[%s587 + $0x44] sm:$0xf]
        %v2554 = vld [vmem:[%s587 + $0x48] sm:$0xf]
        %v2555 = vld [vmem:[%s587 + $0x4c] sm:$0xf]
        %v2556 = vld [vmem:[%s587 + $0x50] sm:$0xf]
        %v2557 = vld [vmem:[%s587 + $0x54] sm:$0xf]
        %v2558 = vld [vmem:[%s587 + $0x58] sm:$0xf]
        %v2559 = vld [vmem:[%s587 + $0x5c] sm:$0xf]
        %v2560 = vld [vmem:[%s587 + $0x60] sm:$0xf]
        %v2561 = vld [vmem:[%s587 + $0x64] sm:$0xf]
        %v2562 = vld [vmem:[%s587 + $0x68] sm:$0xf]
        %v2563 = vld [vmem:[%s587 + $0x6c] sm:$0xf]
        %v2564 = vld [vmem:[%s587 + $0x70] sm:$0xf]
        %v2565 = vld [vmem:[%s587 + $0x74] sm:$0xf]
        %v2566 = vld [vmem:[%s587 + $0x78] sm:$0xf]
        %v2567 = vld [vmem:[%s587 + $0x7c] sm:$0xf]
        %v2568 = vld [vmem:[%s587 + $0x80] sm:$0xf]
        %v2569 = vld [vmem:[%s587 + $0x84] sm:$0xf]
        %v2570 = vld [vmem:[%s587 + $0x88] sm:$0xf]
        %v2571 = vld [vmem:[%s587 + $0x8c] sm:$0xf]
        %v2572 = vld [vmem:[%s587 + $0x90] sm:$0xf]
        %v2573 = vld [vmem:[%s587 + $0x94] sm:$0xf]
        %v2574 = vld [vmem:[%s587 + $0x98] sm:$0xf]
        %v2575 = vld [vmem:[%s587 + $0x9c] sm:$0xf]
        %v2576 = vld [vmem:[%s587 + $0xa0] sm:$0xf]
        %v2577 = vld [vmem:[%s587 + $0xa4] sm:$0xf]
        %v2578 = vld [vmem:[%s587 + $0xa8] sm:$0xf]
        %v2579 = vld [vmem:[%s587 + $0xac] sm:$0xf]
        %v2580 = vld [vmem:[%s587 + $0xb0] sm:$0xf]
        %v2581 = vld [vmem:[%s587 + $0xb4] sm:$0xf]
        %v2582 = vld [vmem:[%s587 + $0xb8] sm:$0xf]
        %v2583 = vld [vmem:[%s587 + $0xbc] sm:$0xf]
        %v2584 = vld [vmem:[%s587 + $0xc0] sm:$0xf]
        %v2585 = vld [vmem:[%s587 + $0xc4] sm:$0xf]
        %v2586 = vld [vmem:[%s587 + $0xc8] sm:$0xf]
        %v2587 = vld [vmem:[%s587 + $0xcc] sm:$0xf]
        %v2588 = vld [vmem:[%s587 + $0xd0] sm:$0xf]
        %v2589 = vld [vmem:[%s587 + $0xd4] sm:$0xf]
        %v2590 = vld [vmem:[%s587 + $0xd8] sm:$0xf]
        %v2591 = vld [vmem:[%s587 + $0xdc] sm:$0xf]
        %v2592 = vld [vmem:[%s587 + $0xe0] sm:$0xf]
        %v2593 = vld [vmem:[%s587 + $0xe4] sm:$0xf]
        %v2594 = vld [vmem:[%s587 + $0xe8] sm:$0xf]
        %v2595 = vld [vmem:[%s587 + $0xec] sm:$0xf]
        %v2596 = vld [vmem:[%s587 + $0xf0] sm:$0xf]
        %v2597 = vld [vmem:[%s587 + $0xf4] sm:$0xf]
        %v2598 = vld [vmem:[%s587 + $0xf8] sm:$0xf]
        %v2599 = vld [vmem:[%s587 + $0xfc] sm:$0xf]
        %v2600 = vld [vmem:[%s728] sm:$0x1]
        %v2602 = vlaneseq
        %v2603 = vshrl.u32 %v2602, 7
        %v2604 = vsub.s32 0, %v2603
        %v2605 = vrot.slane %v2600, %v2604
        %v2671 = vunpack.c.l.b16 %v2536
        %v2672 = vunpack.c.l.b16 %v2537
        %v2673 = vunpack.c.l.b16 %v2538
        %v2674 = vunpack.c.l.b16 %v2539
        %v2675 = vunpack.c.l.b16 %v2540
        %v2676 = vunpack.c.l.b16 %v2541
        %v2677 = vunpack.c.l.b16 %v2542
        %v2678 = vunpack.c.l.b16 %v2543
        %v2679 = vunpack.c.l.b16 %v2544
        %v2680 = vunpack.c.l.b16 %v2545
        %v2681 = vunpack.c.l.b16 %v2546
        %v2682 = vunpack.c.l.b16 %v2547
        %v2683 = vunpack.c.l.b16 %v2548
        %v2684 = vunpack.c.l.b16 %v2549
        %v2685 = vunpack.c.l.b16 %v2550
        %v2686 = vunpack.c.l.b16 %v2551
        %v2687 = vunpack.c.l.b16 %v2552
        %v2688 = vunpack.c.l.b16 %v2553
        %v2689 = vunpack.c.l.b16 %v2554
        %v2690 = vunpack.c.l.b16 %v2555
        %v2691 = vunpack.c.l.b16 %v2556
        %v2692 = vunpack.c.l.b16 %v2557
        %v2693 = vunpack.c.l.b16 %v2558
        %v2694 = vunpack.c.l.b16 %v2559
        %v2695 = vunpack.c.l.b16 %v2560
        %v2696 = vunpack.c.l.b16 %v2561
        %v2697 = vunpack.c.l.b16 %v2562
        %v2698 = vunpack.c.l.b16 %v2563
        %v2699 = vunpack.c.l.b16 %v2564
        %v2700 = vunpack.c.l.b16 %v2565
        %v2701 = vunpack.c.l.b16 %v2566
        %v2702 = vunpack.c.l.b16 %v2567
        %v2703 = vunpack.c.l.b16 %v2568
        %v2704 = vunpack.c.l.b16 %v2569
        %v2705 = vunpack.c.l.b16 %v2570
        %v2706 = vunpack.c.l.b16 %v2571
        %v2707 = vunpack.c.l.b16 %v2572
        %v2708 = vunpack.c.l.b16 %v2573
        %v2709 = vunpack.c.l.b16 %v2574
        %v2710 = vunpack.c.l.b16 %v2575
        %v2711 = vunpack.c.l.b16 %v2576
        %v2712 = vunpack.c.l.b16 %v2577
        %v2713 = vunpack.c.l.b16 %v2578
        %v2714 = vunpack.c.l.b16 %v2579
        %v2715 = vunpack.c.l.b16 %v2580
        %v2716 = vunpack.c.l.b16 %v2581
        %v2717 = vunpack.c.l.b16 %v2582
        %v2718 = vunpack.c.l.b16 %v2583
        %v2719 = vunpack.c.l.b16 %v2584
        %v2720 = vunpack.c.l.b16 %v2585
        %v2721 = vunpack.c.l.b16 %v2586
        %v2722 = vunpack.c.l.b16 %v2587
        %v2723 = vunpack.c.l.b16 %v2588
        %v2724 = vunpack.c.l.b16 %v2589
        %v2725 = vunpack.c.l.b16 %v2590
        %v2726 = vunpack.c.l.b16 %v2591
        %v2727 = vunpack.c.l.b16 %v2592
        %v2728 = vunpack.c.l.b16 %v2593
        %v2729 = vunpack.c.l.b16 %v2594
        %v2730 = vunpack.c.l.b16 %v2595
        %v2731 = vunpack.c.l.b16 %v2596
        %v2732 = vunpack.c.l.b16 %v2597
        %v2733 = vunpack.c.l.b16 %v2598
        %v2734 = vunpack.c.l.b16 %v2599
        %v2735 = vpack.c.b16 %v2672, %v2671
        %v2736 = vpack.c.b16 %v2674, %v2673
        %v2737 = vpack.c.b16 %v2676, %v2675
        %v2738 = vpack.c.b16 %v2678, %v2677
        %v2739 = vpack.c.b16 %v2680, %v2679
        %v2740 = vpack.c.b16 %v2682, %v2681
        %v2741 = vpack.c.b16 %v2684, %v2683
        %v2742 = vpack.c.b16 %v2686, %v2685
        %v2743 = vpack.c.b16 %v2688, %v2687
        %v2744 = vpack.c.b16 %v2690, %v2689
        %v2745 = vpack.c.b16 %v2692, %v2691
        %v2746 = vpack.c.b16 %v2694, %v2693
        %v2747 = vpack.c.b16 %v2696, %v2695
        %v2748 = vpack.c.b16 %v2698, %v2697
        %v2749 = vpack.c.b16 %v2700, %v2699
        %v2750 = vpack.c.b16 %v2702, %v2701
        %v2751 = vpack.c.b16 %v2704, %v2703
        %v2752 = vpack.c.b16 %v2706, %v2705
        %v2753 = vpack.c.b16 %v2708, %v2707
        %v2754 = vpack.c.b16 %v2710, %v2709
        %v2755 = vpack.c.b16 %v2712, %v2711
        %v2756 = vpack.c.b16 %v2714, %v2713
        %v2757 = vpack.c.b16 %v2716, %v2715
        %v2758 = vpack.c.b16 %v2718, %v2717
        %v2759 = vpack.c.b16 %v2720, %v2719
        %v2760 = vpack.c.b16 %v2722, %v2721
        %v2761 = vpack.c.b16 %v2724, %v2723
        %v2762 = vpack.c.b16 %v2726, %v2725
        %v2763 = vpack.c.b16 %v2728, %v2727
        %v2764 = vpack.c.b16 %v2730, %v2729
        %v2765 = vpack.c.b16 %v2732, %v2731
        %v2766 = vpack.c.b16 %v2734, %v2733
        %2799 = vmatprep.subr.bf16.mxu0 0
        %2800 = vmatpush1.bf16.msra.mxu0 %v2735
        %2801 = vmatprep.subr.bf16.mxu0 0
        %2802 = vmatpush1.bf16.msra.mxu0 %v2736
        %2803 = vmatprep.subr.bf16.mxu0 0
        %2804 = vmatpush1.bf16.msra.mxu0 %v2737
        %2805 = vmatprep.subr.bf16.mxu0 0
        %2806 = vmatpush1.bf16.msra.mxu0 %v2738
        %2807 = vmatprep.subr.bf16.mxu0 0
        %2808 = vmatpush1.bf16.msra.mxu0 %v2739
        %2809 = vmatprep.subr.bf16.mxu0 0
        %2810 = vmatpush1.bf16.msra.mxu0 %v2740
        %2811 = vmatprep.subr.bf16.mxu0 0
        %2812 = vmatpush1.bf16.msra.mxu0 %v2741
        %2813 = vmatprep.subr.bf16.mxu0 0
        %2814 = vmatpush1.bf16.msra.mxu0 %v2742
        %2815 = vmatprep.subr.bf16.mxu0 0
        %2816 = vmatpush1.bf16.msra.mxu0 %v2743
        %2817 = vmatprep.subr.bf16.mxu0 0
        %2818 = vmatpush1.bf16.msra.mxu0 %v2744
        %2819 = vmatprep.subr.bf16.mxu0 0
        %2820 = vmatpush1.bf16.msra.mxu0 %v2745
        %2821 = vmatprep.subr.bf16.mxu0 0
        %2822 = vmatpush1.bf16.msra.mxu0 %v2746
        %2823 = vmatprep.subr.bf16.mxu0 0
        %2824 = vmatpush1.bf16.msra.mxu0 %v2747
        %2825 = vmatprep.subr.bf16.mxu0 0
        %2826 = vmatpush1.bf16.msra.mxu0 %v2748
        %2827 = vmatprep.subr.bf16.mxu0 0
        %2828 = vmatpush1.bf16.msra.mxu0 %v2749
        %2829 = vmatprep.subr.bf16.mxu0 0
        %2830 = vmatpush1.bf16.msra.mxu0 %v2750
        %2831 = vmatprep.mubr.bf16.mxu0 %v2533
        %2832 = vmatmul.mubr.bf16.gmra.mrb[0].mxu0 %v2532
        %v2833 = vpop.f32.mrb[0].mxu0
        %v2834 = vadd.f32 %v2605, %v2833
        %v2835 = vpop.f32.mrb[0].mxu0
        %v2836 = vpop.f32.mrb[0].mxu0
        %v2837 = vadd.f32 %v2605, %v2836
        %v2838 = vpop.f32.mrb[0].mxu0
        %2839 = vdwg.mxu0
        %2840 = vmatprep.subr.bf16.mxu0 0
        %2841 = vmatpush1.bf16.msra.mxu0 %v2751
        %2842 = vmatprep.subr.bf16.mxu0 0
        %2843 = vmatpush1.bf16.msra.mxu0 %v2752
        %2844 = vmatprep.subr.bf16.mxu0 0
        %2845 = vmatpush1.bf16.msra.mxu0 %v2753
        %2846 = vmatprep.subr.bf16.mxu0 0
        %2847 = vmatpush1.bf16.msra.mxu0 %v2754
        %2848 = vmatprep.subr.bf16.mxu0 0
        %2849 = vmatpush1.bf16.msra.mxu0 %v2755
        %2850 = vmatprep.subr.bf16.mxu0 0
        %2851 = vmatpush1.bf16.msra.mxu0 %v2756
        %2852 = vmatprep.subr.bf16.mxu0 0
        %2853 = vmatpush1.bf16.msra.mxu0 %v2757
        %2854 = vmatprep.subr.bf16.mxu0 0
        %2855 = vmatpush1.bf16.msra.mxu0 %v2758
        %2856 = vmatprep.subr.bf16.mxu0 0
        %2857 = vmatpush1.bf16.msra.mxu0 %v2759
        %2858 = vmatprep.subr.bf16.mxu0 0
        %2859 = vmatpush1.bf16.msra.mxu0 %v2760
        %2860 = vmatprep.subr.bf16.mxu0 0
        %2861 = vmatpush1.bf16.msra.mxu0 %v2761
        %2862 = vmatprep.subr.bf16.mxu0 0
        %2863 = vmatpush1.bf16.msra.mxu0 %v2762
        %2864 = vmatprep.subr.bf16.mxu0 0
        %2865 = vmatpush1.bf16.msra.mxu0 %v2763
        %2866 = vmatprep.subr.bf16.mxu0 0
        %2867 = vmatpush1.bf16.msra.mxu0 %v2764
        %2868 = vmatprep.subr.bf16.mxu0 0
        %2869 = vmatpush1.bf16.msra.mxu0 %v2765
        %2870 = vmatprep.subr.bf16.mxu0 0
        %2871 = vmatpush1.bf16.msra.mxu0 %v2766
        %2872 = vmatprep.mubr.bf16.mxu0 %v2535
        %2873 = vmatmul.mubr.bf16.gmra.mrb[0].mxu0 %v2534
        %v2874 = vpop.f32.mrb[0].mxu0
        %v2875 = vadd.f32 %v2834, %v2874
        %v2876 = vpop.f32.mrb[0].mxu0
        %v2877 = vpop.f32.mrb[0].mxu0
        %v2878 = vadd.f32 %v2837, %v2877
        %v2879 = vpop.f32.mrb[0].mxu0
        %2880 = vdwg.mxu0
        %v2881 = vadd.f32 %v2125, %v2875
        %v2882 = vadd.f32 %v2126, %v2878
        %2883 = vst [vmem:[%s733] sm:$0xff] %v2881
        %2884 = vst [vmem:[%s733 + $0x8] sm:$0xff] %v2882
        %s2885 = smul.u32 2, %s36
        %p2886 = scmp.lt.s32.totalorder %s2885, 1
        %s2887 = scalar_select %p2886, %s2885, 1
        %s2888 = smul.addr %s2887, 8
        %s2889 = scalar_lea.vmem %s13, %s2888
        %s2890 = smul.u32 2, %s36
        %p2891 = scmp.lt.s32.totalorder %s37, 1
        %s2892 = scalar_select %p2891, %s37, 1
        %p2893 = scmp.lt.s32.totalorder %s2890, 1
        %s2894 = scalar_select %p2893, %s2890, 1
        %s2895 = smul.addr %s2892, 2
        %s2896 = sadd.s32 %s2894, %s2895
        %s2897 = smul.addr %s2896, 8
        %s2898 = scalar_lea.vmem %s14, %s2897
        // Predicated region
        $region85: #{visual_transformer_forward.4} parent=71 // pred_check
          %p2899 = pneg %p400
        $region86: #{visual_transformer_forward.4} parent=71 // pred_check_branch
          %2901 = sbr.rel (%p2899) target = $region88
        $region87: #{visual_transformer_forward.4} parent=71 // pred_region
          %s2902 = smul.u32 2, %s36
        $region88: #{visual_transformer_forward.4} parent=71 // pred_fallthru
          _
        // Predicated region
        $region89: #{visual_transformer_forward.4} parent=71 // pred_check
          %p2903 = pneg %p428
        $region90: #{visual_transformer_forward.4} parent=71 // pred_check_branch
          %2905 = sbr.rel (%p2903) target = $region92
        $region91: #{visual_transformer_forward.4} parent=71 // pred_region
          %s2906 = smul.u32 2, %s36
        $region92: #{visual_transformer_forward.4} parent=71 // pred_fallthru
          _
        // Predicated region
        $region93: #{visual_transformer_forward.4} parent=71 // pred_check
          %p2907 = pneg %p400
        $region94: #{visual_transformer_forward.4} parent=71 // pred_check_branch
          %2909 = sbr.rel (%p2907) target = $region96
        $region95: #{visual_transformer_forward.4} parent=71 // pred_region
          %s2910 = smul.u32 2, %s36
          %p2911 = scmp.lt.s32.totalorder %s2910, 1
          %s2912 = scalar_select %p2911, %s2910, 1
          %s2913 = smul.addr %s2912, 8
          %s2914 = scalar_lea.vmem %s13, %s2913
        $region96: #{visual_transformer_forward.4} parent=71 // pred_fallthru
          _
      $region72: #{visual_transformer_forward.4} parent=5 // pred_fallthru
        _
      %p2915 = scmp.le.s32.totalorder 2, %s27
      // Predicated region
      $region97: #{visual_transformer_forward.4} parent=5 // pred_check
        %p2916 = pneg %p2915
      $region98: #{visual_transformer_forward.4} parent=5 // pred_check_branch
        %2918 = sbr.rel (%p2916) target = $region100
      $region99: #{visual_transformer_forward.4} parent=5 // pred_region
        %s2919 = ssub.s32 %s27, 2
        // Predicated region
        $region101: #{visual_transformer_forward.4} parent=99 // pred_check
          %p2920 = pneg %p434
        $region102: #{visual_transformer_forward.4} parent=99 // pred_check_branch
          %2922 = sbr.rel (%p2920) target = $region104
        $region103: #{visual_transformer_forward.4} parent=99 // pred_region
          %s2923 = smul.u32 2, %s38
          %p2924 = scmp.lt.s32.totalorder %s39, 1
          %s2925 = scalar_select %p2924, %s39, 1
          %p2926 = scmp.lt.s32.totalorder %s2923, 1
          %s2927 = scalar_select %p2926, %s2923, 1
          %s2928 = smul.addr %s2925, 2
          %s2929 = sadd.s32 %s2927, %s2928
          %s2930 = smul.addr %s2929, 8
          %s2931 = scalar_lea.vmem %s14, %s2930
        $region104: #{visual_transformer_forward.4} parent=99 // pred_fallthru
          _
      $region100: #{visual_transformer_forward.4} parent=5 // pred_fallthru
        _
    $region6: #{visual_transformer_forward.4} parent=1 // loop_footer
      %s31 = sadd.s32 1, %s27
    $region7: #{visual_transformer_forward.4} parent=1 // loop_footer_branch
      %26 = sbr.rel target = $region3
    $region8: #{visual_transformer_forward.4} parent=1 // loop_exit
      _
    %2932 = vsyncpa [#allocation4], 1
    %s2933 = scalar_lea.sflag [#allocation4], 1
    %2934 = vsyncpa %s2933, 1
    %2935 = vsyncpa [#allocation6], 1
    %s2936 = scalar_lea.sflag [#allocation6], 1
    %2937 = vsyncpa %s2936, 1

</llo_original>
